<compile_context>
chip_gen: v7x
topology: tpu7x:2x2x1
jax: 0.10.0
libtpu: 0.0.40
codegen_flags: <defaults>
</compile_context>

<pallas_src>
import jax
import jax.numpy as jnp
from jax import lax
from jax.experimental import pallas as pl
from jax.experimental.pallas import tpu as pltpu

FEAT = 1000               # x.view(6, -1, 1000)
POOL = 5                  # nn.MaxPool1d(5)
GRP = FEAT // POOL        # 200 pooled outputs per tap row
WIN = FEAT - (POOL - 1)   # 996 valid window starts per tap row


def _parallel_kernel(sel_ref, y1_ref, taps_ref, o_ref):
    """sel_ref:  (WIN, GRP)      bf16, sel[l, g] = 1 iff l == 5*g (fetched once)
       y1_ref:   (bm, FEAT)      rows of x[0]
       taps_ref: (bm, POOL*FEAT) the 5 concatenated tap rows of each batch
       o_ref:    (bm, 2*FEAT)    [:, :FEAT] = y1, [:, FEAT:] = maxpool(x[1:6])
    """
    # First half of torch.cat([y1, y2], 1): identity copy of x[0] (single wide store).
    o_ref[:, 0:FEAT] = y1_ref[...]

    sel = sel_ref[...]                                  # (WIN, GRP) bf16
    exact_bf16 = taps_ref.dtype == jnp.bfloat16

    for k in range(POOL):
        base = k * FEAT
        # Windowed max over 5 consecutive lanes of tap row k (plain lane-offset loads
        # within the lane-contiguous (bm, 5000) block):
        #   w[:, l] = max_{r<5} taps[:, k*1000 + l + r]
        w = taps_ref[:, base:base + WIN].astype(jnp.float32)
        for r in range(1, POOL):
            w = jnp.maximum(w, taps_ref[:, base + r:base + r + WIN].astype(jnp.float32))

        # Exact stride-5 lane compaction on the (otherwise idle) MXU.
        if exact_bf16:
            # bf16 values survive the f32 max exactly -> one matmul per tap.
            pooled = jnp.dot(w.astype(jnp.bfloat16), sel,
                             preferred_element_type=jnp.float32)
        else:
            # f32 (or f16-upcast) path: 3-term bf16 split so the 0/1 matmul passes
            # values through (essentially) bit-exactly; each term consumed at once.
            w_hi = w.astype(jnp.bfloat16)
            pooled = jnp.dot(w_hi, sel, preferred_element_type=jnp.float32)
            rem = w - w_hi.astype(jnp.float32)
            w_mid = rem.astype(jnp.bfloat16)
            pooled = pooled + jnp.dot(w_mid, sel, preferred_element_type=jnp.float32)
            w_lo = (rem - w_mid.astype(jnp.float32)).astype(jnp.bfloat16)
            pooled = pooled + jnp.dot(w_lo, sel, preferred_element_type=jnp.float32)

        # pooled[b, g] = max-pool of output feature (k*GRP + g) of batch b.
        # TODO(synk): coalesce the five 200-lane stores into one lane-concat + single
        # store once unaligned minor-dim concat is guaranteed to lower on all gens.
        o_ref[:, FEAT + GRP * k: FEAT + GRP * (k + 1)] = pooled.astype(o_ref.dtype)


def _choose_bm(B: int, bm_max: int = 256):
    """Return (bm, aligned): aligned=True iff 5*bm divides B (zero-copy path).

    bm is a multiple of 8 sublanes; prefer the largest tile, with a mild preference
    for an even number of grid steps (v7x has 2 TensorCores per chip).
    """
    bm_max = max(8, (min(bm_max, 512) // 8) * 8)
    cands = [d for d in range(8, bm_max + 1, 8) if B % (POOL * d) == 0]
    if cands:
        best = max(cands)
        even = [d for d in cands if (B // d) % 2 == 0]
        if even and 2 * max(even) >= best:
            best = max(even)
        return best, True
    # Ragged: cdiv grid + masked partial last block.
    bm = min(bm_max, max(8, ((B + 7) // 8) * 8))
    return bm, False


def parallel_module_forward(x, *, bm_max: int = 256):
    """Pallas TPU implementation of ParallelModule.forward; returns (B, 2*FEAT)."""
    if not jnp.issubdtype(x.dtype, jnp.floating):
        raise ValueError("parallel_module_forward supports float32/bfloat16/float16")
    total = x.size
    if total % (6 * FEAT) != 0:
        raise ValueError("input must have 6*N*1000 elements (x.view(6, -1, 1000))")
    B = total // (6 * FEAT)
    bm, aligned = _choose_bm(B, bm_max)

    x_flat = x.reshape(-1)                       # free view
    xf = x_flat.reshape(6 * B, FEAT)             # free view; rows [0, B) -> y1

    # 0/1 selection matrix, built once per call (not per grid step).
    sel = (lax.broadcasted_iota(jnp.int32, (WIN, GRP), 0)
           == POOL * lax.broadcasted_iota(jnp.int32, (WIN, GRP), 1)
           ).astype(jnp.bfloat16)

    if aligned:
        # Zero-copy: taps for batch b are row B//5 + b of this free view.
        taps = x_flat.reshape(6 * B // POOL, POOL * FEAT)
        tap_blk_off = B // (POOL * bm)
        grid = (B // bm,)
        taps_spec = pl.BlockSpec((bm, POOL * FEAT), lambda i: (tap_blk_off + i, 0))
    else:
        # Ragged batch: one lane-dense slice-copy of the tap region (batch padding
        # would change the view(1000,-1,5) semantics, so it is NOT used).
        # TODO(synk): zero-copy ragged path via memory_space=pl.ANY + manual DMA
        # from xf row offset B + 5*i*bm.
        taps = x_flat[B * FEAT:].reshape(B, POOL * FEAT)
        grid = (pl.cdiv(B, bm),)
        taps_spec = pl.BlockSpec((bm, POOL * FEAT), lambda i: (i, 0))

    out = pl.pallas_call(
        _parallel_kernel,
        out_shape=jax.ShapeDtypeStruct((B, 2 * FEAT), x.dtype),
        grid=grid,
        in_specs=[
            pl.BlockSpec((WIN, GRP), lambda i: (0, 0)),      # sel: constant block
            pl.BlockSpec((bm, FEAT), lambda i: (i, 0)),      # y1 rows of xf
            taps_spec,                                       # (bm, 5000) tap rows
        ],
        out_specs=pl.BlockSpec((bm, 2 * FEAT), lambda i: (i, 0)),
        compiler_params=pltpu.CompilerParams(
            dimension_semantics=("parallel",),
            vmem_limit_bytes=32 * 1024 * 1024,
        ),
    )(sel, xf, taps)
    return out


def _reference(x):
    """Direct transcription of the PyTorch forward in plain JAX."""
    x6 = x.reshape(6, -1, FEAT)
    B = x6.shape[1]
    y1 = x6[0]
    w = x6[1:6].reshape(FEAT, B, POOL)      # VGGkModule: view(1000, -1, 5)
    pooled = w.max(axis=-1)                 # nn.MaxPool1d(5) -> (1000, B)
    y2 = pooled.reshape(-1, FEAT)           # view(-1, 1000)  -> (B, 1000)
    return jnp.concatenate([y1, y2], axis=1)


if __name__ == "__main__":
    fwd = jax.jit(parallel_module_forward)
    key = jax.random.PRNGKey(0)
    k1, k2 = jax.random.split(key)

    # Zero-copy aligned path: B divisible by 5*bm (bm=8 -> grid of 5 steps).
    B = 40
    x = jax.random.normal(k1, (6, B, FEAT), dtype=jnp.float32)
    y = jax.block_until_ready(fwd(x))
    y_ref = _reference(x)
    assert y.shape == (B, 2 * FEAT), y.shape
    assert jnp.allclose(y, y_ref, rtol=1e-5, atol=1e-5), "Pallas mismatch (B=40)"

    # Ragged batch (B % 5 != 0): slice-copy taps operand, cdiv grid.
    B2 = 16
    x2 = jax.random.normal(k2, (6, B2, FEAT), dtype=jnp.float32)
    y2 = jax.block_until_ready(fwd(x2))
    y2_ref = _reference(x2)
    assert y2.shape == (B2, 2 * FEAT), y2.shape
    assert jnp.allclose(y2, y2_ref, rtol=1e-5, atol=1e-5), "Pallas mismatch (B=16)"

    print("KERNEL_OK")
</pallas_src>

<mosaic_0001>
module attributes {stable_mosaic.version = 11 : i64} {
  func.func @_parallel_kernel(%arg0: i32, %arg1: memref<996x200xbf16, #tpu.memory_space<vmem>>, %arg2: memref<8x1000xf32, #tpu.memory_space<vmem>>, %arg3: memref<8x5000xf32, #tpu.memory_space<vmem>>, %arg4: memref<8x2000xf32, #tpu.memory_space<vmem>>) attributes {dimension_semantics = [#tpu.dimension_semantics<parallel>], iteration_bounds = array<i64: 5>, scalar_prefetch = 0 : i64, scratch_operands = 0 : i64, tpu.core_type = #tpu.core_type<tc>, window_params = [{pipeline_mode = #tpu.pipeline_mode<synchronous>, transform_indices = @transform_0, window_bounds = array<i64: 996, 200>}, {transform_indices = @transform_1, window_bounds = array<i64: 8, 1000>}, {transform_indices = @transform_2, window_bounds = array<i64: 8, 5000>}, {transform_indices = @transform_3, window_bounds = array<i64: 8, 2000>}]} {
    %c0 = arith.constant 0 : index
    %c0_0 = arith.constant 0 : index
    %0 = vector.load %arg2[%c0, %c0_0] : memref<8x1000xf32, #tpu.memory_space<vmem>>, vector<8x1000xf32>
    %c0_1 = arith.constant 0 : index
    %c0_2 = arith.constant 0 : index
    %1 = vector.load %arg4[%c0_1, %c0_2] : memref<8x2000xf32, #tpu.memory_space<vmem>>, vector<8x1000xf32>
    tpu.vector_store %arg4[%c0_1, %c0_2], %0 {strides = array<i32>} : memref<8x2000xf32, #tpu.memory_space<vmem>>, vector<8x1000xf32>,
    %c0_3 = arith.constant 0 : index
    %c0_4 = arith.constant 0 : index
    %2 = vector.load %arg1[%c0_3, %c0_4] : memref<996x200xbf16, #tpu.memory_space<vmem>>, vector<996x200xbf16>
    %c0_5 = arith.constant 0 : index
    %c0_6 = arith.constant 0 : index
    %3 = vector.load %arg3[%c0_5, %c0_6] : memref<8x5000xf32, #tpu.memory_space<vmem>>, vector<8x996xf32>
    %c0_7 = arith.constant 0 : index
    %c1 = arith.constant 1 : index
    %4 = vector.load %arg3[%c0_7, %c1] : memref<8x5000xf32, #tpu.memory_space<vmem>>, vector<8x996xf32>
    %5 = arith.maximumf %3, %4 : vector<8x996xf32>
    %c0_8 = arith.constant 0 : index
    %c2 = arith.constant 2 : index
    %6 = vector.load %arg3[%c0_8, %c2] : memref<8x5000xf32, #tpu.memory_space<vmem>>, vector<8x996xf32>
    %7 = arith.maximumf %5, %6 : vector<8x996xf32>
    %c0_9 = arith.constant 0 : index
    %c3 = arith.constant 3 : index
    %8 = vector.load %arg3[%c0_9, %c3] : memref<8x5000xf32, #tpu.memory_space<vmem>>, vector<8x996xf32>
    %9 = arith.maximumf %7, %8 : vector<8x996xf32>
    %c0_10 = arith.constant 0 : index
    %c4 = arith.constant 4 : index
    %10 = vector.load %arg3[%c0_10, %c4] : memref<8x5000xf32, #tpu.memory_space<vmem>>, vector<8x996xf32>
    %11 = arith.maximumf %9, %10 : vector<8x996xf32>
    %12 = arith.truncf %11 : vector<8x996xf32> to vector<8x996xbf16>
    %cst = arith.constant dense<0.000000e+00> : vector<8x200xf32>
    %13 = tpu.matmul %12, %2, %cst {dimension_numbers = #tpu.dot_dimension_numbers<[1], [0], [0], [1], [0, 0, 1, 1], [], []>} : vector<8x996xbf16>, vector<996x200xbf16>, vector<8x200xf32> -> vector<8x200xf32>
    %14 = arith.extf %12 : vector<8x996xbf16> to vector<8x996xf32>
    %15 = arith.subf %11, %14 : vector<8x996xf32>
    %16 = arith.truncf %15 : vector<8x996xf32> to vector<8x996xbf16>
    %cst_11 = arith.constant dense<0.000000e+00> : vector<8x200xf32>
    %17 = tpu.matmul %16, %2, %cst_11 {dimension_numbers = #tpu.dot_dimension_numbers<[1], [0], [0], [1], [0, 0, 1, 1], [], []>} : vector<8x996xbf16>, vector<996x200xbf16>, vector<8x200xf32> -> vector<8x200xf32>
    %18 = arith.addf %13, %17 : vector<8x200xf32>
    %19 = arith.extf %16 : vector<8x996xbf16> to vector<8x996xf32>
    %20 = arith.subf %15, %19 : vector<8x996xf32>
    %21 = arith.truncf %20 : vector<8x996xf32> to vector<8x996xbf16>
    %cst_12 = arith.constant dense<0.000000e+00> : vector<8x200xf32>
    %22 = tpu.matmul %21, %2, %cst_12 {dimension_numbers = #tpu.dot_dimension_numbers<[1], [0], [0], [1], [0, 0, 1, 1], [], []>} : vector<8x996xbf16>, vector<996x200xbf16>, vector<8x200xf32> -> vector<8x200xf32>
    %23 = arith.addf %18, %22 : vector<8x200xf32>
    %c0_13 = arith.constant 0 : index
    %c1000 = arith.constant 1000 : index
    %24 = vector.load %arg4[%c0_13, %c1000] : memref<8x2000xf32, #tpu.memory_space<vmem>>, vector<8x200xf32>
    tpu.vector_store %arg4[%c0_13, %c1000], %23 {strides = array<i32>} : memref<8x2000xf32, #tpu.memory_space<vmem>>, vector<8x200xf32>,
    %c0_14 = arith.constant 0 : index
    %c1000_15 = arith.constant 1000 : index
    %25 = vector.load %arg3[%c0_14, %c1000_15] : memref<8x5000xf32, #tpu.memory_space<vmem>>, vector<8x996xf32>
    %c0_16 = arith.constant 0 : index
    %c1001 = arith.constant 1001 : index
    %26 = vector.load %arg3[%c0_16, %c1001] : memref<8x5000xf32, #tpu.memory_space<vmem>>, vector<8x996xf32>
    %27 = arith.maximumf %25, %26 : vector<8x996xf32>
    %c0_17 = arith.constant 0 : index
    %c1002 = arith.constant 1002 : index
    %28 = vector.load %arg3[%c0_17, %c1002] : memref<8x5000xf32, #tpu.memory_space<vmem>>, vector<8x996xf32>
    %29 = arith.maximumf %27, %28 : vector<8x996xf32>
    %c0_18 = arith.constant 0 : index
    %c1003 = arith.constant 1003 : index
    %30 = vector.load %arg3[%c0_18, %c1003] : memref<8x5000xf32, #tpu.memory_space<vmem>>, vector<8x996xf32>
    %31 = arith.maximumf %29, %30 : vector<8x996xf32>
    %c0_19 = arith.constant 0 : index
    %c1004 = arith.constant 1004 : index
    %32 = vector.load %arg3[%c0_19, %c1004] : memref<8x5000xf32, #tpu.memory_space<vmem>>, vector<8x996xf32>
    %33 = arith.maximumf %31, %32 : vector<8x996xf32>
    %34 = arith.truncf %33 : vector<8x996xf32> to vector<8x996xbf16>
    %cst_20 = arith.constant dense<0.000000e+00> : vector<8x200xf32>
    %35 = tpu.matmul %34, %2, %cst_20 {dimension_numbers = #tpu.dot_dimension_numbers<[1], [0], [0], [1], [0, 0, 1, 1], [], []>} : vector<8x996xbf16>, vector<996x200xbf16>, vector<8x200xf32> -> vector<8x200xf32>
    %36 = arith.extf %34 : vector<8x996xbf16> to vector<8x996xf32>
    %37 = arith.subf %33, %36 : vector<8x996xf32>
    %38 = arith.truncf %37 : vector<8x996xf32> to vector<8x996xbf16>
    %cst_21 = arith.constant dense<0.000000e+00> : vector<8x200xf32>
    %39 = tpu.matmul %38, %2, %cst_21 {dimension_numbers = #tpu.dot_dimension_numbers<[1], [0], [0], [1], [0, 0, 1, 1], [], []>} : vector<8x996xbf16>, vector<996x200xbf16>, vector<8x200xf32> -> vector<8x200xf32>
    %40 = arith.addf %35, %39 : vector<8x200xf32>
    %41 = arith.extf %38 : vector<8x996xbf16> to vector<8x996xf32>
    %42 = arith.subf %37, %41 : vector<8x996xf32>
    %43 = arith.truncf %42 : vector<8x996xf32> to vector<8x996xbf16>
    %cst_22 = arith.constant dense<0.000000e+00> : vector<8x200xf32>
    %44 = tpu.matmul %43, %2, %cst_22 {dimension_numbers = #tpu.dot_dimension_numbers<[1], [0], [0], [1], [0, 0, 1, 1], [], []>} : vector<8x996xbf16>, vector<996x200xbf16>, vector<8x200xf32> -> vector<8x200xf32>
    %45 = arith.addf %40, %44 : vector<8x200xf32>
    %c0_23 = arith.constant 0 : index
    %c1200 = arith.constant 1200 : index
    %46 = vector.load %arg4[%c0_23, %c1200] : memref<8x2000xf32, #tpu.memory_space<vmem>>, vector<8x200xf32>
    tpu.vector_store %arg4[%c0_23, %c1200], %45 {strides = array<i32>} : memref<8x2000xf32, #tpu.memory_space<vmem>>, vector<8x200xf32>,
    %c0_24 = arith.constant 0 : index
    %c2000 = arith.constant 2000 : index
    %47 = vector.load %arg3[%c0_24, %c2000] : memref<8x5000xf32, #tpu.memory_space<vmem>>, vector<8x996xf32>
    %c0_25 = arith.constant 0 : index
    %c2001 = arith.constant 2001 : index
    %48 = vector.load %arg3[%c0_25, %c2001] : memref<8x5000xf32, #tpu.memory_space<vmem>>, vector<8x996xf32>
    %49 = arith.maximumf %47, %48 : vector<8x996xf32>
    %c0_26 = arith.constant 0 : index
    %c2002 = arith.constant 2002 : index
    %50 = vector.load %arg3[%c0_26, %c2002] : memref<8x5000xf32, #tpu.memory_space<vmem>>, vector<8x996xf32>
    %51 = arith.maximumf %49, %50 : vector<8x996xf32>
    %c0_27 = arith.constant 0 : index
    %c2003 = arith.constant 2003 : index
    %52 = vector.load %arg3[%c0_27, %c2003] : memref<8x5000xf32, #tpu.memory_space<vmem>>, vector<8x996xf32>
    %53 = arith.maximumf %51, %52 : vector<8x996xf32>
    %c0_28 = arith.constant 0 : index
    %c2004 = arith.constant 2004 : index
    %54 = vector.load %arg3[%c0_28, %c2004] : memref<8x5000xf32, #tpu.memory_space<vmem>>, vector<8x996xf32>
    %55 = arith.maximumf %53, %54 : vector<8x996xf32>
    %56 = arith.truncf %55 : vector<8x996xf32> to vector<8x996xbf16>
    %cst_29 = arith.constant dense<0.000000e+00> : vector<8x200xf32>
    %57 = tpu.matmul %56, %2, %cst_29 {dimension_numbers = #tpu.dot_dimension_numbers<[1], [0], [0], [1], [0, 0, 1, 1], [], []>} : vector<8x996xbf16>, vector<996x200xbf16>, vector<8x200xf32> -> vector<8x200xf32>
    %58 = arith.extf %56 : vector<8x996xbf16> to vector<8x996xf32>
    %59 = arith.subf %55, %58 : vector<8x996xf32>
    %60 = arith.truncf %59 : vector<8x996xf32> to vector<8x996xbf16>
    %cst_30 = arith.constant dense<0.000000e+00> : vector<8x200xf32>
    %61 = tpu.matmul %60, %2, %cst_30 {dimension_numbers = #tpu.dot_dimension_numbers<[1], [0], [0], [1], [0, 0, 1, 1], [], []>} : vector<8x996xbf16>, vector<996x200xbf16>, vector<8x200xf32> -> vector<8x200xf32>
    %62 = arith.addf %57, %61 : vector<8x200xf32>
    %63 = arith.extf %60 : vector<8x996xbf16> to vector<8x996xf32>
    %64 = arith.subf %59, %63 : vector<8x996xf32>
    %65 = arith.truncf %64 : vector<8x996xf32> to vector<8x996xbf16>
    %cst_31 = arith.constant dense<0.000000e+00> : vector<8x200xf32>
    %66 = tpu.matmul %65, %2, %cst_31 {dimension_numbers = #tpu.dot_dimension_numbers<[1], [0], [0], [1], [0, 0, 1, 1], [], []>} : vector<8x996xbf16>, vector<996x200xbf16>, vector<8x200xf32> -> vector<8x200xf32>
    %67 = arith.addf %62, %66 : vector<8x200xf32>
    %c0_32 = arith.constant 0 : index
    %c1400 = arith.constant 1400 : index
    %68 = vector.load %arg4[%c0_32, %c1400] : memref<8x2000xf32, #tpu.memory_space<vmem>>, vector<8x200xf32>
    tpu.vector_store %arg4[%c0_32, %c1400], %67 {strides = array<i32>} : memref<8x2000xf32, #tpu.memory_space<vmem>>, vector<8x200xf32>,
    %c0_33 = arith.constant 0 : index
    %c3000 = arith.constant 3000 : index
    %69 = vector.load %arg3[%c0_33, %c3000] : memref<8x5000xf32, #tpu.memory_space<vmem>>, vector<8x996xf32>
    %c0_34 = arith.constant 0 : index
    %c3001 = arith.constant 3001 : index
    %70 = vector.load %arg3[%c0_34, %c3001] : memref<8x5000xf32, #tpu.memory_space<vmem>>, vector<8x996xf32>
    %71 = arith.maximumf %69, %70 : vector<8x996xf32>
    %c0_35 = arith.constant 0 : index
    %c3002 = arith.constant 3002 : index
    %72 = vector.load %arg3[%c0_35, %c3002] : memref<8x5000xf32, #tpu.memory_space<vmem>>, vector<8x996xf32>
    %73 = arith.maximumf %71, %72 : vector<8x996xf32>
    %c0_36 = arith.constant 0 : index
    %c3003 = arith.constant 3003 : index
    %74 = vector.load %arg3[%c0_36, %c3003] : memref<8x5000xf32, #tpu.memory_space<vmem>>, vector<8x996xf32>
    %75 = arith.maximumf %73, %74 : vector<8x996xf32>
    %c0_37 = arith.constant 0 : index
    %c3004 = arith.constant 3004 : index
    %76 = vector.load %arg3[%c0_37, %c3004] : memref<8x5000xf32, #tpu.memory_space<vmem>>, vector<8x996xf32>
    %77 = arith.maximumf %75, %76 : vector<8x996xf32>
    %78 = arith.truncf %77 : vector<8x996xf32> to vector<8x996xbf16>
    %cst_38 = arith.constant dense<0.000000e+00> : vector<8x200xf32>
    %79 = tpu.matmul %78, %2, %cst_38 {dimension_numbers = #tpu.dot_dimension_numbers<[1], [0], [0], [1], [0, 0, 1, 1], [], []>} : vector<8x996xbf16>, vector<996x200xbf16>, vector<8x200xf32> -> vector<8x200xf32>
    %80 = arith.extf %78 : vector<8x996xbf16> to vector<8x996xf32>
    %81 = arith.subf %77, %80 : vector<8x996xf32>
    %82 = arith.truncf %81 : vector<8x996xf32> to vector<8x996xbf16>
    %cst_39 = arith.constant dense<0.000000e+00> : vector<8x200xf32>
    %83 = tpu.matmul %82, %2, %cst_39 {dimension_numbers = #tpu.dot_dimension_numbers<[1], [0], [0], [1], [0, 0, 1, 1], [], []>} : vector<8x996xbf16>, vector<996x200xbf16>, vector<8x200xf32> -> vector<8x200xf32>
    %84 = arith.addf %79, %83 : vector<8x200xf32>
    %85 = arith.extf %82 : vector<8x996xbf16> to vector<8x996xf32>
    %86 = arith.subf %81, %85 : vector<8x996xf32>
    %87 = arith.truncf %86 : vector<8x996xf32> to vector<8x996xbf16>
    %cst_40 = arith.constant dense<0.000000e+00> : vector<8x200xf32>
    %88 = tpu.matmul %87, %2, %cst_40 {dimension_numbers = #tpu.dot_dimension_numbers<[1], [0], [0], [1], [0, 0, 1, 1], [], []>} : vector<8x996xbf16>, vector<996x200xbf16>, vector<8x200xf32> -> vector<8x200xf32>
    %89 = arith.addf %84, %88 : vector<8x200xf32>
    %c0_41 = arith.constant 0 : index
    %c1600 = arith.constant 1600 : index
    %90 = vector.load %arg4[%c0_41, %c1600] : memref<8x2000xf32, #tpu.memory_space<vmem>>, vector<8x200xf32>
    tpu.vector_store %arg4[%c0_41, %c1600], %89 {strides = array<i32>} : memref<8x2000xf32, #tpu.memory_space<vmem>>, vector<8x200xf32>,
    %c0_42 = arith.constant 0 : index
    %c4000 = arith.constant 4000 : index
    %91 = vector.load %arg3[%c0_42, %c4000] : memref<8x5000xf32, #tpu.memory_space<vmem>>, vector<8x996xf32>
    %c0_43 = arith.constant 0 : index
    %c4001 = arith.constant 4001 : index
    %92 = vector.load %arg3[%c0_43, %c4001] : memref<8x5000xf32, #tpu.memory_space<vmem>>, vector<8x996xf32>
    %93 = arith.maximumf %91, %92 : vector<8x996xf32>
    %c0_44 = arith.constant 0 : index
    %c4002 = arith.constant 4002 : index
    %94 = vector.load %arg3[%c0_44, %c4002] : memref<8x5000xf32, #tpu.memory_space<vmem>>, vector<8x996xf32>
    %95 = arith.maximumf %93, %94 : vector<8x996xf32>
    %c0_45 = arith.constant 0 : index
    %c4003 = arith.constant 4003 : index
    %96 = vector.load %arg3[%c0_45, %c4003] : memref<8x5000xf32, #tpu.memory_space<vmem>>, vector<8x996xf32>
    %97 = arith.maximumf %95, %96 : vector<8x996xf32>
    %c0_46 = arith.constant 0 : index
    %c4004 = arith.constant 4004 : index
    %98 = vector.load %arg3[%c0_46, %c4004] : memref<8x5000xf32, #tpu.memory_space<vmem>>, vector<8x996xf32>
    %99 = arith.maximumf %97, %98 : vector<8x996xf32>
    %100 = arith.truncf %99 : vector<8x996xf32> to vector<8x996xbf16>
    %cst_47 = arith.constant dense<0.000000e+00> : vector<8x200xf32>
    %101 = tpu.matmul %100, %2, %cst_47 {dimension_numbers = #tpu.dot_dimension_numbers<[1], [0], [0], [1], [0, 0, 1, 1], [], []>} : vector<8x996xbf16>, vector<996x200xbf16>, vector<8x200xf32> -> vector<8x200xf32>
    %102 = arith.extf %100 : vector<8x996xbf16> to vector<8x996xf32>
    %103 = arith.subf %99, %102 : vector<8x996xf32>
    %104 = arith.truncf %103 : vector<8x996xf32> to vector<8x996xbf16>
    %cst_48 = arith.constant dense<0.000000e+00> : vector<8x200xf32>
    %105 = tpu.matmul %104, %2, %cst_48 {dimension_numbers = #tpu.dot_dimension_numbers<[1], [0], [0], [1], [0, 0, 1, 1], [], []>} : vector<8x996xbf16>, vector<996x200xbf16>, vector<8x200xf32> -> vector<8x200xf32>
    %106 = arith.addf %101, %105 : vector<8x200xf32>
    %107 = arith.extf %104 : vector<8x996xbf16> to vector<8x996xf32>
    %108 = arith.subf %103, %107 : vector<8x996xf32>
    %109 = arith.truncf %108 : vector<8x996xf32> to vector<8x996xbf16>
    %cst_49 = arith.constant dense<0.000000e+00> : vector<8x200xf32>
    %110 = tpu.matmul %109, %2, %cst_49 {dimension_numbers = #tpu.dot_dimension_numbers<[1], [0], [0], [1], [0, 0, 1, 1], [], []>} : vector<8x996xbf16>, vector<996x200xbf16>, vector<8x200xf32> -> vector<8x200xf32>
    %111 = arith.addf %106, %110 : vector<8x200xf32>
    %c0_50 = arith.constant 0 : index
    %c1800 = arith.constant 1800 : index
    %112 = vector.load %arg4[%c0_50, %c1800] : memref<8x2000xf32, #tpu.memory_space<vmem>>, vector<8x200xf32>
    tpu.vector_store %arg4[%c0_50, %c1800], %111 {strides = array<i32>} : memref<8x2000xf32, #tpu.memory_space<vmem>>, vector<8x200xf32>,
    return
  }
  func.func @transform_0(%arg0: i32) -> (i32, i32) {
    %c0_i32 = arith.constant 0 : i32
    %c0_i32_0 = arith.constant 0 : i32
    %c0_i32_1 = arith.constant 0 : i32
    return %c0_i32, %c0_i32_0 : i32, i32
  }
  func.func @transform_1(%arg0: i32) -> (i32, i32) {
    %c0_i32 = arith.constant 0 : i32
    %c0_i32_0 = arith.constant 0 : i32
    return %arg0, %c0_i32 : i32, i32
  }
  func.func @transform_2(%arg0: i32) -> (i32, i32) {
    %c1_i32 = arith.constant 1 : i32
    %0 = arith.addi %c1_i32, %arg0 : i32
    %c0_i32 = arith.constant 0 : i32
    %c0_i32_0 = arith.constant 0 : i32
    return %0, %c0_i32 : i32, i32
  }
  func.func @transform_3(%arg0: i32) -> (i32, i32) {
    %c0_i32 = arith.constant 0 : i32
    %c0_i32_0 = arith.constant 0 : i32
    return %arg0, %c0_i32 : i32, i32
  }
}

</mosaic_0001>

<llo_original>
// kernel: parallel_module_forward.1
$region0: #{parallel_module_forward.1}
  #allocation0 [shape = 'u32[]', space=smem, size = 0x4, offset = 0x4, fixed_abs, tag = 'smem constant byte address 0x4 - core index']
  #allocation1 [shape = 'u32[144,128]{1,0:T(1,128)}', space=vmem, size = 0x12000, scoped, tag = 'internal scratch']
  %s0 = inlined_call_operand.vmem [shape: bf16[996,200], index: 0, kind: input, shape index: {}]
  %s1 = inlined_call_operand.vmem [shape: f32[240,1000], index: 1, kind: input, shape index: {}]
  %s2 = inlined_call_operand.vmem [shape: f32[48,5000], index: 2, kind: input, shape index: {}]
  %s3 = inlined_call_operand.hbm [shape: f32[40,2000], index: 3, kind: output, shape index: {}]
  %s4 = sld [smem:[#allocation0]]
  $region45: #{parallel_module_forward.1} parent=0
    _
  %s6 = ssub.s32 1, %s4
  %s7 = scalar_select 0, %s6, %s4
  $region1: #{parallel_module_forward.1} parent=0
    #allocation2 [shape = 'u8[131072]{0}', space=vmem, size = 0x20000, scoped, tag = 'output window, operand 0']
    #allocation3 [shape = 's32[2]{0}', space=sflag, size = 0x8, scoped, tag = 'scoped memory for parallel_module_forward.1']
    %8 = vsyncpa [#allocation3], 0
    %s9 = scalar_lea.sflag [#allocation3], 1
    %10 = vsyncpa %s9, 0
    loop: start=0, step=1, limit=7
    $region2: #{parallel_module_forward.1} parent=1 // loop_pre_header
      _
    $region3: #{parallel_module_forward.1} parent=1 // loop_header
      %s12 = sphi 0, %s16
      %p13 = scmp.ge.s32.totalorder %s12, 7
      %s20 = sphi 0, %s20
      %s22 = sphi 0, %s20
      %s23 = sphi 0, %s22
      %s37 = sphi 0, %s23
      %s43 = sphi 0, %s45
      %s46 = sphi 0, %s43
      %s47 = sphi 0, %s46
      %s63 = sphi 0, %s47
      %s71 = sphi 0, %s73
      %s74 = sphi 0, %s71
      %s75 = sphi 0, %s74
      %s91 = sphi 0, %s75
      %s97 = sphi 0, %s99
      %s100 = sphi 0, %s97
      %s101 = sphi 0, %s100
      %s117 = sphi 0, %s101
    $region4: #{parallel_module_forward.1} parent=1 // loop_header_branch
      %15 = sbr.rel (%p13) target = $region8
    $region5: #{parallel_module_forward.1} parent=1 // loop_body
      %s17 = ssub.s32 %s12, 1
      %s18 = ssub.s32 %s12, 2
      %s19 = sadd.s32 %s12, 1
      %s21 = sadd.s32 %s20, 1
      %p24 = scmp.eq.s32.totalorder %s12, 4
      %p25 = scmp.ne.s32.totalorder %s20, %s22
      %p26 = scmp.eq.s32.totalorder %s12, 0
      %p27 = por %p25, %p26
      %p28 = scmp.ne.s32.totalorder %s20, %s22
      %p29 = scmp.eq.s32.totalorder %s17, 4
      %p30 = por %p28, %p29
      %p31 = scmp.ne.s32.totalorder %s22, %s23
      %p32 = scmp.eq.s32.totalorder %s17, 0
      %p33 = por %p31, %p32
      %p34 = scmp.ne.s32.totalorder %s22, %s23
      %p35 = scmp.eq.s32.totalorder %s18, 4
      %p36 = por %p34, %p35
      %p38 = scmp.ne.s32.totalorder %s23, %s37
      %p39 = scmp.eq.s32.totalorder %s18, 0
      %p40 = por %p38, %p39
      %s41 = ssub.s32 %s12, %s19
      %p42 = scmp.eq.s32.totalorder %s41, 0
      %s44 = sadd.s32 %s43, 1
      %s45 = scalar_select %p42, %s43, %s44
      %p48 = pneg %p42
      %p49 = scmp.eq.s32.totalorder %s12, 4
      %p50 = por %p48, %p49
      %p51 = scmp.ne.s32.totalorder %s43, %s46
      %p52 = scmp.eq.s32.totalorder %s12, 0
      %p53 = por %p51, %p52
      %p54 = scmp.ne.s32.totalorder %s43, %s46
      %p55 = scmp.eq.s32.totalorder %s17, 4
      %p56 = por %p54, %p55
      %p57 = scmp.ne.s32.totalorder %s46, %s47
      %p58 = scmp.eq.s32.totalorder %s17, 0
      %p59 = por %p57, %p58
      %p60 = scmp.ne.s32.totalorder %s46, %s47
      %p61 = scmp.eq.s32.totalorder %s18, 4
      %p62 = por %p60, %p61
      %p64 = scmp.ne.s32.totalorder %s47, %s63
      %p65 = scmp.eq.s32.totalorder %s18, 0
      %p66 = por %p64, %p65
      %s67 = sadd.s32 %s12, 1
      %s68 = sadd.s32 %s19, 1
      %s69 = ssub.s32 %s67, %s68
      %p70 = scmp.eq.s32.totalorder %s69, 0
      %s72 = sadd.s32 %s71, 1
      %s73 = scalar_select %p70, %s71, %s72
      %p76 = pneg %p70
      %p77 = scmp.eq.s32.totalorder %s12, 4
      %p78 = por %p76, %p77
      %p79 = scmp.ne.s32.totalorder %s71, %s74
      %p80 = scmp.eq.s32.totalorder %s12, 0
      %p81 = por %p79, %p80
      %p82 = scmp.ne.s32.totalorder %s71, %s74
      %p83 = scmp.eq.s32.totalorder %s17, 4
      %p84 = por %p82, %p83
      %p85 = scmp.ne.s32.totalorder %s74, %s75
      %p86 = scmp.eq.s32.totalorder %s17, 0
      %p87 = por %p85, %p86
      %p88 = scmp.ne.s32.totalorder %s74, %s75
      %p89 = scmp.eq.s32.totalorder %s18, 4
      %p90 = por %p88, %p89
      %p92 = scmp.ne.s32.totalorder %s75, %s91
      %p93 = scmp.eq.s32.totalorder %s18, 0
      %p94 = por %p92, %p93
      %s95 = ssub.s32 %s12, %s19
      %p96 = scmp.eq.s32.totalorder %s95, 0
      %s98 = sadd.s32 %s97, 1
      %s99 = scalar_select %p96, %s97, %s98
      %p102 = pneg %p96
      %p103 = scmp.eq.s32.totalorder %s12, 4
      %p104 = por %p102, %p103
      %p105 = scmp.ne.s32.totalorder %s97, %s100
      %p106 = scmp.eq.s32.totalorder %s12, 0
      %p107 = por %p105, %p106
      %p108 = scmp.ne.s32.totalorder %s97, %s100
      %p109 = scmp.eq.s32.totalorder %s17, 4
      %p110 = por %p108, %p109
      %p111 = scmp.ne.s32.totalorder %s100, %s101
      %p112 = scmp.eq.s32.totalorder %s17, 0
      %p113 = por %p111, %p112
      %p114 = scmp.ne.s32.totalorder %s100, %s101
      %p115 = scmp.eq.s32.totalorder %s18, 4
      %p116 = por %p114, %p115
      %p118 = scmp.ne.s32.totalorder %s101, %s117
      %p119 = scmp.eq.s32.totalorder %s18, 0
      %p120 = por %p118, %p119
      %p121 = scmp.le.s32.totalorder 1, %s12
      %p122 = scmp.lt.s32.totalorder %s12, 6
      %p123 = pnand %p121, %p122
      %p124 = pneg %p123
      // Predicated region
      $region9: #{parallel_module_forward.1} parent=5 // pred_check
        _
      $region10: #{parallel_module_forward.1} parent=5 // pred_check_branch
        %126 = sbr.rel (%p123) target = $region12
      $region11: #{parallel_module_forward.1} parent=5 // pred_region
        %s127 = ssub.s32 %s12, 1
        // Predicated region
        $region13: #{parallel_module_forward.1} parent=11 // pred_check
          %p128 = pneg %p33
        $region14: #{parallel_module_forward.1} parent=11 // pred_check_branch
          %130 = sbr.rel (%p128) target = $region16
        $region15: #{parallel_module_forward.1} parent=11 // pred_region
          _
        $region16: #{parallel_module_forward.1} parent=11 // pred_fallthru
          _
      $region12: #{parallel_module_forward.1} parent=5 // pred_fallthru
        _
      %p131 = scmp.lt.s32.totalorder %s12, 5
      // Predicated region
      $region17: #{parallel_module_forward.1} parent=5 // pred_check
        %p132 = pneg %p131
      $region18: #{parallel_module_forward.1} parent=5 // pred_check_branch
        %134 = sbr.rel (%p132) target = $region20
      $region19: #{parallel_module_forward.1} parent=5 // pred_region
        // Predicated region
        $region21: #{parallel_module_forward.1} parent=19 // pred_check
          %p135 = pneg %p53
        $region22: #{parallel_module_forward.1} parent=19 // pred_check_branch
          %137 = sbr.rel (%p135) target = $region24
        $region23: #{parallel_module_forward.1} parent=19 // pred_region
          %p138 = scmp.lt.s32.totalorder %s12, 29
          %s139 = scalar_select %p138, %s12, 29
          %s140 = smul.addr %s139, 8
          %s141 = smul.addr %s140, 8
          %s142 = scalar_lea.vmem %s1, %s141
        $region24: #{parallel_module_forward.1} parent=19 // pred_fallthru
          _
        // Predicated region
        $region25: #{parallel_module_forward.1} parent=19 // pred_check
          %p143 = pneg %p81
        $region26: #{parallel_module_forward.1} parent=19 // pred_check_branch
          %145 = sbr.rel (%p143) target = $region28
        $region27: #{parallel_module_forward.1} parent=19 // pred_region
          %s146 = sadd.s32 %s12, 1
          %p147 = scmp.lt.s32.totalorder %s146, 5
          %s148 = scalar_select %p147, %s146, 5
          %s149 = smul.addr %s148, 40
          %s150 = smul.addr %s149, 8
          %s151 = scalar_lea.vmem %s2, %s150
          %s152 = sadd.s32 %s12, 1
        $region28: #{parallel_module_forward.1} parent=19 // pred_fallthru
          _
      $region20: #{parallel_module_forward.1} parent=5 // pred_fallthru
        _
      %p153 = scmp.le.s32.totalorder 1, %s12
      %p154 = scmp.lt.s32.totalorder %s12, 6
      %p155 = pnand %p153, %p154
      %p156 = pneg %p155
      // Predicated region
      $region29: #{parallel_module_forward.1} parent=5 // pred_check
        _
      $region30: #{parallel_module_forward.1} parent=5 // pred_check_branch
        %158 = sbr.rel (%p155) target = $region32
      $region31: #{parallel_module_forward.1} parent=5 // pred_region
        %s159 = ssub.s32 %s12, 1
        %p160 = pneg %p33
        %p161 = pneg %p30
        %p162 = scmp.lt.s32.totalorder %s17, 29
        %s163 = scalar_select %p162, %s17, 29
        %s164 = smul.addr %s163, 8
        %s165 = smul.addr %s164, 8
        %s166 = scalar_lea.vmem %s1, %s165
        %p167 = pneg %p59
        %p168 = pneg %p56
        %s169 = sadd.s32 %s17, 1
        %p170 = scmp.lt.s32.totalorder %s169, 5
        %s171 = scalar_select %p170, %s169, 5
        %s172 = smul.addr %s171, 40
        %s173 = smul.addr %s172, 8
        %s174 = scalar_lea.vmem %s2, %s173
        %p175 = pneg %p87
        %p176 = pneg %p84
        %p177 = pneg %p113
        %p178 = pneg %p110
        %s179 = sand.u32 %s100, 1
        %s180 = scalar_lea.sflag [#allocation3], %s179
        %s181 = sand.u32 %s100, 1
        %s182 = smul.addr %s181, 128
        %s183 = scalar_lea.vmem [#allocation2], %s182
        %p184 = scmp.lt.s32.totalorder %s17, 29
        %s185 = scalar_select %p184, %s17, 29
        %s186 = smul.addr %s185, 8
        %s187 = smul.addr %s186, 8
        %s188 = scalar_lea.vmem %s1, %s187
        %s189 = sadd.s32 %s17, 1
        %p190 = scmp.lt.s32.totalorder %s189, 5
        %s191 = scalar_select %p190, %s189, 5
        %s192 = smul.addr %s191, 40
        %s193 = smul.addr %s192, 8
        %s194 = scalar_lea.vmem %s2, %s193
        %s195 = sadd.s32 %s17, 1
        %v197 = vld [vmem:[%s188] sm:$0xff]
        %v198 = vld [vmem:[%s188 + $0x8] sm:$0xff]
        %v199 = vld [vmem:[%s188 + $0x10] sm:$0xff]
        %v200 = vld [vmem:[%s188 + $0x18] sm:$0xff]
        %v201 = vld [vmem:[%s188 + $0x20] sm:$0xff]
        %v202 = vld [vmem:[%s188 + $0x28] sm:$0xff]
        %v203 = vld [vmem:[%s188 + $0x30] sm:$0xff]
        %v204 = vld [vmem:[%s188 + $0x38] sm:$0xff]
        %205 = vst [vmem:[%s183] sm:$0xff] %v197
        %206 = vst [vmem:[%s183 + $0x8] sm:$0xff] %v198
        %207 = vst [vmem:[%s183 + $0x10] sm:$0xff] %v199
        %208 = vst [vmem:[%s183 + $0x18] sm:$0xff] %v200
        %209 = vst [vmem:[%s183 + $0x20] sm:$0xff] %v201
        %210 = vst [vmem:[%s183 + $0x28] sm:$0xff] %v202
        %211 = vst [vmem:[%s183 + $0x30] sm:$0xff] %v203
        %vm212 = vcmask 850944
        %213 = vst.msk [vmem:[%s183 + $0x38] sm:$0xff] %vm212, %v204
        %v214 = vld [vmem:[%s0] sm:$0xff]
        %v215 = vld [vmem:[%s0 + $0x8] sm:$0xff]
        %v216 = vld [vmem:[%s0 + $0x10] sm:$0xff]
        %v217 = vld [vmem:[%s0 + $0x18] sm:$0xff]
        %v218 = vld [vmem:[%s0 + $0x20] sm:$0xff]
        %v219 = vld [vmem:[%s0 + $0x28] sm:$0xff]
        %v220 = vld [vmem:[%s0 + $0x30] sm:$0xff]
        %v221 = vld [vmem:[%s0 + $0x38] sm:$0xff]
        %v222 = vld [vmem:[%s0 + $0x40] sm:$0xff]
        %v223 = vld [vmem:[%s0 + $0x48] sm:$0xff]
        %v224 = vld [vmem:[%s0 + $0x50] sm:$0xff]
        %v225 = vld [vmem:[%s0 + $0x58] sm:$0xff]
        %v226 = vld [vmem:[%s0 + $0x60] sm:$0xff]
        %v227 = vld [vmem:[%s0 + $0x68] sm:$0xff]
        %v228 = vld [vmem:[%s0 + $0x70] sm:$0xff]
        %v229 = vld [vmem:[%s0 + $0x78] sm:$0xff]
        %v230 = vld [vmem:[%s0 + $0x80] sm:$0xff]
        %v231 = vld [vmem:[%s0 + $0x88] sm:$0xff]
        %v232 = vld [vmem:[%s0 + $0x90] sm:$0xff]
        %v233 = vld [vmem:[%s0 + $0x98] sm:$0xff]
        %v234 = vld [vmem:[%s0 + $0xa0] sm:$0xff]
        %v235 = vld [vmem:[%s0 + $0xa8] sm:$0xff]
        %v236 = vld [vmem:[%s0 + $0xb0] sm:$0xff]
        %v237 = vld [vmem:[%s0 + $0xb8] sm:$0xff]
        %v238 = vld [vmem:[%s0 + $0xc0] sm:$0xff]
        %v239 = vld [vmem:[%s0 + $0xc8] sm:$0xff]
        %v240 = vld [vmem:[%s0 + $0xd0] sm:$0xff]
        %v241 = vld [vmem:[%s0 + $0xd8] sm:$0xff]
        %v242 = vld [vmem:[%s0 + $0xe0] sm:$0xff]
        %v243 = vld [vmem:[%s0 + $0xe8] sm:$0xff]
        %v244 = vld [vmem:[%s0 + $0xf0] sm:$0xff]
        %v245 = vld [vmem:[%s0 + $0xf8] sm:$0xff]
        %v246 = vld [vmem:[%s0 + $0x100] sm:$0xff]
        %v247 = vld [vmem:[%s0 + $0x108] sm:$0xff]
        %v248 = vld [vmem:[%s0 + $0x110] sm:$0xff]
        %v249 = vld [vmem:[%s0 + $0x118] sm:$0xff]
        %v250 = vld [vmem:[%s0 + $0x120] sm:$0xff]
        %v251 = vld [vmem:[%s0 + $0x128] sm:$0xff]
        %v252 = vld [vmem:[%s0 + $0x130] sm:$0xff]
        %v253 = vld [vmem:[%s0 + $0x138] sm:$0xff]
        %v254 = vld [vmem:[%s0 + $0x140] sm:$0xff]
        %v255 = vld [vmem:[%s0 + $0x148] sm:$0xff]
        %v256 = vld [vmem:[%s0 + $0x150] sm:$0xff]
        %v257 = vld [vmem:[%s0 + $0x158] sm:$0xff]
        %v258 = vld [vmem:[%s0 + $0x160] sm:$0xff]
        %v259 = vld [vmem:[%s0 + $0x168] sm:$0xff]
        %v260 = vld [vmem:[%s0 + $0x170] sm:$0xff]
        %v261 = vld [vmem:[%s0 + $0x178] sm:$0xff]
        %v262 = vld [vmem:[%s0 + $0x180] sm:$0xff]
        %v263 = vld [vmem:[%s0 + $0x188] sm:$0xff]
        %v264 = vld [vmem:[%s0 + $0x190] sm:$0xff]
        %v265 = vld [vmem:[%s0 + $0x198] sm:$0xff]
        %v266 = vld [vmem:[%s0 + $0x1a0] sm:$0xff]
        %v267 = vld [vmem:[%s0 + $0x1a8] sm:$0xff]
        %v268 = vld [vmem:[%s0 + $0x1b0] sm:$0xff]
        %v269 = vld [vmem:[%s0 + $0x1b8] sm:$0xff]
        %v270 = vld [vmem:[%s0 + $0x1c0] sm:$0xff]
        %v271 = vld [vmem:[%s0 + $0x1c8] sm:$0xff]
        %v272 = vld [vmem:[%s0 + $0x1d0] sm:$0xff]
        %v273 = vld [vmem:[%s0 + $0x1d8] sm:$0xff]
        %v274 = vld [vmem:[%s0 + $0x1e0] sm:$0xff]
        %v275 = vld [vmem:[%s0 + $0x1e8] sm:$0xff]
        %v276 = vld [vmem:[%s0 + $0x1f0] sm:$0xff]
        %v277 = vld [vmem:[%s0 + $0x1f8] sm:$0xff]
        %v278 = vld [vmem:[%s0 + $0x200] sm:$0xff]
        %v279 = vld [vmem:[%s0 + $0x208] sm:$0xff]
        %v280 = vld [vmem:[%s0 + $0x210] sm:$0xff]
        %v281 = vld [vmem:[%s0 + $0x218] sm:$0xff]
        %v282 = vld [vmem:[%s0 + $0x220] sm:$0xff]
        %v283 = vld [vmem:[%s0 + $0x228] sm:$0xff]
        %v284 = vld [vmem:[%s0 + $0x230] sm:$0xff]
        %v285 = vld [vmem:[%s0 + $0x238] sm:$0xff]
        %v286 = vld [vmem:[%s0 + $0x240] sm:$0xff]
        %v287 = vld [vmem:[%s0 + $0x248] sm:$0xff]
        %v288 = vld [vmem:[%s0 + $0x250] sm:$0xff]
        %v289 = vld [vmem:[%s0 + $0x258] sm:$0xff]
        %v290 = vld [vmem:[%s0 + $0x260] sm:$0xff]
        %v291 = vld [vmem:[%s0 + $0x268] sm:$0xff]
        %v292 = vld [vmem:[%s0 + $0x270] sm:$0xff]
        %v293 = vld [vmem:[%s0 + $0x278] sm:$0xff]
        %v294 = vld [vmem:[%s0 + $0x280] sm:$0xff]
        %v295 = vld [vmem:[%s0 + $0x288] sm:$0xff]
        %v296 = vld [vmem:[%s0 + $0x290] sm:$0xff]
        %v297 = vld [vmem:[%s0 + $0x298] sm:$0xff]
        %v298 = vld [vmem:[%s0 + $0x2a0] sm:$0xff]
        %v299 = vld [vmem:[%s0 + $0x2a8] sm:$0xff]
        %v300 = vld [vmem:[%s0 + $0x2b0] sm:$0xff]
        %v301 = vld [vmem:[%s0 + $0x2b8] sm:$0xff]
        %v302 = vld [vmem:[%s0 + $0x2c0] sm:$0xff]
        %v303 = vld [vmem:[%s0 + $0x2c8] sm:$0xff]
        %v304 = vld [vmem:[%s0 + $0x2d0] sm:$0xff]
        %v305 = vld [vmem:[%s0 + $0x2d8] sm:$0xff]
        %v306 = vld [vmem:[%s0 + $0x2e0] sm:$0xff]
        %v307 = vld [vmem:[%s0 + $0x2e8] sm:$0xff]
        %v308 = vld [vmem:[%s0 + $0x2f0] sm:$0xff]
        %v309 = vld [vmem:[%s0 + $0x2f8] sm:$0xff]
        %v310 = vld [vmem:[%s0 + $0x300] sm:$0xff]
        %v311 = vld [vmem:[%s0 + $0x308] sm:$0xff]
        %v312 = vld [vmem:[%s0 + $0x310] sm:$0xff]
        %v313 = vld [vmem:[%s0 + $0x318] sm:$0xff]
        %v314 = vld [vmem:[%s0 + $0x320] sm:$0xff]
        %v315 = vld [vmem:[%s0 + $0x328] sm:$0xff]
        %v316 = vld [vmem:[%s0 + $0x330] sm:$0xff]
        %v317 = vld [vmem:[%s0 + $0x338] sm:$0xff]
        %v318 = vld [vmem:[%s0 + $0x340] sm:$0xff]
        %v319 = vld [vmem:[%s0 + $0x348] sm:$0xff]
        %v320 = vld [vmem:[%s0 + $0x350] sm:$0xff]
        %v321 = vld [vmem:[%s0 + $0x358] sm:$0xff]
        %v322 = vld [vmem:[%s0 + $0x360] sm:$0xff]
        %v323 = vld [vmem:[%s0 + $0x368] sm:$0xff]
        %v324 = vld [vmem:[%s0 + $0x370] sm:$0xff]
        %v325 = vld [vmem:[%s0 + $0x378] sm:$0xff]
        %v326 = vld [vmem:[%s0 + $0x380] sm:$0xff]
        %v327 = vld [vmem:[%s0 + $0x388] sm:$0xff]
        %v328 = vld [vmem:[%s0 + $0x390] sm:$0xff]
        %v329 = vld [vmem:[%s0 + $0x398] sm:$0xff]
        %v330 = vld [vmem:[%s0 + $0x3a0] sm:$0xff]
        %v331 = vld [vmem:[%s0 + $0x3a8] sm:$0xff]
        %v332 = vld [vmem:[%s0 + $0x3b0] sm:$0xff]
        %v333 = vld [vmem:[%s0 + $0x3b8] sm:$0xff]
        %v334 = vld [vmem:[%s0 + $0x3c0] sm:$0xff]
        %v335 = vld [vmem:[%s0 + $0x3c8] sm:$0xff]
        %v336 = vld [vmem:[%s0 + $0x3d0] sm:$0xff]
        %v337 = vld [vmem:[%s0 + $0x3d8] sm:$0xff]
        %v338 = vld [vmem:[%s0 + $0x3e0] sm:$0x33]
        %v339 = vld [vmem:[%s194] sm:$0xff]
        %v340 = vld [vmem:[%s194 + $0x8] sm:$0xff]
        %v341 = vld [vmem:[%s194 + $0x10] sm:$0xff]
        %v342 = vld [vmem:[%s194 + $0x18] sm:$0xff]
        %v343 = vld [vmem:[%s194 + $0x20] sm:$0xff]
        %v344 = vld [vmem:[%s194 + $0x28] sm:$0xff]
        %v345 = vld [vmem:[%s194 + $0x30] sm:$0xff]
        %v346 = vld [vmem:[%s194 + $0x38] sm:$0xff]
        %355 = vrot.lane.b32.xlu0 %v339, 127
        %v356 = vpop.permute.xlu0 %355
        %357 = vrot.lane.b32.xlu0 %v340, 127
        %v358 = vpop.permute.xlu0 %357
        %359 = vrot.lane.b32.xlu0 %v341, 127
        %v360 = vpop.permute.xlu0 %359
        %361 = vrot.lane.b32.xlu0 %v342, 127
        %v362 = vpop.permute.xlu0 %361
        %363 = vrot.lane.b32.xlu0 %v343, 127
        %v364 = vpop.permute.xlu0 %363
        %365 = vrot.lane.b32.xlu0 %v344, 127
        %v366 = vpop.permute.xlu0 %365
        %367 = vrot.lane.b32.xlu0 %v345, 127
        %v368 = vpop.permute.xlu0 %367
        %369 = vrot.lane.b32.xlu0 %v346, 127
        %v370 = vpop.permute.xlu0 %369
        %vm371 = vcmask 1039360
        %v372 = vsel %vm371, %v356, %v358
        %v373 = vsel %vm371, %v358, %v360
        %v374 = vsel %vm371, %v360, %v362
        %v375 = vsel %vm371, %v362, %v364
        %v376 = vsel %vm371, %v364, %v366
        %v377 = vsel %vm371, %v366, %v368
        %v378 = vsel %vm371, %v368, %v370
        %v387 = vmax.f32 %v339, %v372
        %v388 = vmax.f32 %v340, %v373
        %v389 = vmax.f32 %v341, %v374
        %v390 = vmax.f32 %v342, %v375
        %v391 = vmax.f32 %v343, %v376
        %v392 = vmax.f32 %v344, %v377
        %v393 = vmax.f32 %v345, %v378
        %v394 = vmax.f32 %v346, %v370
        %395 = vrot.lane.b32.xlu0 %v339, 126
        %v396 = vpop.permute.xlu0 %395
        %397 = vrot.lane.b32.xlu0 %v340, 126
        %v398 = vpop.permute.xlu0 %397
        %399 = vrot.lane.b32.xlu0 %v341, 126
        %v400 = vpop.permute.xlu0 %399
        %401 = vrot.lane.b32.xlu0 %v342, 126
        %v402 = vpop.permute.xlu0 %401
        %403 = vrot.lane.b32.xlu0 %v343, 126
        %v404 = vpop.permute.xlu0 %403
        %405 = vrot.lane.b32.xlu0 %v344, 126
        %v406 = vpop.permute.xlu0 %405
        %407 = vrot.lane.b32.xlu0 %v345, 126
        %v408 = vpop.permute.xlu0 %407
        %409 = vrot.lane.b32.xlu0 %v346, 126
        %v410 = vpop.permute.xlu0 %409
        %vm411 = vcmask 1031168
        %v412 = vsel %vm411, %v396, %v398
        %v413 = vsel %vm411, %v398, %v400
        %v414 = vsel %vm411, %v400, %v402
        %v415 = vsel %vm411, %v402, %v404
        %v416 = vsel %vm411, %v404, %v406
        %v417 = vsel %vm411, %v406, %v408
        %v418 = vsel %vm411, %v408, %v410
        %v427 = vmax.f32 %v387, %v412
        %v428 = vmax.f32 %v388, %v413
        %v429 = vmax.f32 %v389, %v414
        %v430 = vmax.f32 %v390, %v415
        %v431 = vmax.f32 %v391, %v416
        %v432 = vmax.f32 %v392, %v417
        %v433 = vmax.f32 %v393, %v418
        %v434 = vmax.f32 %v394, %v410
        %435 = vrot.lane.b32.xlu0 %v339, 125
        %v436 = vpop.permute.xlu0 %435
        %437 = vrot.lane.b32.xlu0 %v340, 125
        %v438 = vpop.permute.xlu0 %437
        %439 = vrot.lane.b32.xlu0 %v341, 125
        %v440 = vpop.permute.xlu0 %439
        %441 = vrot.lane.b32.xlu0 %v342, 125
        %v442 = vpop.permute.xlu0 %441
        %443 = vrot.lane.b32.xlu0 %v343, 125
        %v444 = vpop.permute.xlu0 %443
        %445 = vrot.lane.b32.xlu0 %v344, 125
        %v446 = vpop.permute.xlu0 %445
        %447 = vrot.lane.b32.xlu0 %v345, 125
        %v448 = vpop.permute.xlu0 %447
        %449 = vrot.lane.b32.xlu0 %v346, 125
        %v450 = vpop.permute.xlu0 %449
        %vm451 = vcmask 1022976
        %v452 = vsel %vm451, %v436, %v438
        %v453 = vsel %vm451, %v438, %v440
        %v454 = vsel %vm451, %v440, %v442
        %v455 = vsel %vm451, %v442, %v444
        %v456 = vsel %vm451, %v444, %v446
        %v457 = vsel %vm451, %v446, %v448
        %v458 = vsel %vm451, %v448, %v450
        %v467 = vmax.f32 %v427, %v452
        %v468 = vmax.f32 %v428, %v453
        %v469 = vmax.f32 %v429, %v454
        %v470 = vmax.f32 %v430, %v455
        %v471 = vmax.f32 %v431, %v456
        %v472 = vmax.f32 %v432, %v457
        %v473 = vmax.f32 %v433, %v458
        %v474 = vmax.f32 %v434, %v450
        %475 = vrot.lane.b32.xlu0 %v339, 124
        %v476 = vpop.permute.xlu0 %475
        %477 = vrot.lane.b32.xlu0 %v340, 124
        %v478 = vpop.permute.xlu0 %477
        %479 = vrot.lane.b32.xlu0 %v341, 124
        %v480 = vpop.permute.xlu0 %479
        %481 = vrot.lane.b32.xlu0 %v342, 124
        %v482 = vpop.permute.xlu0 %481
        %483 = vrot.lane.b32.xlu0 %v343, 124
        %v484 = vpop.permute.xlu0 %483
        %485 = vrot.lane.b32.xlu0 %v344, 124
        %v486 = vpop.permute.xlu0 %485
        %487 = vrot.lane.b32.xlu0 %v345, 124
        %v488 = vpop.permute.xlu0 %487
        %489 = vrot.lane.b32.xlu0 %v346, 124
        %v490 = vpop.permute.xlu0 %489
        %vm491 = vcmask 1014784
        %v492 = vsel %vm491, %v476, %v478
        %v493 = vsel %vm491, %v478, %v480
        %v494 = vsel %vm491, %v480, %v482
        %v495 = vsel %vm491, %v482, %v484
        %v496 = vsel %vm491, %v484, %v486
        %v497 = vsel %vm491, %v486, %v488
        %v498 = vsel %vm491, %v488, %v490
        %v507 = vmax.f32 %v467, %v492
        %v508 = vmax.f32 %v468, %v493
        %v509 = vmax.f32 %v469, %v494
        %v510 = vmax.f32 %v470, %v495
        %v511 = vmax.f32 %v471, %v496
        %v512 = vmax.f32 %v472, %v497
        %v513 = vmax.f32 %v473, %v498
        %v514 = vmax.f32 %v474, %v490
        %v515 = vpack.c.bf16 %v507, %v507
        %v516 = vpack.c.bf16 %v508, %v508
        %v517 = vpack.c.bf16 %v509, %v509
        %v518 = vpack.c.bf16 %v510, %v510
        %v519 = vpack.c.bf16 %v511, %v511
        %v520 = vpack.c.bf16 %v512, %v512
        %v521 = vpack.c.bf16 %v513, %v513
        %v522 = vpack.c.bf16 %v514, %v514
        %v523 = vunpack.c.l.bf16 %v515
        %v524 = vunpack.c.l.bf16 %v516
        %v525 = vunpack.c.l.bf16 %v517
        %v526 = vunpack.c.l.bf16 %v518
        %v527 = vunpack.c.l.bf16 %v519
        %v528 = vunpack.c.l.bf16 %v520
        %v529 = vunpack.c.l.bf16 %v521
        %v530 = vunpack.c.l.bf16 %v522
        %v531 = vsub.f32 %v507, %v523
        %v532 = vsub.f32 %v508, %v524
        %v533 = vsub.f32 %v509, %v525
        %v534 = vsub.f32 %v510, %v526
        %v535 = vsub.f32 %v511, %v527
        %v536 = vsub.f32 %v512, %v528
        %v537 = vsub.f32 %v513, %v529
        %v538 = vsub.f32 %v514, %v530
        %v539 = vpack.c.bf16 %v531, %v531
        %v540 = vpack.c.bf16 %v532, %v532
        %v541 = vpack.c.bf16 %v533, %v533
        %v542 = vpack.c.bf16 %v534, %v534
        %v543 = vpack.c.bf16 %v535, %v535
        %v544 = vpack.c.bf16 %v536, %v536
        %v545 = vpack.c.bf16 %v537, %v537
        %v546 = vpack.c.bf16 %v538, %v538
        %v672 = vunpack.c.l.b16 %v214
        %v673 = vunpack.c.h.b16 %v214
        %v674 = vunpack.c.l.b16 %v215
        %v675 = vunpack.c.h.b16 %v215
        %v676 = vunpack.c.l.b16 %v216
        %v677 = vunpack.c.h.b16 %v216
        %v678 = vunpack.c.l.b16 %v217
        %v679 = vunpack.c.h.b16 %v217
        %v680 = vunpack.c.l.b16 %v218
        %v681 = vunpack.c.h.b16 %v218
        %v682 = vunpack.c.l.b16 %v219
        %v683 = vunpack.c.h.b16 %v219
        %v684 = vunpack.c.l.b16 %v220
        %v685 = vunpack.c.h.b16 %v220
        %v686 = vunpack.c.l.b16 %v221
        %v687 = vunpack.c.h.b16 %v221
        %v688 = vunpack.c.l.b16 %v222
        %v689 = vunpack.c.h.b16 %v222
        %v690 = vunpack.c.l.b16 %v223
        %v691 = vunpack.c.h.b16 %v223
        %v692 = vunpack.c.l.b16 %v224
        %v693 = vunpack.c.h.b16 %v224
        %v694 = vunpack.c.l.b16 %v225
        %v695 = vunpack.c.h.b16 %v225
        %v696 = vunpack.c.l.b16 %v226
        %v697 = vunpack.c.h.b16 %v226
        %v698 = vunpack.c.l.b16 %v227
        %v699 = vunpack.c.h.b16 %v227
        %v700 = vunpack.c.l.b16 %v228
        %v701 = vunpack.c.h.b16 %v228
        %v702 = vunpack.c.l.b16 %v229
        %v703 = vunpack.c.h.b16 %v229
        %v704 = vunpack.c.l.b16 %v230
        %v705 = vunpack.c.h.b16 %v230
        %v706 = vunpack.c.l.b16 %v231
        %v707 = vunpack.c.h.b16 %v231
        %v708 = vunpack.c.l.b16 %v232
        %v709 = vunpack.c.h.b16 %v232
        %v710 = vunpack.c.l.b16 %v233
        %v711 = vunpack.c.h.b16 %v233
        %v712 = vunpack.c.l.b16 %v234
        %v713 = vunpack.c.h.b16 %v234
        %v714 = vunpack.c.l.b16 %v235
        %v715 = vunpack.c.h.b16 %v235
        %v716 = vunpack.c.l.b16 %v236
        %v717 = vunpack.c.h.b16 %v236
        %v718 = vunpack.c.l.b16 %v237
        %v719 = vunpack.c.h.b16 %v237
        %v720 = vunpack.c.l.b16 %v238
        %v721 = vunpack.c.h.b16 %v238
        %v722 = vunpack.c.l.b16 %v239
        %v723 = vunpack.c.h.b16 %v239
        %v724 = vunpack.c.l.b16 %v240
        %v725 = vunpack.c.h.b16 %v240
        %v726 = vunpack.c.l.b16 %v241
        %v727 = vunpack.c.h.b16 %v241
        %v728 = vunpack.c.l.b16 %v242
        %v729 = vunpack.c.h.b16 %v242
        %v730 = vunpack.c.l.b16 %v243
        %v731 = vunpack.c.h.b16 %v243
        %v732 = vunpack.c.l.b16 %v244
        %v733 = vunpack.c.h.b16 %v244
        %v734 = vunpack.c.l.b16 %v245
        %v735 = vunpack.c.h.b16 %v245
        %v736 = vunpack.c.l.b16 %v246
        %v737 = vunpack.c.h.b16 %v246
        %v738 = vunpack.c.l.b16 %v247
        %v739 = vunpack.c.h.b16 %v247
        %v740 = vunpack.c.l.b16 %v248
        %v741 = vunpack.c.h.b16 %v248
        %v742 = vunpack.c.l.b16 %v249
        %v743 = vunpack.c.h.b16 %v249
        %v744 = vunpack.c.l.b16 %v250
        %v745 = vunpack.c.h.b16 %v250
        %v746 = vunpack.c.l.b16 %v251
        %v747 = vunpack.c.h.b16 %v251
        %v748 = vunpack.c.l.b16 %v252
        %v749 = vunpack.c.h.b16 %v252
        %v750 = vunpack.c.l.b16 %v253
        %v751 = vunpack.c.h.b16 %v253
        %v752 = vunpack.c.l.b16 %v254
        %v753 = vunpack.c.h.b16 %v254
        %v754 = vunpack.c.l.b16 %v255
        %v755 = vunpack.c.h.b16 %v255
        %v756 = vunpack.c.l.b16 %v256
        %v757 = vunpack.c.h.b16 %v256
        %v758 = vunpack.c.l.b16 %v257
        %v759 = vunpack.c.h.b16 %v257
        %v760 = vunpack.c.l.b16 %v258
        %v761 = vunpack.c.h.b16 %v258
        %v762 = vunpack.c.l.b16 %v259
        %v763 = vunpack.c.h.b16 %v259
        %v764 = vunpack.c.l.b16 %v260
        %v765 = vunpack.c.h.b16 %v260
        %v766 = vunpack.c.l.b16 %v261
        %v767 = vunpack.c.h.b16 %v261
        %v768 = vunpack.c.l.b16 %v262
        %v769 = vunpack.c.h.b16 %v262
        %v770 = vunpack.c.l.b16 %v263
        %v771 = vunpack.c.h.b16 %v263
        %v772 = vunpack.c.l.b16 %v264
        %v773 = vunpack.c.h.b16 %v264
        %v774 = vunpack.c.l.b16 %v265
        %v775 = vunpack.c.h.b16 %v265
        %v776 = vunpack.c.l.b16 %v266
        %v777 = vunpack.c.h.b16 %v266
        %v778 = vunpack.c.l.b16 %v267
        %v779 = vunpack.c.h.b16 %v267
        %v780 = vunpack.c.l.b16 %v268
        %v781 = vunpack.c.h.b16 %v268
        %v782 = vunpack.c.l.b16 %v269
        %v783 = vunpack.c.h.b16 %v269
        %v784 = vunpack.c.l.b16 %v270
        %v785 = vunpack.c.h.b16 %v270
        %v786 = vunpack.c.l.b16 %v271
        %v787 = vunpack.c.h.b16 %v271
        %v788 = vunpack.c.l.b16 %v272
        %v789 = vunpack.c.h.b16 %v272
        %v790 = vunpack.c.l.b16 %v273
        %v791 = vunpack.c.h.b16 %v273
        %v792 = vunpack.c.l.b16 %v274
        %v793 = vunpack.c.h.b16 %v274
        %v794 = vunpack.c.l.b16 %v275
        %v795 = vunpack.c.h.b16 %v275
        %v796 = vunpack.c.l.b16 %v276
        %v797 = vunpack.c.h.b16 %v276
        %v798 = vunpack.c.l.b16 %v277
        %v799 = vunpack.c.h.b16 %v277
        %v800 = vunpack.c.l.b16 %v278
        %v801 = vunpack.c.h.b16 %v278
        %v802 = vunpack.c.l.b16 %v279
        %v803 = vunpack.c.h.b16 %v279
        %v804 = vunpack.c.l.b16 %v280
        %v805 = vunpack.c.h.b16 %v280
        %v806 = vunpack.c.l.b16 %v281
        %v807 = vunpack.c.h.b16 %v281
        %v808 = vunpack.c.l.b16 %v282
        %v809 = vunpack.c.h.b16 %v282
        %v810 = vunpack.c.l.b16 %v283
        %v811 = vunpack.c.h.b16 %v283
        %v812 = vunpack.c.l.b16 %v284
        %v813 = vunpack.c.h.b16 %v284
        %v814 = vunpack.c.l.b16 %v285
        %v815 = vunpack.c.h.b16 %v285
        %v816 = vunpack.c.l.b16 %v286
        %v817 = vunpack.c.h.b16 %v286
        %v818 = vunpack.c.l.b16 %v287
        %v819 = vunpack.c.h.b16 %v287
        %v820 = vunpack.c.l.b16 %v288
        %v821 = vunpack.c.h.b16 %v288
        %v822 = vunpack.c.l.b16 %v289
        %v823 = vunpack.c.h.b16 %v289
        %v824 = vunpack.c.l.b16 %v290
        %v825 = vunpack.c.h.b16 %v290
        %v826 = vunpack.c.l.b16 %v291
        %v827 = vunpack.c.h.b16 %v291
        %v828 = vunpack.c.l.b16 %v292
        %v829 = vunpack.c.h.b16 %v292
        %v830 = vunpack.c.l.b16 %v293
        %v831 = vunpack.c.h.b16 %v293
        %v832 = vunpack.c.l.b16 %v294
        %v833 = vunpack.c.h.b16 %v294
        %v834 = vunpack.c.l.b16 %v295
        %v835 = vunpack.c.h.b16 %v295
        %v836 = vunpack.c.l.b16 %v296
        %v837 = vunpack.c.h.b16 %v296
        %v838 = vunpack.c.l.b16 %v297
        %v839 = vunpack.c.h.b16 %v297
        %v840 = vunpack.c.l.b16 %v298
        %v841 = vunpack.c.h.b16 %v298
        %v842 = vunpack.c.l.b16 %v299
        %v843 = vunpack.c.h.b16 %v299
        %v844 = vunpack.c.l.b16 %v300
        %v845 = vunpack.c.h.b16 %v300
        %v846 = vunpack.c.l.b16 %v301
        %v847 = vunpack.c.h.b16 %v301
        %v848 = vunpack.c.l.b16 %v302
        %v849 = vunpack.c.h.b16 %v302
        %v850 = vunpack.c.l.b16 %v303
        %v851 = vunpack.c.h.b16 %v303
        %v852 = vunpack.c.l.b16 %v304
        %v853 = vunpack.c.h.b16 %v304
        %v854 = vunpack.c.l.b16 %v305
        %v855 = vunpack.c.h.b16 %v305
        %v856 = vunpack.c.l.b16 %v306
        %v857 = vunpack.c.h.b16 %v306
        %v858 = vunpack.c.l.b16 %v307
        %v859 = vunpack.c.h.b16 %v307
        %v860 = vunpack.c.l.b16 %v308
        %v861 = vunpack.c.h.b16 %v308
        %v862 = vunpack.c.l.b16 %v309
        %v863 = vunpack.c.h.b16 %v309
        %v864 = vunpack.c.l.b16 %v310
        %v865 = vunpack.c.h.b16 %v310
        %v866 = vunpack.c.l.b16 %v311
        %v867 = vunpack.c.h.b16 %v311
        %v868 = vunpack.c.l.b16 %v312
        %v869 = vunpack.c.h.b16 %v312
        %v870 = vunpack.c.l.b16 %v313
        %v871 = vunpack.c.h.b16 %v313
        %v872 = vunpack.c.l.b16 %v314
        %v873 = vunpack.c.h.b16 %v314
        %v874 = vunpack.c.l.b16 %v315
        %v875 = vunpack.c.h.b16 %v315
        %v876 = vunpack.c.l.b16 %v316
        %v877 = vunpack.c.h.b16 %v316
        %v878 = vunpack.c.l.b16 %v317
        %v879 = vunpack.c.h.b16 %v317
        %v880 = vunpack.c.l.b16 %v318
        %v881 = vunpack.c.h.b16 %v318
        %v882 = vunpack.c.l.b16 %v319
        %v883 = vunpack.c.h.b16 %v319
        %v884 = vunpack.c.l.b16 %v320
        %v885 = vunpack.c.h.b16 %v320
        %v886 = vunpack.c.l.b16 %v321
        %v887 = vunpack.c.h.b16 %v321
        %v888 = vunpack.c.l.b16 %v322
        %v889 = vunpack.c.h.b16 %v322
        %v890 = vunpack.c.l.b16 %v323
        %v891 = vunpack.c.h.b16 %v323
        %v892 = vunpack.c.l.b16 %v324
        %v893 = vunpack.c.h.b16 %v324
        %v894 = vunpack.c.l.b16 %v325
        %v895 = vunpack.c.h.b16 %v325
        %v896 = vunpack.c.l.b16 %v326
        %v897 = vunpack.c.h.b16 %v326
        %v898 = vunpack.c.l.b16 %v327
        %v899 = vunpack.c.h.b16 %v327
        %v900 = vunpack.c.l.b16 %v328
        %v901 = vunpack.c.h.b16 %v328
        %v902 = vunpack.c.l.b16 %v329
        %v903 = vunpack.c.h.b16 %v329
        %v904 = vunpack.c.l.b16 %v330
        %v905 = vunpack.c.h.b16 %v330
        %v906 = vunpack.c.l.b16 %v331
        %v907 = vunpack.c.h.b16 %v331
        %v908 = vunpack.c.l.b16 %v332
        %v909 = vunpack.c.h.b16 %v332
        %v910 = vunpack.c.l.b16 %v333
        %v911 = vunpack.c.h.b16 %v333
        %v912 = vunpack.c.l.b16 %v334
        %v913 = vunpack.c.h.b16 %v334
        %v914 = vunpack.c.l.b16 %v335
        %v915 = vunpack.c.h.b16 %v335
        %v916 = vunpack.c.l.b16 %v336
        %v917 = vunpack.c.h.b16 %v336
        %v918 = vunpack.c.l.b16 %v337
        %v919 = vunpack.c.h.b16 %v337
        %v920 = vunpack.c.l.b16 %v338
        %v921 = vunpack.c.h.b16 %v338
        %v922 = vpack.c.b16 %v674, %v672
        %v923 = vpack.c.b16 %v675, %v673
        %v924 = vpack.c.b16 %v678, %v676
        %v925 = vpack.c.b16 %v679, %v677
        %v926 = vpack.c.b16 %v682, %v680
        %v927 = vpack.c.b16 %v683, %v681
        %v928 = vpack.c.b16 %v686, %v684
        %v929 = vpack.c.b16 %v687, %v685
        %v930 = vpack.c.b16 %v690, %v688
        %v931 = vpack.c.b16 %v691, %v689
        %v932 = vpack.c.b16 %v694, %v692
        %v933 = vpack.c.b16 %v695, %v693
        %v934 = vpack.c.b16 %v698, %v696
        %v935 = vpack.c.b16 %v699, %v697
        %v936 = vpack.c.b16 %v702, %v700
        %v937 = vpack.c.b16 %v703, %v701
        %v938 = vpack.c.b16 %v706, %v704
        %v939 = vpack.c.b16 %v707, %v705
        %v940 = vpack.c.b16 %v710, %v708
        %v941 = vpack.c.b16 %v711, %v709
        %v942 = vpack.c.b16 %v714, %v712
        %v943 = vpack.c.b16 %v715, %v713
        %v944 = vpack.c.b16 %v718, %v716
        %v945 = vpack.c.b16 %v719, %v717
        %v946 = vpack.c.b16 %v722, %v720
        %v947 = vpack.c.b16 %v723, %v721
        %v948 = vpack.c.b16 %v726, %v724
        %v949 = vpack.c.b16 %v727, %v725
        %v950 = vpack.c.b16 %v730, %v728
        %v951 = vpack.c.b16 %v731, %v729
        %v952 = vpack.c.b16 %v734, %v732
        %v953 = vpack.c.b16 %v735, %v733
        %v954 = vpack.c.b16 %v738, %v736
        %v955 = vpack.c.b16 %v739, %v737
        %v956 = vpack.c.b16 %v742, %v740
        %v957 = vpack.c.b16 %v743, %v741
        %v958 = vpack.c.b16 %v746, %v744
        %v959 = vpack.c.b16 %v747, %v745
        %v960 = vpack.c.b16 %v750, %v748
        %v961 = vpack.c.b16 %v751, %v749
        %v962 = vpack.c.b16 %v754, %v752
        %v963 = vpack.c.b16 %v755, %v753
        %v964 = vpack.c.b16 %v758, %v756
        %v965 = vpack.c.b16 %v759, %v757
        %v966 = vpack.c.b16 %v762, %v760
        %v967 = vpack.c.b16 %v763, %v761
        %v968 = vpack.c.b16 %v766, %v764
        %v969 = vpack.c.b16 %v767, %v765
        %v970 = vpack.c.b16 %v770, %v768
        %v971 = vpack.c.b16 %v771, %v769
        %v972 = vpack.c.b16 %v774, %v772
        %v973 = vpack.c.b16 %v775, %v773
        %v974 = vpack.c.b16 %v778, %v776
        %v975 = vpack.c.b16 %v779, %v777
        %v976 = vpack.c.b16 %v782, %v780
        %v977 = vpack.c.b16 %v783, %v781
        %v978 = vpack.c.b16 %v786, %v784
        %v979 = vpack.c.b16 %v787, %v785
        %v980 = vpack.c.b16 %v790, %v788
        %v981 = vpack.c.b16 %v791, %v789
        %v982 = vpack.c.b16 %v794, %v792
        %v983 = vpack.c.b16 %v795, %v793
        %v984 = vpack.c.b16 %v798, %v796
        %v985 = vpack.c.b16 %v799, %v797
        %v986 = vpack.c.b16 %v802, %v800
        %v987 = vpack.c.b16 %v803, %v801
        %v988 = vpack.c.b16 %v806, %v804
        %v989 = vpack.c.b16 %v807, %v805
        %v990 = vpack.c.b16 %v810, %v808
        %v991 = vpack.c.b16 %v811, %v809
        %v992 = vpack.c.b16 %v814, %v812
        %v993 = vpack.c.b16 %v815, %v813
        %v994 = vpack.c.b16 %v818, %v816
        %v995 = vpack.c.b16 %v819, %v817
        %v996 = vpack.c.b16 %v822, %v820
        %v997 = vpack.c.b16 %v823, %v821
        %v998 = vpack.c.b16 %v826, %v824
        %v999 = vpack.c.b16 %v827, %v825
        %v1000 = vpack.c.b16 %v830, %v828
        %v1001 = vpack.c.b16 %v831, %v829
        %v1002 = vpack.c.b16 %v834, %v832
        %v1003 = vpack.c.b16 %v835, %v833
        %v1004 = vpack.c.b16 %v838, %v836
        %v1005 = vpack.c.b16 %v839, %v837
        %v1006 = vpack.c.b16 %v842, %v840
        %v1007 = vpack.c.b16 %v843, %v841
        %v1008 = vpack.c.b16 %v846, %v844
        %v1009 = vpack.c.b16 %v847, %v845
        %v1010 = vpack.c.b16 %v850, %v848
        %v1011 = vpack.c.b16 %v851, %v849
        %v1012 = vpack.c.b16 %v854, %v852
        %v1013 = vpack.c.b16 %v855, %v853
        %v1014 = vpack.c.b16 %v858, %v856
        %v1015 = vpack.c.b16 %v859, %v857
        %v1016 = vpack.c.b16 %v862, %v860
        %v1017 = vpack.c.b16 %v863, %v861
        %v1018 = vpack.c.b16 %v866, %v864
        %v1019 = vpack.c.b16 %v867, %v865
        %v1020 = vpack.c.b16 %v870, %v868
        %v1021 = vpack.c.b16 %v871, %v869
        %v1022 = vpack.c.b16 %v874, %v872
        %v1023 = vpack.c.b16 %v875, %v873
        %v1024 = vpack.c.b16 %v878, %v876
        %v1025 = vpack.c.b16 %v879, %v877
        %v1026 = vpack.c.b16 %v882, %v880
        %v1027 = vpack.c.b16 %v883, %v881
        %v1028 = vpack.c.b16 %v886, %v884
        %v1029 = vpack.c.b16 %v887, %v885
        %v1030 = vpack.c.b16 %v890, %v888
        %v1031 = vpack.c.b16 %v891, %v889
        %v1032 = vpack.c.b16 %v894, %v892
        %v1033 = vpack.c.b16 %v895, %v893
        %v1034 = vpack.c.b16 %v898, %v896
        %v1035 = vpack.c.b16 %v899, %v897
        %v1036 = vpack.c.b16 %v902, %v900
        %v1037 = vpack.c.b16 %v903, %v901
        %v1038 = vpack.c.b16 %v906, %v904
        %v1039 = vpack.c.b16 %v907, %v905
        %v1040 = vpack.c.b16 %v910, %v908
        %v1041 = vpack.c.b16 %v911, %v909
        %v1042 = vpack.c.b16 %v914, %v912
        %v1043 = vpack.c.b16 %v915, %v913
        %v1044 = vpack.c.b16 %v918, %v916
        %v1045 = vpack.c.b16 %v919, %v917
        %v1046 = vpack.c.b16 %v920, %v920
        %v1047 = vpack.c.b16 %v921, %v921
        %vm1172 = vcmask 818176
        %v1174 = vsel %vm1172, %v546, 0
        %vm1176 = vcmask 1041408
        %v1178 = vsel %vm1176, %v1046, 0
        %v1181 = vsel %vm1176, %v1047, 0
        %1183 = vmatprep.subr.bf16.mxu0 %v923
        %1184 = vmatpush1.bf16.msra.mxu0 %v922
        %1185 = vmatprep.subr.bf16.mxu0 %v925
        %1186 = vmatpush1.bf16.msra.mxu0 %v924
        %1187 = vmatprep.subr.bf16.mxu0 %v927
        %1188 = vmatpush1.bf16.msra.mxu0 %v926
        %1189 = vmatprep.subr.bf16.mxu0 %v929
        %1190 = vmatpush1.bf16.msra.mxu0 %v928
        %1191 = vmatprep.subr.bf16.mxu0 %v931
        %1192 = vmatpush1.bf16.msra.mxu0 %v930
        %1193 = vmatprep.subr.bf16.mxu0 %v933
        %1194 = vmatpush1.bf16.msra.mxu0 %v932
        %1195 = vmatprep.subr.bf16.mxu0 %v935
        %1196 = vmatpush1.bf16.msra.mxu0 %v934
        %1197 = vmatprep.subr.bf16.mxu0 %v937
        %1198 = vmatpush1.bf16.msra.mxu0 %v936
        %1199 = vmatprep.subr.bf16.mxu0 %v939
        %1200 = vmatpush1.bf16.msra.mxu0 %v938
        %1201 = vmatprep.subr.bf16.mxu0 %v941
        %1202 = vmatpush1.bf16.msra.mxu0 %v940
        %1203 = vmatprep.subr.bf16.mxu0 %v943
        %1204 = vmatpush1.bf16.msra.mxu0 %v942
        %1205 = vmatprep.subr.bf16.mxu0 %v945
        %1206 = vmatpush1.bf16.msra.mxu0 %v944
        %1207 = vmatprep.subr.bf16.mxu0 %v947
        %1208 = vmatpush1.bf16.msra.mxu0 %v946
        %1209 = vmatprep.subr.bf16.mxu0 %v949
        %1210 = vmatpush1.bf16.msra.mxu0 %v948
        %1211 = vmatprep.subr.bf16.mxu0 %v951
        %1212 = vmatpush1.bf16.msra.mxu0 %v950
        %1213 = vmatprep.subr.bf16.mxu0 %v953
        %1214 = vmatpush1.bf16.msra.mxu0 %v952
        %1215 = vmatprep.mubr.bf16.mxu0 %v540
        %1216 = vmatmul.mubr.bf16.gmra.mrb[0].mxu0 %v539
        %v1217 = vpop.f32.mrb[0].mxu0
        %v1218 = vadd.f32 0.0, %v1217
        %v1219 = vpop.f32.mrb[0].mxu0
        %v1220 = vadd.f32 0.0, %v1219
        %v1221 = vpop.f32.mrb[0].mxu0
        %v1222 = vpop.f32.mrb[0].mxu0
        %1223 = vdwg.mxu0
        %1224 = vmatprep.subr.bf16.mxu0 %v955
        %1225 = vmatpush1.bf16.msra.mxu0 %v954
        %1226 = vmatprep.subr.bf16.mxu0 %v957
        %1227 = vmatpush1.bf16.msra.mxu0 %v956
        %1228 = vmatprep.subr.bf16.mxu0 %v959
        %1229 = vmatpush1.bf16.msra.mxu0 %v958
        %1230 = vmatprep.subr.bf16.mxu0 %v961
        %1231 = vmatpush1.bf16.msra.mxu0 %v960
        %1232 = vmatprep.subr.bf16.mxu0 %v963
        %1233 = vmatpush1.bf16.msra.mxu0 %v962
        %1234 = vmatprep.subr.bf16.mxu0 %v965
        %1235 = vmatpush1.bf16.msra.mxu0 %v964
        %1236 = vmatprep.subr.bf16.mxu0 %v967
        %1237 = vmatpush1.bf16.msra.mxu0 %v966
        %1238 = vmatprep.subr.bf16.mxu0 %v969
        %1239 = vmatpush1.bf16.msra.mxu0 %v968
        %1240 = vmatprep.subr.bf16.mxu0 %v971
        %1241 = vmatpush1.bf16.msra.mxu0 %v970
        %1242 = vmatprep.subr.bf16.mxu0 %v973
        %1243 = vmatpush1.bf16.msra.mxu0 %v972
        %1244 = vmatprep.subr.bf16.mxu0 %v975
        %1245 = vmatpush1.bf16.msra.mxu0 %v974
        %1246 = vmatprep.subr.bf16.mxu0 %v977
        %1247 = vmatpush1.bf16.msra.mxu0 %v976
        %1248 = vmatprep.subr.bf16.mxu0 %v979
        %1249 = vmatpush1.bf16.msra.mxu0 %v978
        %1250 = vmatprep.subr.bf16.mxu0 %v981
        %1251 = vmatpush1.bf16.msra.mxu0 %v980
        %1252 = vmatprep.subr.bf16.mxu0 %v983
        %1253 = vmatpush1.bf16.msra.mxu0 %v982
        %1254 = vmatprep.subr.bf16.mxu0 %v985
        %1255 = vmatpush1.bf16.msra.mxu0 %v984
        %1256 = vmatprep.mubr.bf16.mxu0 %v542
        %1257 = vmatmul.mubr.bf16.gmra.mrb[0].mxu0 %v541
        %v1258 = vpop.f32.mrb[0].mxu0
        %v1259 = vadd.f32 %v1218, %v1258
        %v1260 = vpop.f32.mrb[0].mxu0
        %v1261 = vadd.f32 %v1220, %v1260
        %v1262 = vpop.f32.mrb[0].mxu0
        %v1263 = vpop.f32.mrb[0].mxu0
        %1264 = vdwg.mxu0
        %1265 = vmatprep.subr.bf16.mxu0 %v987
        %1266 = vmatpush1.bf16.msra.mxu0 %v986
        %1267 = vmatprep.subr.bf16.mxu0 %v989
        %1268 = vmatpush1.bf16.msra.mxu0 %v988
        %1269 = vmatprep.subr.bf16.mxu0 %v991
        %1270 = vmatpush1.bf16.msra.mxu0 %v990
        %1271 = vmatprep.subr.bf16.mxu0 %v993
        %1272 = vmatpush1.bf16.msra.mxu0 %v992
        %1273 = vmatprep.subr.bf16.mxu0 %v995
        %1274 = vmatpush1.bf16.msra.mxu0 %v994
        %1275 = vmatprep.subr.bf16.mxu0 %v997
        %1276 = vmatpush1.bf16.msra.mxu0 %v996
        %1277 = vmatprep.subr.bf16.mxu0 %v999
        %1278 = vmatpush1.bf16.msra.mxu0 %v998
        %1279 = vmatprep.subr.bf16.mxu0 %v1001
        %1280 = vmatpush1.bf16.msra.mxu0 %v1000
        %1281 = vmatprep.subr.bf16.mxu0 %v1003
        %1282 = vmatpush1.bf16.msra.mxu0 %v1002
        %1283 = vmatprep.subr.bf16.mxu0 %v1005
        %1284 = vmatpush1.bf16.msra.mxu0 %v1004
        %1285 = vmatprep.subr.bf16.mxu0 %v1007
        %1286 = vmatpush1.bf16.msra.mxu0 %v1006
        %1287 = vmatprep.subr.bf16.mxu0 %v1009
        %1288 = vmatpush1.bf16.msra.mxu0 %v1008
        %1289 = vmatprep.subr.bf16.mxu0 %v1011
        %1290 = vmatpush1.bf16.msra.mxu0 %v1010
        %1291 = vmatprep.subr.bf16.mxu0 %v1013
        %1292 = vmatpush1.bf16.msra.mxu0 %v1012
        %1293 = vmatprep.subr.bf16.mxu0 %v1015
        %1294 = vmatpush1.bf16.msra.mxu0 %v1014
        %1295 = vmatprep.subr.bf16.mxu0 %v1017
        %1296 = vmatpush1.bf16.msra.mxu0 %v1016
        %1297 = vmatprep.mubr.bf16.mxu0 %v544
        %1298 = vmatmul.mubr.bf16.gmra.mrb[0].mxu0 %v543
        %v1299 = vpop.f32.mrb[0].mxu0
        %v1300 = vadd.f32 %v1259, %v1299
        %v1301 = vpop.f32.mrb[0].mxu0
        %v1302 = vadd.f32 %v1261, %v1301
        %v1303 = vpop.f32.mrb[0].mxu0
        %v1304 = vpop.f32.mrb[0].mxu0
        %1305 = vdwg.mxu0
        %1306 = vmatprep.subr.bf16.mxu0 %v1019
        %1307 = vmatpush1.bf16.msra.mxu0 %v1018
        %1308 = vmatprep.subr.bf16.mxu0 %v1021
        %1309 = vmatpush1.bf16.msra.mxu0 %v1020
        %1310 = vmatprep.subr.bf16.mxu0 %v1023
        %1311 = vmatpush1.bf16.msra.mxu0 %v1022
        %1312 = vmatprep.subr.bf16.mxu0 %v1025
        %1313 = vmatpush1.bf16.msra.mxu0 %v1024
        %1314 = vmatprep.subr.bf16.mxu0 %v1027
        %1315 = vmatpush1.bf16.msra.mxu0 %v1026
        %1316 = vmatprep.subr.bf16.mxu0 %v1029
        %1317 = vmatpush1.bf16.msra.mxu0 %v1028
        %1318 = vmatprep.subr.bf16.mxu0 %v1031
        %1319 = vmatpush1.bf16.msra.mxu0 %v1030
        %1320 = vmatprep.subr.bf16.mxu0 %v1033
        %1321 = vmatpush1.bf16.msra.mxu0 %v1032
        %1322 = vmatprep.subr.bf16.mxu0 %v1035
        %1323 = vmatpush1.bf16.msra.mxu0 %v1034
        %1324 = vmatprep.subr.bf16.mxu0 %v1037
        %1325 = vmatpush1.bf16.msra.mxu0 %v1036
        %1326 = vmatprep.subr.bf16.mxu0 %v1039
        %1327 = vmatpush1.bf16.msra.mxu0 %v1038
        %1328 = vmatprep.subr.bf16.mxu0 %v1041
        %1329 = vmatpush1.bf16.msra.mxu0 %v1040
        %1330 = vmatprep.subr.bf16.mxu0 %v1043
        %1331 = vmatpush1.bf16.msra.mxu0 %v1042
        %1332 = vmatprep.subr.bf16.mxu0 %v1045
        %1333 = vmatpush1.bf16.msra.mxu0 %v1044
        %1334 = vmatprep.subr.bf16.mxu0 %v1181
        %1335 = vmatpush1.bf16.msra.mxu0 %v1178
        %1336 = vmatprep.subr.bf16.mxu0 0
        %1337 = vmatpush1.bf16.msra.mxu0 0
        %1338 = vmatprep.mubr.bf16.mxu0 %v1174
        %1339 = vmatmul.mubr.bf16.gmra.mrb[0].mxu0 %v545
        %v1340 = vpop.f32.mrb[0].mxu0
        %v1341 = vadd.f32 %v1300, %v1340
        %v1342 = vpop.f32.mrb[0].mxu0
        %v1343 = vadd.f32 %v1302, %v1342
        %v1344 = vpop.f32.mrb[0].mxu0
        %v1345 = vpop.f32.mrb[0].mxu0
        %1346 = vdwg.mxu0
        %v1348 = vsel %vm1172, %v522, 0
        %1350 = vmatprep.subr.bf16.mxu0 %v923
        %1351 = vmatpush1.bf16.msra.mxu0 %v922
        %1352 = vmatprep.subr.bf16.mxu0 %v925
        %1353 = vmatpush1.bf16.msra.mxu0 %v924
        %1354 = vmatprep.subr.bf16.mxu0 %v927
        %1355 = vmatpush1.bf16.msra.mxu0 %v926
        %1356 = vmatprep.subr.bf16.mxu0 %v929
        %1357 = vmatpush1.bf16.msra.mxu0 %v928
        %1358 = vmatprep.subr.bf16.mxu0 %v931
        %1359 = vmatpush1.bf16.msra.mxu0 %v930
        %1360 = vmatprep.subr.bf16.mxu0 %v933
        %1361 = vmatpush1.bf16.msra.mxu0 %v932
        %1362 = vmatprep.subr.bf16.mxu0 %v935
        %1363 = vmatpush1.bf16.msra.mxu0 %v934
        %1364 = vmatprep.subr.bf16.mxu0 %v937
        %1365 = vmatpush1.bf16.msra.mxu0 %v936
        %1366 = vmatprep.subr.bf16.mxu0 %v939
        %1367 = vmatpush1.bf16.msra.mxu0 %v938
        %1368 = vmatprep.subr.bf16.mxu0 %v941
        %1369 = vmatpush1.bf16.msra.mxu0 %v940
        %1370 = vmatprep.subr.bf16.mxu0 %v943
        %1371 = vmatpush1.bf16.msra.mxu0 %v942
        %1372 = vmatprep.subr.bf16.mxu0 %v945
        %1373 = vmatpush1.bf16.msra.mxu0 %v944
        %1374 = vmatprep.subr.bf16.mxu0 %v947
        %1375 = vmatpush1.bf16.msra.mxu0 %v946
        %1376 = vmatprep.subr.bf16.mxu0 %v949
        %1377 = vmatpush1.bf16.msra.mxu0 %v948
        %1378 = vmatprep.subr.bf16.mxu0 %v951
        %1379 = vmatpush1.bf16.msra.mxu0 %v950
        %1380 = vmatprep.subr.bf16.mxu0 %v953
        %1381 = vmatpush1.bf16.msra.mxu0 %v952
        %1382 = vmatprep.mubr.bf16.mxu0 %v516
        %1383 = vmatmul.mubr.bf16.gmra.mrb[0].mxu0 %v515
        %v1384 = vpop.f32.mrb[0].mxu0
        %v1385 = vadd.f32 %v1341, %v1384
        %v1386 = vpop.f32.mrb[0].mxu0
        %v1387 = vadd.f32 %v1343, %v1386
        %v1388 = vpop.f32.mrb[0].mxu0
        %v1389 = vpop.f32.mrb[0].mxu0
        %1390 = vdwg.mxu0
        %1391 = vmatprep.subr.bf16.mxu0 %v955
        %1392 = vmatpush1.bf16.msra.mxu0 %v954
        %1393 = vmatprep.subr.bf16.mxu0 %v957
        %1394 = vmatpush1.bf16.msra.mxu0 %v956
        %1395 = vmatprep.subr.bf16.mxu0 %v959
        %1396 = vmatpush1.bf16.msra.mxu0 %v958
        %1397 = vmatprep.subr.bf16.mxu0 %v961
        %1398 = vmatpush1.bf16.msra.mxu0 %v960
        %1399 = vmatprep.subr.bf16.mxu0 %v963
        %1400 = vmatpush1.bf16.msra.mxu0 %v962
        %1401 = vmatprep.subr.bf16.mxu0 %v965
        %1402 = vmatpush1.bf16.msra.mxu0 %v964
        %1403 = vmatprep.subr.bf16.mxu0 %v967
        %1404 = vmatpush1.bf16.msra.mxu0 %v966
        %1405 = vmatprep.subr.bf16.mxu0 %v969
        %1406 = vmatpush1.bf16.msra.mxu0 %v968
        %1407 = vmatprep.subr.bf16.mxu0 %v971
        %1408 = vmatpush1.bf16.msra.mxu0 %v970
        %1409 = vmatprep.subr.bf16.mxu0 %v973
        %1410 = vmatpush1.bf16.msra.mxu0 %v972
        %1411 = vmatprep.subr.bf16.mxu0 %v975
        %1412 = vmatpush1.bf16.msra.mxu0 %v974
        %1413 = vmatprep.subr.bf16.mxu0 %v977
        %1414 = vmatpush1.bf16.msra.mxu0 %v976
        %1415 = vmatprep.subr.bf16.mxu0 %v979
        %1416 = vmatpush1.bf16.msra.mxu0 %v978
        %1417 = vmatprep.subr.bf16.mxu0 %v981
        %1418 = vmatpush1.bf16.msra.mxu0 %v980
        %1419 = vmatprep.subr.bf16.mxu0 %v983
        %1420 = vmatpush1.bf16.msra.mxu0 %v982
        %1421 = vmatprep.subr.bf16.mxu0 %v985
        %1422 = vmatpush1.bf16.msra.mxu0 %v984
        %1423 = vmatprep.mubr.bf16.mxu0 %v518
        %1424 = vmatmul.mubr.bf16.gmra.mrb[0].mxu0 %v517
        %v1425 = vpop.f32.mrb[0].mxu0
        %v1426 = vadd.f32 %v1385, %v1425
        %v1427 = vpop.f32.mrb[0].mxu0
        %v1428 = vadd.f32 %v1387, %v1427
        %v1429 = vpop.f32.mrb[0].mxu0
        %v1430 = vpop.f32.mrb[0].mxu0
        %1431 = vdwg.mxu0
        %1432 = vmatprep.subr.bf16.mxu0 %v987
        %1433 = vmatpush1.bf16.msra.mxu0 %v986
        %1434 = vmatprep.subr.bf16.mxu0 %v989
        %1435 = vmatpush1.bf16.msra.mxu0 %v988
        %1436 = vmatprep.subr.bf16.mxu0 %v991
        %1437 = vmatpush1.bf16.msra.mxu0 %v990
        %1438 = vmatprep.subr.bf16.mxu0 %v993
        %1439 = vmatpush1.bf16.msra.mxu0 %v992
        %1440 = vmatprep.subr.bf16.mxu0 %v995
        %1441 = vmatpush1.bf16.msra.mxu0 %v994
        %1442 = vmatprep.subr.bf16.mxu0 %v997
        %1443 = vmatpush1.bf16.msra.mxu0 %v996
        %1444 = vmatprep.subr.bf16.mxu0 %v999
        %1445 = vmatpush1.bf16.msra.mxu0 %v998
        %1446 = vmatprep.subr.bf16.mxu0 %v1001
        %1447 = vmatpush1.bf16.msra.mxu0 %v1000
        %1448 = vmatprep.subr.bf16.mxu0 %v1003
        %1449 = vmatpush1.bf16.msra.mxu0 %v1002
        %1450 = vmatprep.subr.bf16.mxu0 %v1005
        %1451 = vmatpush1.bf16.msra.mxu0 %v1004
        %1452 = vmatprep.subr.bf16.mxu0 %v1007
        %1453 = vmatpush1.bf16.msra.mxu0 %v1006
        %1454 = vmatprep.subr.bf16.mxu0 %v1009
        %1455 = vmatpush1.bf16.msra.mxu0 %v1008
        %1456 = vmatprep.subr.bf16.mxu0 %v1011
        %1457 = vmatpush1.bf16.msra.mxu0 %v1010
        %1458 = vmatprep.subr.bf16.mxu0 %v1013
        %1459 = vmatpush1.bf16.msra.mxu0 %v1012
        %1460 = vmatprep.subr.bf16.mxu0 %v1015
        %1461 = vmatpush1.bf16.msra.mxu0 %v1014
        %1462 = vmatprep.subr.bf16.mxu0 %v1017
        %1463 = vmatpush1.bf16.msra.mxu0 %v1016
        %1464 = vmatprep.mubr.bf16.mxu0 %v520
        %1465 = vmatmul.mubr.bf16.gmra.mrb[0].mxu0 %v519
        %v1466 = vpop.f32.mrb[0].mxu0
        %v1467 = vadd.f32 %v1426, %v1466
        %v1468 = vpop.f32.mrb[0].mxu0
        %v1469 = vadd.f32 %v1428, %v1468
        %v1470 = vpop.f32.mrb[0].mxu0
        %v1471 = vpop.f32.mrb[0].mxu0
        %1472 = vdwg.mxu0
        %1473 = vmatprep.subr.bf16.mxu0 %v1019
        %1474 = vmatpush1.bf16.msra.mxu0 %v1018
        %1475 = vmatprep.subr.bf16.mxu0 %v1021
        %1476 = vmatpush1.bf16.msra.mxu0 %v1020
        %1477 = vmatprep.subr.bf16.mxu0 %v1023
        %1478 = vmatpush1.bf16.msra.mxu0 %v1022
        %1479 = vmatprep.subr.bf16.mxu0 %v1025
        %1480 = vmatpush1.bf16.msra.mxu0 %v1024
        %1481 = vmatprep.subr.bf16.mxu0 %v1027
        %1482 = vmatpush1.bf16.msra.mxu0 %v1026
        %1483 = vmatprep.subr.bf16.mxu0 %v1029
        %1484 = vmatpush1.bf16.msra.mxu0 %v1028
        %1485 = vmatprep.subr.bf16.mxu0 %v1031
        %1486 = vmatpush1.bf16.msra.mxu0 %v1030
        %1487 = vmatprep.subr.bf16.mxu0 %v1033
        %1488 = vmatpush1.bf16.msra.mxu0 %v1032
        %1489 = vmatprep.subr.bf16.mxu0 %v1035
        %1490 = vmatpush1.bf16.msra.mxu0 %v1034
        %1491 = vmatprep.subr.bf16.mxu0 %v1037
        %1492 = vmatpush1.bf16.msra.mxu0 %v1036
        %1493 = vmatprep.subr.bf16.mxu0 %v1039
        %1494 = vmatpush1.bf16.msra.mxu0 %v1038
        %1495 = vmatprep.subr.bf16.mxu0 %v1041
        %1496 = vmatpush1.bf16.msra.mxu0 %v1040
        %1497 = vmatprep.subr.bf16.mxu0 %v1043
        %1498 = vmatpush1.bf16.msra.mxu0 %v1042
        %1499 = vmatprep.subr.bf16.mxu0 %v1045
        %1500 = vmatpush1.bf16.msra.mxu0 %v1044
        %1501 = vmatprep.subr.bf16.mxu0 %v1181
        %1502 = vmatpush1.bf16.msra.mxu0 %v1178
        %1503 = vmatprep.subr.bf16.mxu0 0
        %1504 = vmatpush1.bf16.msra.mxu0 0
        %1505 = vmatprep.mubr.bf16.mxu0 %v1348
        %1506 = vmatmul.mubr.bf16.gmra.mrb[0].mxu0 %v521
        %v1507 = vpop.f32.mrb[0].mxu0
        %v1508 = vadd.f32 %v1467, %v1507
        %v1509 = vpop.f32.mrb[0].mxu0
        %v1510 = vadd.f32 %v1469, %v1509
        %v1511 = vpop.f32.mrb[0].mxu0
        %v1512 = vpop.f32.mrb[0].mxu0
        %1513 = vdwg.mxu0
        %v1514 = vunpack.c.l.bf16 %v539
        %v1515 = vunpack.c.l.bf16 %v540
        %v1516 = vunpack.c.l.bf16 %v541
        %v1517 = vunpack.c.l.bf16 %v542
        %v1518 = vunpack.c.l.bf16 %v543
        %v1519 = vunpack.c.l.bf16 %v544
        %v1520 = vunpack.c.l.bf16 %v545
        %v1521 = vunpack.c.l.bf16 %v546
        %v1522 = vsub.f32 %v531, %v1514
        %v1523 = vsub.f32 %v532, %v1515
        %v1524 = vsub.f32 %v533, %v1516
        %v1525 = vsub.f32 %v534, %v1517
        %v1526 = vsub.f32 %v535, %v1518
        %v1527 = vsub.f32 %v536, %v1519
        %v1528 = vsub.f32 %v537, %v1520
        %v1529 = vsub.f32 %v538, %v1521
        %v1530 = vpack.c.bf16 %v1522, %v1522
        %v1531 = vpack.c.bf16 %v1523, %v1523
        %v1532 = vpack.c.bf16 %v1524, %v1524
        %v1533 = vpack.c.bf16 %v1525, %v1525
        %v1534 = vpack.c.bf16 %v1526, %v1526
        %v1535 = vpack.c.bf16 %v1527, %v1527
        %v1536 = vpack.c.bf16 %v1528, %v1528
        %v1537 = vpack.c.bf16 %v1529, %v1529
        %v1539 = vsel %vm1172, %v1537, 0
        %1541 = vmatprep.subr.bf16.mxu0 %v923
        %1542 = vmatpush1.bf16.msra.mxu0 %v922
        %1543 = vmatprep.subr.bf16.mxu0 %v925
        %1544 = vmatpush1.bf16.msra.mxu0 %v924
        %1545 = vmatprep.subr.bf16.mxu0 %v927
        %1546 = vmatpush1.bf16.msra.mxu0 %v926
        %1547 = vmatprep.subr.bf16.mxu0 %v929
        %1548 = vmatpush1.bf16.msra.mxu0 %v928
        %1549 = vmatprep.subr.bf16.mxu0 %v931
        %1550 = vmatpush1.bf16.msra.mxu0 %v930
        %1551 = vmatprep.subr.bf16.mxu0 %v933
        %1552 = vmatpush1.bf16.msra.mxu0 %v932
        %1553 = vmatprep.subr.bf16.mxu0 %v935
        %1554 = vmatpush1.bf16.msra.mxu0 %v934
        %1555 = vmatprep.subr.bf16.mxu0 %v937
        %1556 = vmatpush1.bf16.msra.mxu0 %v936
        %1557 = vmatprep.subr.bf16.mxu0 %v939
        %1558 = vmatpush1.bf16.msra.mxu0 %v938
        %1559 = vmatprep.subr.bf16.mxu0 %v941
        %1560 = vmatpush1.bf16.msra.mxu0 %v940
        %1561 = vmatprep.subr.bf16.mxu0 %v943
        %1562 = vmatpush1.bf16.msra.mxu0 %v942
        %1563 = vmatprep.subr.bf16.mxu0 %v945
        %1564 = vmatpush1.bf16.msra.mxu0 %v944
        %1565 = vmatprep.subr.bf16.mxu0 %v947
        %1566 = vmatpush1.bf16.msra.mxu0 %v946
        %1567 = vmatprep.subr.bf16.mxu0 %v949
        %1568 = vmatpush1.bf16.msra.mxu0 %v948
        %1569 = vmatprep.subr.bf16.mxu0 %v951
        %1570 = vmatpush1.bf16.msra.mxu0 %v950
        %1571 = vmatprep.subr.bf16.mxu0 %v953
        %1572 = vmatpush1.bf16.msra.mxu0 %v952
        %1573 = vmatprep.mubr.bf16.mxu0 %v1531
        %1574 = vmatmul.mubr.bf16.gmra.mrb[0].mxu0 %v1530
        %v1575 = vpop.f32.mrb[0].mxu0
        %v1576 = vadd.f32 0.0, %v1575
        %v1577 = vpop.f32.mrb[0].mxu0
        %v1578 = vadd.f32 0.0, %v1577
        %v1579 = vpop.f32.mrb[0].mxu0
        %v1580 = vpop.f32.mrb[0].mxu0
        %1581 = vdwg.mxu0
        %1582 = vmatprep.subr.bf16.mxu0 %v955
        %1583 = vmatpush1.bf16.msra.mxu0 %v954
        %1584 = vmatprep.subr.bf16.mxu0 %v957
        %1585 = vmatpush1.bf16.msra.mxu0 %v956
        %1586 = vmatprep.subr.bf16.mxu0 %v959
        %1587 = vmatpush1.bf16.msra.mxu0 %v958
        %1588 = vmatprep.subr.bf16.mxu0 %v961
        %1589 = vmatpush1.bf16.msra.mxu0 %v960
        %1590 = vmatprep.subr.bf16.mxu0 %v963
        %1591 = vmatpush1.bf16.msra.mxu0 %v962
        %1592 = vmatprep.subr.bf16.mxu0 %v965
        %1593 = vmatpush1.bf16.msra.mxu0 %v964
        %1594 = vmatprep.subr.bf16.mxu0 %v967
        %1595 = vmatpush1.bf16.msra.mxu0 %v966
        %1596 = vmatprep.subr.bf16.mxu0 %v969
        %1597 = vmatpush1.bf16.msra.mxu0 %v968
        %1598 = vmatprep.subr.bf16.mxu0 %v971
        %1599 = vmatpush1.bf16.msra.mxu0 %v970
        %1600 = vmatprep.subr.bf16.mxu0 %v973
        %1601 = vmatpush1.bf16.msra.mxu0 %v972
        %1602 = vmatprep.subr.bf16.mxu0 %v975
        %1603 = vmatpush1.bf16.msra.mxu0 %v974
        %1604 = vmatprep.subr.bf16.mxu0 %v977
        %1605 = vmatpush1.bf16.msra.mxu0 %v976
        %1606 = vmatprep.subr.bf16.mxu0 %v979
        %1607 = vmatpush1.bf16.msra.mxu0 %v978
        %1608 = vmatprep.subr.bf16.mxu0 %v981
        %1609 = vmatpush1.bf16.msra.mxu0 %v980
        %1610 = vmatprep.subr.bf16.mxu0 %v983
        %1611 = vmatpush1.bf16.msra.mxu0 %v982
        %1612 = vmatprep.subr.bf16.mxu0 %v985
        %1613 = vmatpush1.bf16.msra.mxu0 %v984
        %1614 = vmatprep.mubr.bf16.mxu0 %v1533
        %1615 = vmatmul.mubr.bf16.gmra.mrb[0].mxu0 %v1532
        %v1616 = vpop.f32.mrb[0].mxu0
        %v1617 = vadd.f32 %v1576, %v1616
        %v1618 = vpop.f32.mrb[0].mxu0
        %v1619 = vadd.f32 %v1578, %v1618
        %v1620 = vpop.f32.mrb[0].mxu0
        %v1621 = vpop.f32.mrb[0].mxu0
        %1622 = vdwg.mxu0
        %1623 = vmatprep.subr.bf16.mxu0 %v987
        %1624 = vmatpush1.bf16.msra.mxu0 %v986
        %1625 = vmatprep.subr.bf16.mxu0 %v989
        %1626 = vmatpush1.bf16.msra.mxu0 %v988
        %1627 = vmatprep.subr.bf16.mxu0 %v991
        %1628 = vmatpush1.bf16.msra.mxu0 %v990
        %1629 = vmatprep.subr.bf16.mxu0 %v993
        %1630 = vmatpush1.bf16.msra.mxu0 %v992
        %1631 = vmatprep.subr.bf16.mxu0 %v995
        %1632 = vmatpush1.bf16.msra.mxu0 %v994
        %1633 = vmatprep.subr.bf16.mxu0 %v997
        %1634 = vmatpush1.bf16.msra.mxu0 %v996
        %1635 = vmatprep.subr.bf16.mxu0 %v999
        %1636 = vmatpush1.bf16.msra.mxu0 %v998
        %1637 = vmatprep.subr.bf16.mxu0 %v1001
        %1638 = vmatpush1.bf16.msra.mxu0 %v1000
        %1639 = vmatprep.subr.bf16.mxu0 %v1003
        %1640 = vmatpush1.bf16.msra.mxu0 %v1002
        %1641 = vmatprep.subr.bf16.mxu0 %v1005
        %1642 = vmatpush1.bf16.msra.mxu0 %v1004
        %1643 = vmatprep.subr.bf16.mxu0 %v1007
        %1644 = vmatpush1.bf16.msra.mxu0 %v1006
        %1645 = vmatprep.subr.bf16.mxu0 %v1009
        %1646 = vmatpush1.bf16.msra.mxu0 %v1008
        %1647 = vmatprep.subr.bf16.mxu0 %v1011
        %1648 = vmatpush1.bf16.msra.mxu0 %v1010
        %1649 = vmatprep.subr.bf16.mxu0 %v1013
        %1650 = vmatpush1.bf16.msra.mxu0 %v1012
        %1651 = vmatprep.subr.bf16.mxu0 %v1015
        %1652 = vmatpush1.bf16.msra.mxu0 %v1014
        %1653 = vmatprep.subr.bf16.mxu0 %v1017
        %1654 = vmatpush1.bf16.msra.mxu0 %v1016
        %1655 = vmatprep.mubr.bf16.mxu0 %v1535
        %1656 = vmatmul.mubr.bf16.gmra.mrb[0].mxu0 %v1534
        %v1657 = vpop.f32.mrb[0].mxu0
        %v1658 = vadd.f32 %v1617, %v1657
        %v1659 = vpop.f32.mrb[0].mxu0
        %v1660 = vadd.f32 %v1619, %v1659
        %v1661 = vpop.f32.mrb[0].mxu0
        %v1662 = vpop.f32.mrb[0].mxu0
        %1663 = vdwg.mxu0
        %1664 = vmatprep.subr.bf16.mxu0 %v1019
        %1665 = vmatpush1.bf16.msra.mxu0 %v1018
        %1666 = vmatprep.subr.bf16.mxu0 %v1021
        %1667 = vmatpush1.bf16.msra.mxu0 %v1020
        %1668 = vmatprep.subr.bf16.mxu0 %v1023
        %1669 = vmatpush1.bf16.msra.mxu0 %v1022
        %1670 = vmatprep.subr.bf16.mxu0 %v1025
        %1671 = vmatpush1.bf16.msra.mxu0 %v1024
        %1672 = vmatprep.subr.bf16.mxu0 %v1027
        %1673 = vmatpush1.bf16.msra.mxu0 %v1026
        %1674 = vmatprep.subr.bf16.mxu0 %v1029
        %1675 = vmatpush1.bf16.msra.mxu0 %v1028
        %1676 = vmatprep.subr.bf16.mxu0 %v1031
        %1677 = vmatpush1.bf16.msra.mxu0 %v1030
        %1678 = vmatprep.subr.bf16.mxu0 %v1033
        %1679 = vmatpush1.bf16.msra.mxu0 %v1032
        %1680 = vmatprep.subr.bf16.mxu0 %v1035
        %1681 = vmatpush1.bf16.msra.mxu0 %v1034
        %1682 = vmatprep.subr.bf16.mxu0 %v1037
        %1683 = vmatpush1.bf16.msra.mxu0 %v1036
        %1684 = vmatprep.subr.bf16.mxu0 %v1039
        %1685 = vmatpush1.bf16.msra.mxu0 %v1038
        %1686 = vmatprep.subr.bf16.mxu0 %v1041
        %1687 = vmatpush1.bf16.msra.mxu0 %v1040
        %1688 = vmatprep.subr.bf16.mxu0 %v1043
        %1689 = vmatpush1.bf16.msra.mxu0 %v1042
        %1690 = vmatprep.subr.bf16.mxu0 %v1045
        %1691 = vmatpush1.bf16.msra.mxu0 %v1044
        %1692 = vmatprep.subr.bf16.mxu0 %v1181
        %1693 = vmatpush1.bf16.msra.mxu0 %v1178
        %1694 = vmatprep.subr.bf16.mxu0 0
        %1695 = vmatpush1.bf16.msra.mxu0 0
        %1696 = vmatprep.mubr.bf16.mxu0 %v1539
        %1697 = vmatmul.mubr.bf16.gmra.mrb[0].mxu0 %v1536
        %v1698 = vpop.f32.mrb[0].mxu0
        %v1699 = vadd.f32 %v1658, %v1698
        %v1700 = vpop.f32.mrb[0].mxu0
        %v1701 = vadd.f32 %v1660, %v1700
        %v1702 = vpop.f32.mrb[0].mxu0
        %v1703 = vpop.f32.mrb[0].mxu0
        %1704 = vdwg.mxu0
        %v1705 = vadd.f32 %v1508, %v1699
        %v1706 = vadd.f32 %v1510, %v1701
        %1709 = vrot.lane.b32.xlu0 %v1705, 104
        %v1710 = vpop.permute.xlu0 %1709
        %1711 = vrot.lane.b32.xlu0 %v1706, 104
        %v1712 = vpop.permute.xlu0 %1711
        %v1713 = vsel %vm212, %v1710, %v1712
        %vm1717 = vcmask 1048384
        %1718 = vst.msk [vmem:[%s183 + $0x38] sm:$0xff] %vm1717, %v1710
        %1719 = vst [vmem:[%s183 + $0x40] sm:$0xff] %v1713
        %vm1720 = vcmask 392192
        %1721 = vst.msk [vmem:[%s183 + $0x48] sm:$0xff] %vm1720, %v1712
        %v1722 = vld [vmem:[%s194 + $0x38] sm:$0xff]
        %v1723 = vld [vmem:[%s194 + $0x40] sm:$0xff]
        %v1724 = vld [vmem:[%s194 + $0x48] sm:$0xff]
        %v1725 = vld [vmem:[%s194 + $0x50] sm:$0xff]
        %v1726 = vld [vmem:[%s194 + $0x58] sm:$0xff]
        %v1727 = vld [vmem:[%s194 + $0x60] sm:$0xff]
        %v1728 = vld [vmem:[%s194 + $0x68] sm:$0xff]
        %v1729 = vld [vmem:[%s194 + $0x70] sm:$0xff]
        %v1730 = vld [vmem:[%s194 + $0x78] sm:$0xff]
        %1740 = vrot.lane.b32.xlu0 %v1722, 127
        %v1741 = vpop.permute.xlu0 %1740
        %1742 = vrot.lane.b32.xlu0 %v1723, 127
        %v1743 = vpop.permute.xlu0 %1742
        %1744 = vrot.lane.b32.xlu0 %v1724, 127
        %v1745 = vpop.permute.xlu0 %1744
        %1746 = vrot.lane.b32.xlu0 %v1725, 127
        %v1747 = vpop.permute.xlu0 %1746
        %1748 = vrot.lane.b32.xlu0 %v1726, 127
        %v1749 = vpop.permute.xlu0 %1748
        %1750 = vrot.lane.b32.xlu0 %v1727, 127
        %v1751 = vpop.permute.xlu0 %1750
        %1752 = vrot.lane.b32.xlu0 %v1728, 127
        %v1753 = vpop.permute.xlu0 %1752
        %1754 = vrot.lane.b32.xlu0 %v1729, 127
        %v1755 = vpop.permute.xlu0 %1754
        %1756 = vrot.lane.b32.xlu0 %v1730, 127
        %v1757 = vpop.permute.xlu0 %1756
        %v1758 = vsel %vm371, %v1741, %v1743
        %v1759 = vsel %vm371, %v1743, %v1745
        %v1760 = vsel %vm371, %v1745, %v1747
        %v1761 = vsel %vm371, %v1747, %v1749
        %v1762 = vsel %vm371, %v1749, %v1751
        %v1763 = vsel %vm371, %v1751, %v1753
        %v1764 = vsel %vm371, %v1753, %v1755
        %v1765 = vsel %vm371, %v1755, %v1757
        %v1775 = vmax.f32 %v1722, %v1758
        %v1776 = vmax.f32 %v1723, %v1759
        %v1777 = vmax.f32 %v1724, %v1760
        %v1778 = vmax.f32 %v1725, %v1761
        %v1779 = vmax.f32 %v1726, %v1762
        %v1780 = vmax.f32 %v1727, %v1763
        %v1781 = vmax.f32 %v1728, %v1764
        %v1782 = vmax.f32 %v1729, %v1765
        %v1783 = vmax.f32 %v1730, %v1757
        %1784 = vrot.lane.b32.xlu0 %v1722, 126
        %v1785 = vpop.permute.xlu0 %1784
        %1786 = vrot.lane.b32.xlu0 %v1723, 126
        %v1787 = vpop.permute.xlu0 %1786
        %1788 = vrot.lane.b32.xlu0 %v1724, 126
        %v1789 = vpop.permute.xlu0 %1788
        %1790 = vrot.lane.b32.xlu0 %v1725, 126
        %v1791 = vpop.permute.xlu0 %1790
        %1792 = vrot.lane.b32.xlu0 %v1726, 126
        %v1793 = vpop.permute.xlu0 %1792
        %1794 = vrot.lane.b32.xlu0 %v1727, 126
        %v1795 = vpop.permute.xlu0 %1794
        %1796 = vrot.lane.b32.xlu0 %v1728, 126
        %v1797 = vpop.permute.xlu0 %1796
        %1798 = vrot.lane.b32.xlu0 %v1729, 126
        %v1799 = vpop.permute.xlu0 %1798
        %1800 = vrot.lane.b32.xlu0 %v1730, 126
        %v1801 = vpop.permute.xlu0 %1800
        %v1802 = vsel %vm411, %v1785, %v1787
        %v1803 = vsel %vm411, %v1787, %v1789
        %v1804 = vsel %vm411, %v1789, %v1791
        %v1805 = vsel %vm411, %v1791, %v1793
        %v1806 = vsel %vm411, %v1793, %v1795
        %v1807 = vsel %vm411, %v1795, %v1797
        %v1808 = vsel %vm411, %v1797, %v1799
        %v1809 = vsel %vm411, %v1799, %v1801
        %v1819 = vmax.f32 %v1775, %v1802
        %v1820 = vmax.f32 %v1776, %v1803
        %v1821 = vmax.f32 %v1777, %v1804
        %v1822 = vmax.f32 %v1778, %v1805
        %v1823 = vmax.f32 %v1779, %v1806
        %v1824 = vmax.f32 %v1780, %v1807
        %v1825 = vmax.f32 %v1781, %v1808
        %v1826 = vmax.f32 %v1782, %v1809
        %v1827 = vmax.f32 %v1783, %v1801
        %1828 = vrot.lane.b32.xlu0 %v1722, 125
        %v1829 = vpop.permute.xlu0 %1828
        %1830 = vrot.lane.b32.xlu0 %v1723, 125
        %v1831 = vpop.permute.xlu0 %1830
        %1832 = vrot.lane.b32.xlu0 %v1724, 125
        %v1833 = vpop.permute.xlu0 %1832
        %1834 = vrot.lane.b32.xlu0 %v1725, 125
        %v1835 = vpop.permute.xlu0 %1834
        %1836 = vrot.lane.b32.xlu0 %v1726, 125
        %v1837 = vpop.permute.xlu0 %1836
        %1838 = vrot.lane.b32.xlu0 %v1727, 125
        %v1839 = vpop.permute.xlu0 %1838
        %1840 = vrot.lane.b32.xlu0 %v1728, 125
        %v1841 = vpop.permute.xlu0 %1840
        %1842 = vrot.lane.b32.xlu0 %v1729, 125
        %v1843 = vpop.permute.xlu0 %1842
        %1844 = vrot.lane.b32.xlu0 %v1730, 125
        %v1845 = vpop.permute.xlu0 %1844
        %v1846 = vsel %vm451, %v1829, %v1831
        %v1847 = vsel %vm451, %v1831, %v1833
        %v1848 = vsel %vm451, %v1833, %v1835
        %v1849 = vsel %vm451, %v1835, %v1837
        %v1850 = vsel %vm451, %v1837, %v1839
        %v1851 = vsel %vm451, %v1839, %v1841
        %v1852 = vsel %vm451, %v1841, %v1843
        %v1853 = vsel %vm451, %v1843, %v1845
        %v1863 = vmax.f32 %v1819, %v1846
        %v1864 = vmax.f32 %v1820, %v1847
        %v1865 = vmax.f32 %v1821, %v1848
        %v1866 = vmax.f32 %v1822, %v1849
        %v1867 = vmax.f32 %v1823, %v1850
        %v1868 = vmax.f32 %v1824, %v1851
        %v1869 = vmax.f32 %v1825, %v1852
        %v1870 = vmax.f32 %v1826, %v1853
        %v1871 = vmax.f32 %v1827, %v1845
        %1872 = vrot.lane.b32.xlu0 %v1722, 124
        %v1873 = vpop.permute.xlu0 %1872
        %1874 = vrot.lane.b32.xlu0 %v1723, 124
        %v1875 = vpop.permute.xlu0 %1874
        %1876 = vrot.lane.b32.xlu0 %v1724, 124
        %v1877 = vpop.permute.xlu0 %1876
        %1878 = vrot.lane.b32.xlu0 %v1725, 124
        %v1879 = vpop.permute.xlu0 %1878
        %1880 = vrot.lane.b32.xlu0 %v1726, 124
        %v1881 = vpop.permute.xlu0 %1880
        %1882 = vrot.lane.b32.xlu0 %v1727, 124
        %v1883 = vpop.permute.xlu0 %1882
        %1884 = vrot.lane.b32.xlu0 %v1728, 124
        %v1885 = vpop.permute.xlu0 %1884
        %1886 = vrot.lane.b32.xlu0 %v1729, 124
        %v1887 = vpop.permute.xlu0 %1886
        %1888 = vrot.lane.b32.xlu0 %v1730, 124
        %v1889 = vpop.permute.xlu0 %1888
        %v1890 = vsel %vm491, %v1873, %v1875
        %v1891 = vsel %vm491, %v1875, %v1877
        %v1892 = vsel %vm491, %v1877, %v1879
        %v1893 = vsel %vm491, %v1879, %v1881
        %v1894 = vsel %vm491, %v1881, %v1883
        %v1895 = vsel %vm491, %v1883, %v1885
        %v1896 = vsel %vm491, %v1885, %v1887
        %v1897 = vsel %vm491, %v1887, %v1889
        %v1907 = vmax.f32 %v1863, %v1890
        %v1908 = vmax.f32 %v1864, %v1891
        %v1909 = vmax.f32 %v1865, %v1892
        %v1910 = vmax.f32 %v1866, %v1893
        %v1911 = vmax.f32 %v1867, %v1894
        %v1912 = vmax.f32 %v1868, %v1895
        %v1913 = vmax.f32 %v1869, %v1896
        %v1914 = vmax.f32 %v1870, %v1897
        %v1915 = vmax.f32 %v1871, %v1889
        %v1916 = vpack.c.bf16 %v1907, %v1907
        %v1917 = vpack.c.bf16 %v1908, %v1908
        %v1918 = vpack.c.bf16 %v1909, %v1909
        %v1919 = vpack.c.bf16 %v1910, %v1910
        %v1920 = vpack.c.bf16 %v1911, %v1911
        %v1921 = vpack.c.bf16 %v1912, %v1912
        %v1922 = vpack.c.bf16 %v1913, %v1913
        %v1923 = vpack.c.bf16 %v1914, %v1914
        %v1924 = vpack.c.bf16 %v1915, %v1915
        %v1925 = vunpack.c.l.bf16 %v1916
        %v1926 = vunpack.c.l.bf16 %v1917
        %v1927 = vunpack.c.l.bf16 %v1918
        %v1928 = vunpack.c.l.bf16 %v1919
        %v1929 = vunpack.c.l.bf16 %v1920
        %v1930 = vunpack.c.l.bf16 %v1921
        %v1931 = vunpack.c.l.bf16 %v1922
        %v1932 = vunpack.c.l.bf16 %v1923
        %v1933 = vunpack.c.l.bf16 %v1924
        %v1934 = vsub.f32 %v1907, %v1925
        %v1935 = vsub.f32 %v1908, %v1926
        %v1936 = vsub.f32 %v1909, %v1927
        %v1937 = vsub.f32 %v1910, %v1928
        %v1938 = vsub.f32 %v1911, %v1929
        %v1939 = vsub.f32 %v1912, %v1930
        %v1940 = vsub.f32 %v1913, %v1931
        %v1941 = vsub.f32 %v1914, %v1932
        %v1942 = vsub.f32 %v1915, %v1933
        %v1943 = vpack.c.bf16 %v1934, %v1934
        %v1944 = vpack.c.bf16 %v1935, %v1935
        %v1945 = vpack.c.bf16 %v1936, %v1936
        %v1946 = vpack.c.bf16 %v1937, %v1937
        %v1947 = vpack.c.bf16 %v1938, %v1938
        %v1948 = vpack.c.bf16 %v1939, %v1939
        %v1949 = vpack.c.bf16 %v1940, %v1940
        %v1950 = vpack.c.bf16 %v1941, %v1941
        %v1951 = vpack.c.bf16 %v1942, %v1942
        %1961 = vrot.lane.b32.xlu0 %v1943, 24
        %v1962 = vpop.permute.xlu0 %1961
        %1963 = vrot.lane.b32.xlu0 %v1944, 24
        %v1964 = vpop.permute.xlu0 %1963
        %1965 = vrot.lane.b32.xlu0 %v1945, 24
        %v1966 = vpop.permute.xlu0 %1965
        %1967 = vrot.lane.b32.xlu0 %v1946, 24
        %v1968 = vpop.permute.xlu0 %1967
        %1969 = vrot.lane.b32.xlu0 %v1947, 24
        %v1970 = vpop.permute.xlu0 %1969
        %1971 = vrot.lane.b32.xlu0 %v1948, 24
        %v1972 = vpop.permute.xlu0 %1971
        %1973 = vrot.lane.b32.xlu0 %v1949, 24
        %v1974 = vpop.permute.xlu0 %1973
        %1975 = vrot.lane.b32.xlu0 %v1950, 24
        %v1976 = vpop.permute.xlu0 %1975
        %1977 = vrot.lane.b32.xlu0 %v1951, 24
        %v1978 = vpop.permute.xlu0 %1977
        %vm1979 = vcmask 195584
        %v1980 = vsel %vm1979, %v1962, %v1964
        %v1981 = vsel %vm1979, %v1964, %v1966
        %v1982 = vsel %vm1979, %v1966, %v1968
        %v1983 = vsel %vm1979, %v1968, %v1970
        %v1984 = vsel %vm1979, %v1970, %v1972
        %v1985 = vsel %vm1979, %v1972, %v1974
        %v1986 = vsel %vm1979, %v1974, %v1976
        %v1987 = vsel %vm1979, %v1976, %v1978
        %v1996 = vsel %vm1172, %v1987, 0
        %1998 = vmatprep.subr.bf16.mxu0 %v923
        %1999 = vmatpush1.bf16.msra.mxu0 %v922
        %2000 = vmatprep.subr.bf16.mxu0 %v925
        %2001 = vmatpush1.bf16.msra.mxu0 %v924
        %2002 = vmatprep.subr.bf16.mxu0 %v927
        %2003 = vmatpush1.bf16.msra.mxu0 %v926
        %2004 = vmatprep.subr.bf16.mxu0 %v929
        %2005 = vmatpush1.bf16.msra.mxu0 %v928
        %2006 = vmatprep.subr.bf16.mxu0 %v931
        %2007 = vmatpush1.bf16.msra.mxu0 %v930
        %2008 = vmatprep.subr.bf16.mxu0 %v933
        %2009 = vmatpush1.bf16.msra.mxu0 %v932
        %2010 = vmatprep.subr.bf16.mxu0 %v935
        %2011 = vmatpush1.bf16.msra.mxu0 %v934
        %2012 = vmatprep.subr.bf16.mxu0 %v937
        %2013 = vmatpush1.bf16.msra.mxu0 %v936
        %2014 = vmatprep.subr.bf16.mxu0 %v939
        %2015 = vmatpush1.bf16.msra.mxu0 %v938
        %2016 = vmatprep.subr.bf16.mxu0 %v941
        %2017 = vmatpush1.bf16.msra.mxu0 %v940
        %2018 = vmatprep.subr.bf16.mxu0 %v943
        %2019 = vmatpush1.bf16.msra.mxu0 %v942
        %2020 = vmatprep.subr.bf16.mxu0 %v945
        %2021 = vmatpush1.bf16.msra.mxu0 %v944
        %2022 = vmatprep.subr.bf16.mxu0 %v947
        %2023 = vmatpush1.bf16.msra.mxu0 %v946
        %2024 = vmatprep.subr.bf16.mxu0 %v949
        %2025 = vmatpush1.bf16.msra.mxu0 %v948
        %2026 = vmatprep.subr.bf16.mxu0 %v951
        %2027 = vmatpush1.bf16.msra.mxu0 %v950
        %2028 = vmatprep.subr.bf16.mxu0 %v953
        %2029 = vmatpush1.bf16.msra.mxu0 %v952
        %2030 = vmatprep.mubr.bf16.mxu0 %v1981
        %2031 = vmatmul.mubr.bf16.gmra.mrb[0].mxu0 %v1980
        %v2032 = vpop.f32.mrb[0].mxu0
        %v2033 = vadd.f32 0.0, %v2032
        %v2034 = vpop.f32.mrb[0].mxu0
        %v2035 = vadd.f32 0.0, %v2034
        %v2036 = vpop.f32.mrb[0].mxu0
        %v2037 = vpop.f32.mrb[0].mxu0
        %2038 = vdwg.mxu0
        %2039 = vmatprep.subr.bf16.mxu0 %v955
        %2040 = vmatpush1.bf16.msra.mxu0 %v954
        %2041 = vmatprep.subr.bf16.mxu0 %v957
        %2042 = vmatpush1.bf16.msra.mxu0 %v956
        %2043 = vmatprep.subr.bf16.mxu0 %v959
        %2044 = vmatpush1.bf16.msra.mxu0 %v958
        %2045 = vmatprep.subr.bf16.mxu0 %v961
        %2046 = vmatpush1.bf16.msra.mxu0 %v960
        %2047 = vmatprep.subr.bf16.mxu0 %v963
        %2048 = vmatpush1.bf16.msra.mxu0 %v962
        %2049 = vmatprep.subr.bf16.mxu0 %v965
        %2050 = vmatpush1.bf16.msra.mxu0 %v964
        %2051 = vmatprep.subr.bf16.mxu0 %v967
        %2052 = vmatpush1.bf16.msra.mxu0 %v966
        %2053 = vmatprep.subr.bf16.mxu0 %v969
        %2054 = vmatpush1.bf16.msra.mxu0 %v968
        %2055 = vmatprep.subr.bf16.mxu0 %v971
        %2056 = vmatpush1.bf16.msra.mxu0 %v970
        %2057 = vmatprep.subr.bf16.mxu0 %v973
        %2058 = vmatpush1.bf16.msra.mxu0 %v972
        %2059 = vmatprep.subr.bf16.mxu0 %v975
        %2060 = vmatpush1.bf16.msra.mxu0 %v974
        %2061 = vmatprep.subr.bf16.mxu0 %v977
        %2062 = vmatpush1.bf16.msra.mxu0 %v976
        %2063 = vmatprep.subr.bf16.mxu0 %v979
        %2064 = vmatpush1.bf16.msra.mxu0 %v978
        %2065 = vmatprep.subr.bf16.mxu0 %v981
        %2066 = vmatpush1.bf16.msra.mxu0 %v980
        %2067 = vmatprep.subr.bf16.mxu0 %v983
        %2068 = vmatpush1.bf16.msra.mxu0 %v982
        %2069 = vmatprep.subr.bf16.mxu0 %v985
        %2070 = vmatpush1.bf16.msra.mxu0 %v984
        %2071 = vmatprep.mubr.bf16.mxu0 %v1983
        %2072 = vmatmul.mubr.bf16.gmra.mrb[0].mxu0 %v1982
        %v2073 = vpop.f32.mrb[0].mxu0
        %v2074 = vadd.f32 %v2033, %v2073
        %v2075 = vpop.f32.mrb[0].mxu0
        %v2076 = vadd.f32 %v2035, %v2075
        %v2077 = vpop.f32.mrb[0].mxu0
        %v2078 = vpop.f32.mrb[0].mxu0
        %2079 = vdwg.mxu0
        %2080 = vmatprep.subr.bf16.mxu0 %v987
        %2081 = vmatpush1.bf16.msra.mxu0 %v986
        %2082 = vmatprep.subr.bf16.mxu0 %v989
        %2083 = vmatpush1.bf16.msra.mxu0 %v988
        %2084 = vmatprep.subr.bf16.mxu0 %v991
        %2085 = vmatpush1.bf16.msra.mxu0 %v990
        %2086 = vmatprep.subr.bf16.mxu0 %v993
        %2087 = vmatpush1.bf16.msra.mxu0 %v992
        %2088 = vmatprep.subr.bf16.mxu0 %v995
        %2089 = vmatpush1.bf16.msra.mxu0 %v994
        %2090 = vmatprep.subr.bf16.mxu0 %v997
        %2091 = vmatpush1.bf16.msra.mxu0 %v996
        %2092 = vmatprep.subr.bf16.mxu0 %v999
        %2093 = vmatpush1.bf16.msra.mxu0 %v998
        %2094 = vmatprep.subr.bf16.mxu0 %v1001
        %2095 = vmatpush1.bf16.msra.mxu0 %v1000
        %2096 = vmatprep.subr.bf16.mxu0 %v1003
        %2097 = vmatpush1.bf16.msra.mxu0 %v1002
        %2098 = vmatprep.subr.bf16.mxu0 %v1005
        %2099 = vmatpush1.bf16.msra.mxu0 %v1004
        %2100 = vmatprep.subr.bf16.mxu0 %v1007
        %2101 = vmatpush1.bf16.msra.mxu0 %v1006
        %2102 = vmatprep.subr.bf16.mxu0 %v1009
        %2103 = vmatpush1.bf16.msra.mxu0 %v1008
        %2104 = vmatprep.subr.bf16.mxu0 %v1011
        %2105 = vmatpush1.bf16.msra.mxu0 %v1010
        %2106 = vmatprep.subr.bf16.mxu0 %v1013
        %2107 = vmatpush1.bf16.msra.mxu0 %v1012
        %2108 = vmatprep.subr.bf16.mxu0 %v1015
        %2109 = vmatpush1.bf16.msra.mxu0 %v1014
        %2110 = vmatprep.subr.bf16.mxu0 %v1017
        %2111 = vmatpush1.bf16.msra.mxu0 %v1016
        %2112 = vmatprep.mubr.bf16.mxu0 %v1985
        %2113 = vmatmul.mubr.bf16.gmra.mrb[0].mxu0 %v1984
        %v2114 = vpop.f32.mrb[0].mxu0
        %v2115 = vadd.f32 %v2074, %v2114
        %v2116 = vpop.f32.mrb[0].mxu0
        %v2117 = vadd.f32 %v2076, %v2116
        %v2118 = vpop.f32.mrb[0].mxu0
        %v2119 = vpop.f32.mrb[0].mxu0
        %2120 = vdwg.mxu0
        %2121 = vmatprep.subr.bf16.mxu0 %v1019
        %2122 = vmatpush1.bf16.msra.mxu0 %v1018
        %2123 = vmatprep.subr.bf16.mxu0 %v1021
        %2124 = vmatpush1.bf16.msra.mxu0 %v1020
        %2125 = vmatprep.subr.bf16.mxu0 %v1023
        %2126 = vmatpush1.bf16.msra.mxu0 %v1022
        %2127 = vmatprep.subr.bf16.mxu0 %v1025
        %2128 = vmatpush1.bf16.msra.mxu0 %v1024
        %2129 = vmatprep.subr.bf16.mxu0 %v1027
        %2130 = vmatpush1.bf16.msra.mxu0 %v1026
        %2131 = vmatprep.subr.bf16.mxu0 %v1029
        %2132 = vmatpush1.bf16.msra.mxu0 %v1028
        %2133 = vmatprep.subr.bf16.mxu0 %v1031
        %2134 = vmatpush1.bf16.msra.mxu0 %v1030
        %2135 = vmatprep.subr.bf16.mxu0 %v1033
        %2136 = vmatpush1.bf16.msra.mxu0 %v1032
        %2137 = vmatprep.subr.bf16.mxu0 %v1035
        %2138 = vmatpush1.bf16.msra.mxu0 %v1034
        %2139 = vmatprep.subr.bf16.mxu0 %v1037
        %2140 = vmatpush1.bf16.msra.mxu0 %v1036
        %2141 = vmatprep.subr.bf16.mxu0 %v1039
        %2142 = vmatpush1.bf16.msra.mxu0 %v1038
        %2143 = vmatprep.subr.bf16.mxu0 %v1041
        %2144 = vmatpush1.bf16.msra.mxu0 %v1040
        %2145 = vmatprep.subr.bf16.mxu0 %v1043
        %2146 = vmatpush1.bf16.msra.mxu0 %v1042
        %2147 = vmatprep.subr.bf16.mxu0 %v1045
        %2148 = vmatpush1.bf16.msra.mxu0 %v1044
        %2149 = vmatprep.subr.bf16.mxu0 %v1181
        %2150 = vmatpush1.bf16.msra.mxu0 %v1178
        %2151 = vmatprep.subr.bf16.mxu0 0
        %2152 = vmatpush1.bf16.msra.mxu0 0
        %2153 = vmatprep.mubr.bf16.mxu0 %v1996
        %2154 = vmatmul.mubr.bf16.gmra.mrb[0].mxu0 %v1986
        %v2155 = vpop.f32.mrb[0].mxu0
        %v2156 = vadd.f32 %v2115, %v2155
        %v2157 = vpop.f32.mrb[0].mxu0
        %v2158 = vadd.f32 %v2117, %v2157
        %v2159 = vpop.f32.mrb[0].mxu0
        %v2160 = vpop.f32.mrb[0].mxu0
        %2161 = vdwg.mxu0
        %2171 = vrot.lane.b32.xlu0 %v1916, 24
        %v2172 = vpop.permute.xlu0 %2171
        %2173 = vrot.lane.b32.xlu0 %v1917, 24
        %v2174 = vpop.permute.xlu0 %2173
        %2175 = vrot.lane.b32.xlu0 %v1918, 24
        %v2176 = vpop.permute.xlu0 %2175
        %2177 = vrot.lane.b32.xlu0 %v1919, 24
        %v2178 = vpop.permute.xlu0 %2177
        %2179 = vrot.lane.b32.xlu0 %v1920, 24
        %v2180 = vpop.permute.xlu0 %2179
        %2181 = vrot.lane.b32.xlu0 %v1921, 24
        %v2182 = vpop.permute.xlu0 %2181
        %2183 = vrot.lane.b32.xlu0 %v1922, 24
        %v2184 = vpop.permute.xlu0 %2183
        %2185 = vrot.lane.b32.xlu0 %v1923, 24
        %v2186 = vpop.permute.xlu0 %2185
        %2187 = vrot.lane.b32.xlu0 %v1924, 24
        %v2188 = vpop.permute.xlu0 %2187
        %v2189 = vsel %vm1979, %v2172, %v2174
        %v2190 = vsel %vm1979, %v2174, %v2176
        %v2191 = vsel %vm1979, %v2176, %v2178
        %v2192 = vsel %vm1979, %v2178, %v2180
        %v2193 = vsel %vm1979, %v2180, %v2182
        %v2194 = vsel %vm1979, %v2182, %v2184
        %v2195 = vsel %vm1979, %v2184, %v2186
        %v2196 = vsel %vm1979, %v2186, %v2188
        %v2205 = vsel %vm1172, %v2196, 0
        %2207 = vmatprep.subr.bf16.mxu0 %v923
        %2208 = vmatpush1.bf16.msra.mxu0 %v922
        %2209 = vmatprep.subr.bf16.mxu0 %v925
        %2210 = vmatpush1.bf16.msra.mxu0 %v924
        %2211 = vmatprep.subr.bf16.mxu0 %v927
        %2212 = vmatpush1.bf16.msra.mxu0 %v926
        %2213 = vmatprep.subr.bf16.mxu0 %v929
        %2214 = vmatpush1.bf16.msra.mxu0 %v928
        %2215 = vmatprep.subr.bf16.mxu0 %v931
        %2216 = vmatpush1.bf16.msra.mxu0 %v930
        %2217 = vmatprep.subr.bf16.mxu0 %v933
        %2218 = vmatpush1.bf16.msra.mxu0 %v932
        %2219 = vmatprep.subr.bf16.mxu0 %v935
        %2220 = vmatpush1.bf16.msra.mxu0 %v934
        %2221 = vmatprep.subr.bf16.mxu0 %v937
        %2222 = vmatpush1.bf16.msra.mxu0 %v936
        %2223 = vmatprep.subr.bf16.mxu0 %v939
        %2224 = vmatpush1.bf16.msra.mxu0 %v938
        %2225 = vmatprep.subr.bf16.mxu0 %v941
        %2226 = vmatpush1.bf16.msra.mxu0 %v940
        %2227 = vmatprep.subr.bf16.mxu0 %v943
        %2228 = vmatpush1.bf16.msra.mxu0 %v942
        %2229 = vmatprep.subr.bf16.mxu0 %v945
        %2230 = vmatpush1.bf16.msra.mxu0 %v944
        %2231 = vmatprep.subr.bf16.mxu0 %v947
        %2232 = vmatpush1.bf16.msra.mxu0 %v946
        %2233 = vmatprep.subr.bf16.mxu0 %v949
        %2234 = vmatpush1.bf16.msra.mxu0 %v948
        %2235 = vmatprep.subr.bf16.mxu0 %v951
        %2236 = vmatpush1.bf16.msra.mxu0 %v950
        %2237 = vmatprep.subr.bf16.mxu0 %v953
        %2238 = vmatpush1.bf16.msra.mxu0 %v952
        %2239 = vmatprep.mubr.bf16.mxu0 %v2190
        %2240 = vmatmul.mubr.bf16.gmra.mrb[0].mxu0 %v2189
        %v2241 = vpop.f32.mrb[0].mxu0
        %v2242 = vadd.f32 %v2156, %v2241
        %v2243 = vpop.f32.mrb[0].mxu0
        %v2244 = vadd.f32 %v2158, %v2243
        %v2245 = vpop.f32.mrb[0].mxu0
        %v2246 = vpop.f32.mrb[0].mxu0
        %2247 = vdwg.mxu0
        %2248 = vmatprep.subr.bf16.mxu0 %v955
        %2249 = vmatpush1.bf16.msra.mxu0 %v954
        %2250 = vmatprep.subr.bf16.mxu0 %v957
        %2251 = vmatpush1.bf16.msra.mxu0 %v956
        %2252 = vmatprep.subr.bf16.mxu0 %v959
        %2253 = vmatpush1.bf16.msra.mxu0 %v958
        %2254 = vmatprep.subr.bf16.mxu0 %v961
        %2255 = vmatpush1.bf16.msra.mxu0 %v960
        %2256 = vmatprep.subr.bf16.mxu0 %v963
        %2257 = vmatpush1.bf16.msra.mxu0 %v962
        %2258 = vmatprep.subr.bf16.mxu0 %v965
        %2259 = vmatpush1.bf16.msra.mxu0 %v964
        %2260 = vmatprep.subr.bf16.mxu0 %v967
        %2261 = vmatpush1.bf16.msra.mxu0 %v966
        %2262 = vmatprep.subr.bf16.mxu0 %v969
        %2263 = vmatpush1.bf16.msra.mxu0 %v968
        %2264 = vmatprep.subr.bf16.mxu0 %v971
        %2265 = vmatpush1.bf16.msra.mxu0 %v970
        %2266 = vmatprep.subr.bf16.mxu0 %v973
        %2267 = vmatpush1.bf16.msra.mxu0 %v972
        %2268 = vmatprep.subr.bf16.mxu0 %v975
        %2269 = vmatpush1.bf16.msra.mxu0 %v974
        %2270 = vmatprep.subr.bf16.mxu0 %v977
        %2271 = vmatpush1.bf16.msra.mxu0 %v976
        %2272 = vmatprep.subr.bf16.mxu0 %v979
        %2273 = vmatpush1.bf16.msra.mxu0 %v978
        %2274 = vmatprep.subr.bf16.mxu0 %v981
        %2275 = vmatpush1.bf16.msra.mxu0 %v980
        %2276 = vmatprep.subr.bf16.mxu0 %v983
        %2277 = vmatpush1.bf16.msra.mxu0 %v982
        %2278 = vmatprep.subr.bf16.mxu0 %v985
        %2279 = vmatpush1.bf16.msra.mxu0 %v984
        %2280 = vmatprep.mubr.bf16.mxu0 %v2192
        %2281 = vmatmul.mubr.bf16.gmra.mrb[0].mxu0 %v2191
        %v2282 = vpop.f32.mrb[0].mxu0
        %v2283 = vadd.f32 %v2242, %v2282
        %v2284 = vpop.f32.mrb[0].mxu0
        %v2285 = vadd.f32 %v2244, %v2284
        %v2286 = vpop.f32.mrb[0].mxu0
        %v2287 = vpop.f32.mrb[0].mxu0
        %2288 = vdwg.mxu0
        %2289 = vmatprep.subr.bf16.mxu0 %v987
        %2290 = vmatpush1.bf16.msra.mxu0 %v986
        %2291 = vmatprep.subr.bf16.mxu0 %v989
        %2292 = vmatpush1.bf16.msra.mxu0 %v988
        %2293 = vmatprep.subr.bf16.mxu0 %v991
        %2294 = vmatpush1.bf16.msra.mxu0 %v990
        %2295 = vmatprep.subr.bf16.mxu0 %v993
        %2296 = vmatpush1.bf16.msra.mxu0 %v992
        %2297 = vmatprep.subr.bf16.mxu0 %v995
        %2298 = vmatpush1.bf16.msra.mxu0 %v994
        %2299 = vmatprep.subr.bf16.mxu0 %v997
        %2300 = vmatpush1.bf16.msra.mxu0 %v996
        %2301 = vmatprep.subr.bf16.mxu0 %v999
        %2302 = vmatpush1.bf16.msra.mxu0 %v998
        %2303 = vmatprep.subr.bf16.mxu0 %v1001
        %2304 = vmatpush1.bf16.msra.mxu0 %v1000
        %2305 = vmatprep.subr.bf16.mxu0 %v1003
        %2306 = vmatpush1.bf16.msra.mxu0 %v1002
        %2307 = vmatprep.subr.bf16.mxu0 %v1005
        %2308 = vmatpush1.bf16.msra.mxu0 %v1004
        %2309 = vmatprep.subr.bf16.mxu0 %v1007
        %2310 = vmatpush1.bf16.msra.mxu0 %v1006
        %2311 = vmatprep.subr.bf16.mxu0 %v1009
        %2312 = vmatpush1.bf16.msra.mxu0 %v1008
        %2313 = vmatprep.subr.bf16.mxu0 %v1011
        %2314 = vmatpush1.bf16.msra.mxu0 %v1010
        %2315 = vmatprep.subr.bf16.mxu0 %v1013
        %2316 = vmatpush1.bf16.msra.mxu0 %v1012
        %2317 = vmatprep.subr.bf16.mxu0 %v1015
        %2318 = vmatpush1.bf16.msra.mxu0 %v1014
        %2319 = vmatprep.subr.bf16.mxu0 %v1017
        %2320 = vmatpush1.bf16.msra.mxu0 %v1016
        %2321 = vmatprep.mubr.bf16.mxu0 %v2194
        %2322 = vmatmul.mubr.bf16.gmra.mrb[0].mxu0 %v2193
        %v2323 = vpop.f32.mrb[0].mxu0
        %v2324 = vadd.f32 %v2283, %v2323
        %v2325 = vpop.f32.mrb[0].mxu0
        %v2326 = vadd.f32 %v2285, %v2325
        %v2327 = vpop.f32.mrb[0].mxu0
        %v2328 = vpop.f32.mrb[0].mxu0
        %2329 = vdwg.mxu0
        %2330 = vmatprep.subr.bf16.mxu0 %v1019
        %2331 = vmatpush1.bf16.msra.mxu0 %v1018
        %2332 = vmatprep.subr.bf16.mxu0 %v1021
        %2333 = vmatpush1.bf16.msra.mxu0 %v1020
        %2334 = vmatprep.subr.bf16.mxu0 %v1023
        %2335 = vmatpush1.bf16.msra.mxu0 %v1022
        %2336 = vmatprep.subr.bf16.mxu0 %v1025
        %2337 = vmatpush1.bf16.msra.mxu0 %v1024
        %2338 = vmatprep.subr.bf16.mxu0 %v1027
        %2339 = vmatpush1.bf16.msra.mxu0 %v1026
        %2340 = vmatprep.subr.bf16.mxu0 %v1029
        %2341 = vmatpush1.bf16.msra.mxu0 %v1028
        %2342 = vmatprep.subr.bf16.mxu0 %v1031
        %2343 = vmatpush1.bf16.msra.mxu0 %v1030
        %2344 = vmatprep.subr.bf16.mxu0 %v1033
        %2345 = vmatpush1.bf16.msra.mxu0 %v1032
        %2346 = vmatprep.subr.bf16.mxu0 %v1035
        %2347 = vmatpush1.bf16.msra.mxu0 %v1034
        %2348 = vmatprep.subr.bf16.mxu0 %v1037
        %2349 = vmatpush1.bf16.msra.mxu0 %v1036
        %2350 = vmatprep.subr.bf16.mxu0 %v1039
        %2351 = vmatpush1.bf16.msra.mxu0 %v1038
        %2352 = vmatprep.subr.bf16.mxu0 %v1041
        %2353 = vmatpush1.bf16.msra.mxu0 %v1040
        %2354 = vmatprep.subr.bf16.mxu0 %v1043
        %2355 = vmatpush1.bf16.msra.mxu0 %v1042
        %2356 = vmatprep.subr.bf16.mxu0 %v1045
        %2357 = vmatpush1.bf16.msra.mxu0 %v1044
        %2358 = vmatprep.subr.bf16.mxu0 %v1181
        %2359 = vmatpush1.bf16.msra.mxu0 %v1178
        %2360 = vmatprep.subr.bf16.mxu0 0
        %2361 = vmatpush1.bf16.msra.mxu0 0
        %2362 = vmatprep.mubr.bf16.mxu0 %v2205
        %2363 = vmatmul.mubr.bf16.gmra.mrb[0].mxu0 %v2195
        %v2364 = vpop.f32.mrb[0].mxu0
        %v2365 = vadd.f32 %v2324, %v2364
        %v2366 = vpop.f32.mrb[0].mxu0
        %v2367 = vadd.f32 %v2326, %v2366
        %v2368 = vpop.f32.mrb[0].mxu0
        %v2369 = vpop.f32.mrb[0].mxu0
        %2370 = vdwg.mxu0
        %v2371 = vunpack.c.l.bf16 %v1943
        %v2372 = vunpack.c.l.bf16 %v1944
        %v2373 = vunpack.c.l.bf16 %v1945
        %v2374 = vunpack.c.l.bf16 %v1946
        %v2375 = vunpack.c.l.bf16 %v1947
        %v2376 = vunpack.c.l.bf16 %v1948
        %v2377 = vunpack.c.l.bf16 %v1949
        %v2378 = vunpack.c.l.bf16 %v1950
        %v2379 = vunpack.c.l.bf16 %v1951
        %v2380 = vsub.f32 %v1934, %v2371
        %v2381 = vsub.f32 %v1935, %v2372
        %v2382 = vsub.f32 %v1936, %v2373
        %v2383 = vsub.f32 %v1937, %v2374
        %v2384 = vsub.f32 %v1938, %v2375
        %v2385 = vsub.f32 %v1939, %v2376
        %v2386 = vsub.f32 %v1940, %v2377
        %v2387 = vsub.f32 %v1941, %v2378
        %v2388 = vsub.f32 %v1942, %v2379
        %v2389 = vpack.c.bf16 %v2380, %v2380
        %v2390 = vpack.c.bf16 %v2381, %v2381
        %v2391 = vpack.c.bf16 %v2382, %v2382
        %v2392 = vpack.c.bf16 %v2383, %v2383
        %v2393 = vpack.c.bf16 %v2384, %v2384
        %v2394 = vpack.c.bf16 %v2385, %v2385
        %v2395 = vpack.c.bf16 %v2386, %v2386
        %v2396 = vpack.c.bf16 %v2387, %v2387
        %v2397 = vpack.c.bf16 %v2388, %v2388
        %2407 = vrot.lane.b32.xlu0 %v2389, 24
        %v2408 = vpop.permute.xlu0 %2407
        %2409 = vrot.lane.b32.xlu0 %v2390, 24
        %v2410 = vpop.permute.xlu0 %2409
        %2411 = vrot.lane.b32.xlu0 %v2391, 24
        %v2412 = vpop.permute.xlu0 %2411
        %2413 = vrot.lane.b32.xlu0 %v2392, 24
        %v2414 = vpop.permute.xlu0 %2413
        %2415 = vrot.lane.b32.xlu0 %v2393, 24
        %v2416 = vpop.permute.xlu0 %2415
        %2417 = vrot.lane.b32.xlu0 %v2394, 24
        %v2418 = vpop.permute.xlu0 %2417
        %2419 = vrot.lane.b32.xlu0 %v2395, 24
        %v2420 = vpop.permute.xlu0 %2419
        %2421 = vrot.lane.b32.xlu0 %v2396, 24
        %v2422 = vpop.permute.xlu0 %2421
        %2423 = vrot.lane.b32.xlu0 %v2397, 24
        %v2424 = vpop.permute.xlu0 %2423
        %v2425 = vsel %vm1979, %v2408, %v2410
        %v2426 = vsel %vm1979, %v2410, %v2412
        %v2427 = vsel %vm1979, %v2412, %v2414
        %v2428 = vsel %vm1979, %v2414, %v2416
        %v2429 = vsel %vm1979, %v2416, %v2418
        %v2430 = vsel %vm1979, %v2418, %v2420
        %v2431 = vsel %vm1979, %v2420, %v2422
        %v2432 = vsel %vm1979, %v2422, %v2424
        %v2441 = vsel %vm1172, %v2432, 0
        %2443 = vmatprep.subr.bf16.mxu0 %v923
        %2444 = vmatpush1.bf16.msra.mxu0 %v922
        %2445 = vmatprep.subr.bf16.mxu0 %v925
        %2446 = vmatpush1.bf16.msra.mxu0 %v924
        %2447 = vmatprep.subr.bf16.mxu0 %v927
        %2448 = vmatpush1.bf16.msra.mxu0 %v926
        %2449 = vmatprep.subr.bf16.mxu0 %v929
        %2450 = vmatpush1.bf16.msra.mxu0 %v928
        %2451 = vmatprep.subr.bf16.mxu0 %v931
        %2452 = vmatpush1.bf16.msra.mxu0 %v930
        %2453 = vmatprep.subr.bf16.mxu0 %v933
        %2454 = vmatpush1.bf16.msra.mxu0 %v932
        %2455 = vmatprep.subr.bf16.mxu0 %v935
        %2456 = vmatpush1.bf16.msra.mxu0 %v934
        %2457 = vmatprep.subr.bf16.mxu0 %v937
        %2458 = vmatpush1.bf16.msra.mxu0 %v936
        %2459 = vmatprep.subr.bf16.mxu0 %v939
        %2460 = vmatpush1.bf16.msra.mxu0 %v938
        %2461 = vmatprep.subr.bf16.mxu0 %v941
        %2462 = vmatpush1.bf16.msra.mxu0 %v940
        %2463 = vmatprep.subr.bf16.mxu0 %v943
        %2464 = vmatpush1.bf16.msra.mxu0 %v942
        %2465 = vmatprep.subr.bf16.mxu0 %v945
        %2466 = vmatpush1.bf16.msra.mxu0 %v944
        %2467 = vmatprep.subr.bf16.mxu0 %v947
        %2468 = vmatpush1.bf16.msra.mxu0 %v946
        %2469 = vmatprep.subr.bf16.mxu0 %v949
        %2470 = vmatpush1.bf16.msra.mxu0 %v948
        %2471 = vmatprep.subr.bf16.mxu0 %v951
        %2472 = vmatpush1.bf16.msra.mxu0 %v950
        %2473 = vmatprep.subr.bf16.mxu0 %v953
        %2474 = vmatpush1.bf16.msra.mxu0 %v952
        %2475 = vmatprep.mubr.bf16.mxu0 %v2426
        %2476 = vmatmul.mubr.bf16.gmra.mrb[0].mxu0 %v2425
        %v2477 = vpop.f32.mrb[0].mxu0
        %v2478 = vadd.f32 0.0, %v2477
        %v2479 = vpop.f32.mrb[0].mxu0
        %v2480 = vadd.f32 0.0, %v2479
        %v2481 = vpop.f32.mrb[0].mxu0
        %v2482 = vpop.f32.mrb[0].mxu0
        %2483 = vdwg.mxu0
        %2484 = vmatprep.subr.bf16.mxu0 %v955
        %2485 = vmatpush1.bf16.msra.mxu0 %v954
        %2486 = vmatprep.subr.bf16.mxu0 %v957
        %2487 = vmatpush1.bf16.msra.mxu0 %v956
        %2488 = vmatprep.subr.bf16.mxu0 %v959
        %2489 = vmatpush1.bf16.msra.mxu0 %v958
        %2490 = vmatprep.subr.bf16.mxu0 %v961
        %2491 = vmatpush1.bf16.msra.mxu0 %v960
        %2492 = vmatprep.subr.bf16.mxu0 %v963
        %2493 = vmatpush1.bf16.msra.mxu0 %v962
        %2494 = vmatprep.subr.bf16.mxu0 %v965
        %2495 = vmatpush1.bf16.msra.mxu0 %v964
        %2496 = vmatprep.subr.bf16.mxu0 %v967
        %2497 = vmatpush1.bf16.msra.mxu0 %v966
        %2498 = vmatprep.subr.bf16.mxu0 %v969
        %2499 = vmatpush1.bf16.msra.mxu0 %v968
        %2500 = vmatprep.subr.bf16.mxu0 %v971
        %2501 = vmatpush1.bf16.msra.mxu0 %v970
        %2502 = vmatprep.subr.bf16.mxu0 %v973
        %2503 = vmatpush1.bf16.msra.mxu0 %v972
        %2504 = vmatprep.subr.bf16.mxu0 %v975
        %2505 = vmatpush1.bf16.msra.mxu0 %v974
        %2506 = vmatprep.subr.bf16.mxu0 %v977
        %2507 = vmatpush1.bf16.msra.mxu0 %v976
        %2508 = vmatprep.subr.bf16.mxu0 %v979
        %2509 = vmatpush1.bf16.msra.mxu0 %v978
        %2510 = vmatprep.subr.bf16.mxu0 %v981
        %2511 = vmatpush1.bf16.msra.mxu0 %v980
        %2512 = vmatprep.subr.bf16.mxu0 %v983
        %2513 = vmatpush1.bf16.msra.mxu0 %v982
        %2514 = vmatprep.subr.bf16.mxu0 %v985
        %2515 = vmatpush1.bf16.msra.mxu0 %v984
        %2516 = vmatprep.mubr.bf16.mxu0 %v2428
        %2517 = vmatmul.mubr.bf16.gmra.mrb[0].mxu0 %v2427
        %v2518 = vpop.f32.mrb[0].mxu0
        %v2519 = vadd.f32 %v2478, %v2518
        %v2520 = vpop.f32.mrb[0].mxu0
        %v2521 = vadd.f32 %v2480, %v2520
        %v2522 = vpop.f32.mrb[0].mxu0
        %v2523 = vpop.f32.mrb[0].mxu0
        %2524 = vdwg.mxu0
        %2525 = vmatprep.subr.bf16.mxu0 %v987
        %2526 = vmatpush1.bf16.msra.mxu0 %v986
        %2527 = vmatprep.subr.bf16.mxu0 %v989
        %2528 = vmatpush1.bf16.msra.mxu0 %v988
        %2529 = vmatprep.subr.bf16.mxu0 %v991
        %2530 = vmatpush1.bf16.msra.mxu0 %v990
        %2531 = vmatprep.subr.bf16.mxu0 %v993
        %2532 = vmatpush1.bf16.msra.mxu0 %v992
        %2533 = vmatprep.subr.bf16.mxu0 %v995
        %2534 = vmatpush1.bf16.msra.mxu0 %v994
        %2535 = vmatprep.subr.bf16.mxu0 %v997
        %2536 = vmatpush1.bf16.msra.mxu0 %v996
        %2537 = vmatprep.subr.bf16.mxu0 %v999
        %2538 = vmatpush1.bf16.msra.mxu0 %v998
        %2539 = vmatprep.subr.bf16.mxu0 %v1001
        %2540 = vmatpush1.bf16.msra.mxu0 %v1000
        %2541 = vmatprep.subr.bf16.mxu0 %v1003
        %2542 = vmatpush1.bf16.msra.mxu0 %v1002
        %2543 = vmatprep.subr.bf16.mxu0 %v1005
        %2544 = vmatpush1.bf16.msra.mxu0 %v1004
        %2545 = vmatprep.subr.bf16.mxu0 %v1007
        %2546 = vmatpush1.bf16.msra.mxu0 %v1006
        %2547 = vmatprep.subr.bf16.mxu0 %v1009
        %2548 = vmatpush1.bf16.msra.mxu0 %v1008
        %2549 = vmatprep.subr.bf16.mxu0 %v1011
        %2550 = vmatpush1.bf16.msra.mxu0 %v1010
        %2551 = vmatprep.subr.bf16.mxu0 %v1013
        %2552 = vmatpush1.bf16.msra.mxu0 %v1012
        %2553 = vmatprep.subr.bf16.mxu0 %v1015
        %2554 = vmatpush1.bf16.msra.mxu0 %v1014
        %2555 = vmatprep.subr.bf16.mxu0 %v1017
        %2556 = vmatpush1.bf16.msra.mxu0 %v1016
        %2557 = vmatprep.mubr.bf16.mxu0 %v2430
        %2558 = vmatmul.mubr.bf16.gmra.mrb[0].mxu0 %v2429
        %v2559 = vpop.f32.mrb[0].mxu0
        %v2560 = vadd.f32 %v2519, %v2559
        %v2561 = vpop.f32.mrb[0].mxu0
        %v2562 = vadd.f32 %v2521, %v2561
        %v2563 = vpop.f32.mrb[0].mxu0
        %v2564 = vpop.f32.mrb[0].mxu0
        %2565 = vdwg.mxu0
        %2566 = vmatprep.subr.bf16.mxu0 %v1019
        %2567 = vmatpush1.bf16.msra.mxu0 %v1018
        %2568 = vmatprep.subr.bf16.mxu0 %v1021
        %2569 = vmatpush1.bf16.msra.mxu0 %v1020
        %2570 = vmatprep.subr.bf16.mxu0 %v1023
        %2571 = vmatpush1.bf16.msra.mxu0 %v1022
        %2572 = vmatprep.subr.bf16.mxu0 %v1025
        %2573 = vmatpush1.bf16.msra.mxu0 %v1024
        %2574 = vmatprep.subr.bf16.mxu0 %v1027
        %2575 = vmatpush1.bf16.msra.mxu0 %v1026
        %2576 = vmatprep.subr.bf16.mxu0 %v1029
        %2577 = vmatpush1.bf16.msra.mxu0 %v1028
        %2578 = vmatprep.subr.bf16.mxu0 %v1031
        %2579 = vmatpush1.bf16.msra.mxu0 %v1030
        %2580 = vmatprep.subr.bf16.mxu0 %v1033
        %2581 = vmatpush1.bf16.msra.mxu0 %v1032
        %2582 = vmatprep.subr.bf16.mxu0 %v1035
        %2583 = vmatpush1.bf16.msra.mxu0 %v1034
        %2584 = vmatprep.subr.bf16.mxu0 %v1037
        %2585 = vmatpush1.bf16.msra.mxu0 %v1036
        %2586 = vmatprep.subr.bf16.mxu0 %v1039
        %2587 = vmatpush1.bf16.msra.mxu0 %v1038
        %2588 = vmatprep.subr.bf16.mxu0 %v1041
        %2589 = vmatpush1.bf16.msra.mxu0 %v1040
        %2590 = vmatprep.subr.bf16.mxu0 %v1043
        %2591 = vmatpush1.bf16.msra.mxu0 %v1042
        %2592 = vmatprep.subr.bf16.mxu0 %v1045
        %2593 = vmatpush1.bf16.msra.mxu0 %v1044
        %2594 = vmatprep.subr.bf16.mxu0 %v1181
        %2595 = vmatpush1.bf16.msra.mxu0 %v1178
        %2596 = vmatprep.subr.bf16.mxu0 0
        %2597 = vmatpush1.bf16.msra.mxu0 0
        %2598 = vmatprep.mubr.bf16.mxu0 %v2441
        %2599 = vmatmul.mubr.bf16.gmra.mrb[0].mxu0 %v2431
        %v2600 = vpop.f32.mrb[0].mxu0
        %v2601 = vadd.f32 %v2560, %v2600
        %v2602 = vpop.f32.mrb[0].mxu0
        %v2603 = vadd.f32 %v2562, %v2602
        %v2604 = vpop.f32.mrb[0].mxu0
        %v2605 = vpop.f32.mrb[0].mxu0
        %2606 = vdwg.mxu0
        %v2607 = vadd.f32 %v2365, %v2601
        %v2608 = vadd.f32 %v2367, %v2603
        %2611 = vrot.lane.b32.xlu0 %v2607, 48
        %v2612 = vpop.permute.xlu0 %2611
        %2613 = vrot.lane.b32.xlu0 %v2608, 48
        %v2614 = vpop.permute.xlu0 %2613
        %v2615 = vsel %vm1720, %v2612, %v2614
        %vm2618 = vcmask 1047936
        %2619 = vst.msk [vmem:[%s183 + $0x48] sm:$0xff] %vm2618, %v2612
        %vm2620 = vcmask 982016
        %2621 = vst.msk [vmem:[%s183 + $0x50] sm:$0xff] %vm2620, %v2615
        %v2622 = vld [vmem:[%s194 + $0x78] sm:$0xff]
        %v2623 = vld [vmem:[%s194 + $0x80] sm:$0xff]
        %v2624 = vld [vmem:[%s194 + $0x88] sm:$0xff]
        %v2625 = vld [vmem:[%s194 + $0x90] sm:$0xff]
        %v2626 = vld [vmem:[%s194 + $0x98] sm:$0xff]
        %v2627 = vld [vmem:[%s194 + $0xa0] sm:$0xff]
        %v2628 = vld [vmem:[%s194 + $0xa8] sm:$0xff]
        %v2629 = vld [vmem:[%s194 + $0xb0] sm:$0xff]
        %v2630 = vld [vmem:[%s194 + $0xb8] sm:$0xff]
        %2640 = vrot.lane.b32.xlu0 %v2622, 127
        %v2641 = vpop.permute.xlu0 %2640
        %2642 = vrot.lane.b32.xlu0 %v2623, 127
        %v2643 = vpop.permute.xlu0 %2642
        %2644 = vrot.lane.b32.xlu0 %v2624, 127
        %v2645 = vpop.permute.xlu0 %2644
        %2646 = vrot.lane.b32.xlu0 %v2625, 127
        %v2647 = vpop.permute.xlu0 %2646
        %2648 = vrot.lane.b32.xlu0 %v2626, 127
        %v2649 = vpop.permute.xlu0 %2648
        %2650 = vrot.lane.b32.xlu0 %v2627, 127
        %v2651 = vpop.permute.xlu0 %2650
        %2652 = vrot.lane.b32.xlu0 %v2628, 127
        %v2653 = vpop.permute.xlu0 %2652
        %2654 = vrot.lane.b32.xlu0 %v2629, 127
        %v2655 = vpop.permute.xlu0 %2654
        %2656 = vrot.lane.b32.xlu0 %v2630, 127
        %v2657 = vpop.permute.xlu0 %2656
        %v2658 = vsel %vm371, %v2641, %v2643
        %v2659 = vsel %vm371, %v2643, %v2645
        %v2660 = vsel %vm371, %v2645, %v2647
        %v2661 = vsel %vm371, %v2647, %v2649
        %v2662 = vsel %vm371, %v2649, %v2651
        %v2663 = vsel %vm371, %v2651, %v2653
        %v2664 = vsel %vm371, %v2653, %v2655
        %v2665 = vsel %vm371, %v2655, %v2657
        %v2675 = vmax.f32 %v2622, %v2658
        %v2676 = vmax.f32 %v2623, %v2659
        %v2677 = vmax.f32 %v2624, %v2660
        %v2678 = vmax.f32 %v2625, %v2661
        %v2679 = vmax.f32 %v2626, %v2662
        %v2680 = vmax.f32 %v2627, %v2663
        %v2681 = vmax.f32 %v2628, %v2664
        %v2682 = vmax.f32 %v2629, %v2665
        %v2683 = vmax.f32 %v2630, %v2657
        %2684 = vrot.lane.b32.xlu0 %v2622, 126
        %v2685 = vpop.permute.xlu0 %2684
        %2686 = vrot.lane.b32.xlu0 %v2623, 126
        %v2687 = vpop.permute.xlu0 %2686
        %2688 = vrot.lane.b32.xlu0 %v2624, 126
        %v2689 = vpop.permute.xlu0 %2688
        %2690 = vrot.lane.b32.xlu0 %v2625, 126
        %v2691 = vpop.permute.xlu0 %2690
        %2692 = vrot.lane.b32.xlu0 %v2626, 126
        %v2693 = vpop.permute.xlu0 %2692
        %2694 = vrot.lane.b32.xlu0 %v2627, 126
        %v2695 = vpop.permute.xlu0 %2694
        %2696 = vrot.lane.b32.xlu0 %v2628, 126
        %v2697 = vpop.permute.xlu0 %2696
        %2698 = vrot.lane.b32.xlu0 %v2629, 126
        %v2699 = vpop.permute.xlu0 %2698
        %2700 = vrot.lane.b32.xlu0 %v2630, 126
        %v2701 = vpop.permute.xlu0 %2700
        %v2702 = vsel %vm411, %v2685, %v2687
        %v2703 = vsel %vm411, %v2687, %v2689
        %v2704 = vsel %vm411, %v2689, %v2691
        %v2705 = vsel %vm411, %v2691, %v2693
        %v2706 = vsel %vm411, %v2693, %v2695
        %v2707 = vsel %vm411, %v2695, %v2697
        %v2708 = vsel %vm411, %v2697, %v2699
        %v2709 = vsel %vm411, %v2699, %v2701
        %v2719 = vmax.f32 %v2675, %v2702
        %v2720 = vmax.f32 %v2676, %v2703
        %v2721 = vmax.f32 %v2677, %v2704
        %v2722 = vmax.f32 %v2678, %v2705
        %v2723 = vmax.f32 %v2679, %v2706
        %v2724 = vmax.f32 %v2680, %v2707
        %v2725 = vmax.f32 %v2681, %v2708
        %v2726 = vmax.f32 %v2682, %v2709
        %v2727 = vmax.f32 %v2683, %v2701
        %2728 = vrot.lane.b32.xlu0 %v2622, 125
        %v2729 = vpop.permute.xlu0 %2728
        %2730 = vrot.lane.b32.xlu0 %v2623, 125
        %v2731 = vpop.permute.xlu0 %2730
        %2732 = vrot.lane.b32.xlu0 %v2624, 125
        %v2733 = vpop.permute.xlu0 %2732
        %2734 = vrot.lane.b32.xlu0 %v2625, 125
        %v2735 = vpop.permute.xlu0 %2734
        %2736 = vrot.lane.b32.xlu0 %v2626, 125
        %v2737 = vpop.permute.xlu0 %2736
        %2738 = vrot.lane.b32.xlu0 %v2627, 125
        %v2739 = vpop.permute.xlu0 %2738
        %2740 = vrot.lane.b32.xlu0 %v2628, 125
        %v2741 = vpop.permute.xlu0 %2740
        %2742 = vrot.lane.b32.xlu0 %v2629, 125
        %v2743 = vpop.permute.xlu0 %2742
        %2744 = vrot.lane.b32.xlu0 %v2630, 125
        %v2745 = vpop.permute.xlu0 %2744
        %v2746 = vsel %vm451, %v2729, %v2731
        %v2747 = vsel %vm451, %v2731, %v2733
        %v2748 = vsel %vm451, %v2733, %v2735
        %v2749 = vsel %vm451, %v2735, %v2737
        %v2750 = vsel %vm451, %v2737, %v2739
        %v2751 = vsel %vm451, %v2739, %v2741
        %v2752 = vsel %vm451, %v2741, %v2743
        %v2753 = vsel %vm451, %v2743, %v2745
        %v2763 = vmax.f32 %v2719, %v2746
        %v2764 = vmax.f32 %v2720, %v2747
        %v2765 = vmax.f32 %v2721, %v2748
        %v2766 = vmax.f32 %v2722, %v2749
        %v2767 = vmax.f32 %v2723, %v2750
        %v2768 = vmax.f32 %v2724, %v2751
        %v2769 = vmax.f32 %v2725, %v2752
        %v2770 = vmax.f32 %v2726, %v2753
        %v2771 = vmax.f32 %v2727, %v2745
        %2772 = vrot.lane.b32.xlu0 %v2622, 124
        %v2773 = vpop.permute.xlu0 %2772
        %2774 = vrot.lane.b32.xlu0 %v2623, 124
        %v2775 = vpop.permute.xlu0 %2774
        %2776 = vrot.lane.b32.xlu0 %v2624, 124
        %v2777 = vpop.permute.xlu0 %2776
        %2778 = vrot.lane.b32.xlu0 %v2625, 124
        %v2779 = vpop.permute.xlu0 %2778
        %2780 = vrot.lane.b32.xlu0 %v2626, 124
        %v2781 = vpop.permute.xlu0 %2780
        %2782 = vrot.lane.b32.xlu0 %v2627, 124
        %v2783 = vpop.permute.xlu0 %2782
        %2784 = vrot.lane.b32.xlu0 %v2628, 124
        %v2785 = vpop.permute.xlu0 %2784
        %2786 = vrot.lane.b32.xlu0 %v2629, 124
        %v2787 = vpop.permute.xlu0 %2786
        %2788 = vrot.lane.b32.xlu0 %v2630, 124
        %v2789 = vpop.permute.xlu0 %2788
        %v2790 = vsel %vm491, %v2773, %v2775
        %v2791 = vsel %vm491, %v2775, %v2777
        %v2792 = vsel %vm491, %v2777, %v2779
        %v2793 = vsel %vm491, %v2779, %v2781
        %v2794 = vsel %vm491, %v2781, %v2783
        %v2795 = vsel %vm491, %v2783, %v2785
        %v2796 = vsel %vm491, %v2785, %v2787
        %v2797 = vsel %vm491, %v2787, %v2789
        %v2807 = vmax.f32 %v2763, %v2790
        %v2808 = vmax.f32 %v2764, %v2791
        %v2809 = vmax.f32 %v2765, %v2792
        %v2810 = vmax.f32 %v2766, %v2793
        %v2811 = vmax.f32 %v2767, %v2794
        %v2812 = vmax.f32 %v2768, %v2795
        %v2813 = vmax.f32 %v2769, %v2796
        %v2814 = vmax.f32 %v2770, %v2797
        %v2815 = vmax.f32 %v2771, %v2789
        %v2816 = vpack.c.bf16 %v2807, %v2807
        %v2817 = vpack.c.bf16 %v2808, %v2808
        %v2818 = vpack.c.bf16 %v2809, %v2809
        %v2819 = vpack.c.bf16 %v2810, %v2810
        %v2820 = vpack.c.bf16 %v2811, %v2811
        %v2821 = vpack.c.bf16 %v2812, %v2812
        %v2822 = vpack.c.bf16 %v2813, %v2813
        %v2823 = vpack.c.bf16 %v2814, %v2814
        %v2824 = vpack.c.bf16 %v2815, %v2815
        %v2825 = vunpack.c.l.bf16 %v2816
        %v2826 = vunpack.c.l.bf16 %v2817
        %v2827 = vunpack.c.l.bf16 %v2818
        %v2828 = vunpack.c.l.bf16 %v2819
        %v2829 = vunpack.c.l.bf16 %v2820
        %v2830 = vunpack.c.l.bf16 %v2821
        %v2831 = vunpack.c.l.bf16 %v2822
        %v2832 = vunpack.c.l.bf16 %v2823
        %v2833 = vunpack.c.l.bf16 %v2824
        %v2834 = vsub.f32 %v2807, %v2825
        %v2835 = vsub.f32 %v2808, %v2826
        %v2836 = vsub.f32 %v2809, %v2827
        %v2837 = vsub.f32 %v2810, %v2828
        %v2838 = vsub.f32 %v2811, %v2829
        %v2839 = vsub.f32 %v2812, %v2830
        %v2840 = vsub.f32 %v2813, %v2831
        %v2841 = vsub.f32 %v2814, %v2832
        %v2842 = vsub.f32 %v2815, %v2833
        %v2843 = vpack.c.bf16 %v2834, %v2834
        %v2844 = vpack.c.bf16 %v2835, %v2835
        %v2845 = vpack.c.bf16 %v2836, %v2836
        %v2846 = vpack.c.bf16 %v2837, %v2837
        %v2847 = vpack.c.bf16 %v2838, %v2838
        %v2848 = vpack.c.bf16 %v2839, %v2839
        %v2849 = vpack.c.bf16 %v2840, %v2840
        %v2850 = vpack.c.bf16 %v2841, %v2841
        %v2851 = vpack.c.bf16 %v2842, %v2842
        %2861 = vrot.lane.b32.xlu0 %v2843, 48
        %v2862 = vpop.permute.xlu0 %2861
        %2863 = vrot.lane.b32.xlu0 %v2844, 48
        %v2864 = vpop.permute.xlu0 %2863
        %2865 = vrot.lane.b32.xlu0 %v2845, 48
        %v2866 = vpop.permute.xlu0 %2865
        %2867 = vrot.lane.b32.xlu0 %v2846, 48
        %v2868 = vpop.permute.xlu0 %2867
        %2869 = vrot.lane.b32.xlu0 %v2847, 48
        %v2870 = vpop.permute.xlu0 %2869
        %2871 = vrot.lane.b32.xlu0 %v2848, 48
        %v2872 = vpop.permute.xlu0 %2871
        %2873 = vrot.lane.b32.xlu0 %v2849, 48
        %v2874 = vpop.permute.xlu0 %2873
        %2875 = vrot.lane.b32.xlu0 %v2850, 48
        %v2876 = vpop.permute.xlu0 %2875
        %2877 = vrot.lane.b32.xlu0 %v2851, 48
        %v2878 = vpop.permute.xlu0 %2877
        %vm2879 = vcmask 392192
        %v2880 = vsel %vm2879, %v2862, %v2864
        %v2881 = vsel %vm2879, %v2864, %v2866
        %v2882 = vsel %vm2879, %v2866, %v2868
        %v2883 = vsel %vm2879, %v2868, %v2870
        %v2884 = vsel %vm2879, %v2870, %v2872
        %v2885 = vsel %vm2879, %v2872, %v2874
        %v2886 = vsel %vm2879, %v2874, %v2876
        %v2887 = vsel %vm2879, %v2876, %v2878
        %v2896 = vsel %vm1172, %v2887, 0
        %2898 = vmatprep.subr.bf16.mxu0 %v923
        %2899 = vmatpush1.bf16.msra.mxu0 %v922
        %2900 = vmatprep.subr.bf16.mxu0 %v925
        %2901 = vmatpush1.bf16.msra.mxu0 %v924
        %2902 = vmatprep.subr.bf16.mxu0 %v927
        %2903 = vmatpush1.bf16.msra.mxu0 %v926
        %2904 = vmatprep.subr.bf16.mxu0 %v929
        %2905 = vmatpush1.bf16.msra.mxu0 %v928
        %2906 = vmatprep.subr.bf16.mxu0 %v931
        %2907 = vmatpush1.bf16.msra.mxu0 %v930
        %2908 = vmatprep.subr.bf16.mxu0 %v933
        %2909 = vmatpush1.bf16.msra.mxu0 %v932
        %2910 = vmatprep.subr.bf16.mxu0 %v935
        %2911 = vmatpush1.bf16.msra.mxu0 %v934
        %2912 = vmatprep.subr.bf16.mxu0 %v937
        %2913 = vmatpush1.bf16.msra.mxu0 %v936
        %2914 = vmatprep.subr.bf16.mxu0 %v939
        %2915 = vmatpush1.bf16.msra.mxu0 %v938
        %2916 = vmatprep.subr.bf16.mxu0 %v941
        %2917 = vmatpush1.bf16.msra.mxu0 %v940
        %2918 = vmatprep.subr.bf16.mxu0 %v943
        %2919 = vmatpush1.bf16.msra.mxu0 %v942
        %2920 = vmatprep.subr.bf16.mxu0 %v945
        %2921 = vmatpush1.bf16.msra.mxu0 %v944
        %2922 = vmatprep.subr.bf16.mxu0 %v947
        %2923 = vmatpush1.bf16.msra.mxu0 %v946
        %2924 = vmatprep.subr.bf16.mxu0 %v949
        %2925 = vmatpush1.bf16.msra.mxu0 %v948
        %2926 = vmatprep.subr.bf16.mxu0 %v951
        %2927 = vmatpush1.bf16.msra.mxu0 %v950
        %2928 = vmatprep.subr.bf16.mxu0 %v953
        %2929 = vmatpush1.bf16.msra.mxu0 %v952
        %2930 = vmatprep.mubr.bf16.mxu0 %v2881
        %2931 = vmatmul.mubr.bf16.gmra.mrb[0].mxu0 %v2880
        %v2932 = vpop.f32.mrb[0].mxu0
        %v2933 = vadd.f32 0.0, %v2932
        %v2934 = vpop.f32.mrb[0].mxu0
        %v2935 = vadd.f32 0.0, %v2934
        %v2936 = vpop.f32.mrb[0].mxu0
        %v2937 = vpop.f32.mrb[0].mxu0
        %2938 = vdwg.mxu0
        %2939 = vmatprep.subr.bf16.mxu0 %v955
        %2940 = vmatpush1.bf16.msra.mxu0 %v954
        %2941 = vmatprep.subr.bf16.mxu0 %v957
        %2942 = vmatpush1.bf16.msra.mxu0 %v956
        %2943 = vmatprep.subr.bf16.mxu0 %v959
        %2944 = vmatpush1.bf16.msra.mxu0 %v958
        %2945 = vmatprep.subr.bf16.mxu0 %v961
        %2946 = vmatpush1.bf16.msra.mxu0 %v960
        %2947 = vmatprep.subr.bf16.mxu0 %v963
        %2948 = vmatpush1.bf16.msra.mxu0 %v962
        %2949 = vmatprep.subr.bf16.mxu0 %v965
        %2950 = vmatpush1.bf16.msra.mxu0 %v964
        %2951 = vmatprep.subr.bf16.mxu0 %v967
        %2952 = vmatpush1.bf16.msra.mxu0 %v966
        %2953 = vmatprep.subr.bf16.mxu0 %v969
        %2954 = vmatpush1.bf16.msra.mxu0 %v968
        %2955 = vmatprep.subr.bf16.mxu0 %v971
        %2956 = vmatpush1.bf16.msra.mxu0 %v970
        %2957 = vmatprep.subr.bf16.mxu0 %v973
        %2958 = vmatpush1.bf16.msra.mxu0 %v972
        %2959 = vmatprep.subr.bf16.mxu0 %v975
        %2960 = vmatpush1.bf16.msra.mxu0 %v974
        %2961 = vmatprep.subr.bf16.mxu0 %v977
        %2962 = vmatpush1.bf16.msra.mxu0 %v976
        %2963 = vmatprep.subr.bf16.mxu0 %v979
        %2964 = vmatpush1.bf16.msra.mxu0 %v978
        %2965 = vmatprep.subr.bf16.mxu0 %v981
        %2966 = vmatpush1.bf16.msra.mxu0 %v980
        %2967 = vmatprep.subr.bf16.mxu0 %v983
        %2968 = vmatpush1.bf16.msra.mxu0 %v982
        %2969 = vmatprep.subr.bf16.mxu0 %v985
        %2970 = vmatpush1.bf16.msra.mxu0 %v984
        %2971 = vmatprep.mubr.bf16.mxu0 %v2883
        %2972 = vmatmul.mubr.bf16.gmra.mrb[0].mxu0 %v2882
        %v2973 = vpop.f32.mrb[0].mxu0
        %v2974 = vadd.f32 %v2933, %v2973
        %v2975 = vpop.f32.mrb[0].mxu0
        %v2976 = vadd.f32 %v2935, %v2975
        %v2977 = vpop.f32.mrb[0].mxu0
        %v2978 = vpop.f32.mrb[0].mxu0
        %2979 = vdwg.mxu0
        %2980 = vmatprep.subr.bf16.mxu0 %v987
        %2981 = vmatpush1.bf16.msra.mxu0 %v986
        %2982 = vmatprep.subr.bf16.mxu0 %v989
        %2983 = vmatpush1.bf16.msra.mxu0 %v988
        %2984 = vmatprep.subr.bf16.mxu0 %v991
        %2985 = vmatpush1.bf16.msra.mxu0 %v990
        %2986 = vmatprep.subr.bf16.mxu0 %v993
        %2987 = vmatpush1.bf16.msra.mxu0 %v992
        %2988 = vmatprep.subr.bf16.mxu0 %v995
        %2989 = vmatpush1.bf16.msra.mxu0 %v994
        %2990 = vmatprep.subr.bf16.mxu0 %v997
        %2991 = vmatpush1.bf16.msra.mxu0 %v996
        %2992 = vmatprep.subr.bf16.mxu0 %v999
        %2993 = vmatpush1.bf16.msra.mxu0 %v998
        %2994 = vmatprep.subr.bf16.mxu0 %v1001
        %2995 = vmatpush1.bf16.msra.mxu0 %v1000
        %2996 = vmatprep.subr.bf16.mxu0 %v1003
        %2997 = vmatpush1.bf16.msra.mxu0 %v1002
        %2998 = vmatprep.subr.bf16.mxu0 %v1005
        %2999 = vmatpush1.bf16.msra.mxu0 %v1004
        %3000 = vmatprep.subr.bf16.mxu0 %v1007
        %3001 = vmatpush1.bf16.msra.mxu0 %v1006
        %3002 = vmatprep.subr.bf16.mxu0 %v1009
        %3003 = vmatpush1.bf16.msra.mxu0 %v1008
        %3004 = vmatprep.subr.bf16.mxu0 %v1011
        %3005 = vmatpush1.bf16.msra.mxu0 %v1010
        %3006 = vmatprep.subr.bf16.mxu0 %v1013
        %3007 = vmatpush1.bf16.msra.mxu0 %v1012
        %3008 = vmatprep.subr.bf16.mxu0 %v1015
        %3009 = vmatpush1.bf16.msra.mxu0 %v1014
        %3010 = vmatprep.subr.bf16.mxu0 %v1017
        %3011 = vmatpush1.bf16.msra.mxu0 %v1016
        %3012 = vmatprep.mubr.bf16.mxu0 %v2885
        %3013 = vmatmul.mubr.bf16.gmra.mrb[0].mxu0 %v2884
        %v3014 = vpop.f32.mrb[0].mxu0
        %v3015 = vadd.f32 %v2974, %v3014
        %v3016 = vpop.f32.mrb[0].mxu0
        %v3017 = vadd.f32 %v2976, %v3016
        %v3018 = vpop.f32.mrb[0].mxu0
        %v3019 = vpop.f32.mrb[0].mxu0
        %3020 = vdwg.mxu0
        %3021 = vmatprep.subr.bf16.mxu0 %v1019
        %3022 = vmatpush1.bf16.msra.mxu0 %v1018
        %3023 = vmatprep.subr.bf16.mxu0 %v1021
        %3024 = vmatpush1.bf16.msra.mxu0 %v1020
        %3025 = vmatprep.subr.bf16.mxu0 %v1023
        %3026 = vmatpush1.bf16.msra.mxu0 %v1022
        %3027 = vmatprep.subr.bf16.mxu0 %v1025
        %3028 = vmatpush1.bf16.msra.mxu0 %v1024
        %3029 = vmatprep.subr.bf16.mxu0 %v1027
        %3030 = vmatpush1.bf16.msra.mxu0 %v1026
        %3031 = vmatprep.subr.bf16.mxu0 %v1029
        %3032 = vmatpush1.bf16.msra.mxu0 %v1028
        %3033 = vmatprep.subr.bf16.mxu0 %v1031
        %3034 = vmatpush1.bf16.msra.mxu0 %v1030
        %3035 = vmatprep.subr.bf16.mxu0 %v1033
        %3036 = vmatpush1.bf16.msra.mxu0 %v1032
        %3037 = vmatprep.subr.bf16.mxu0 %v1035
        %3038 = vmatpush1.bf16.msra.mxu0 %v1034
        %3039 = vmatprep.subr.bf16.mxu0 %v1037
        %3040 = vmatpush1.bf16.msra.mxu0 %v1036
        %3041 = vmatprep.subr.bf16.mxu0 %v1039
        %3042 = vmatpush1.bf16.msra.mxu0 %v1038
        %3043 = vmatprep.subr.bf16.mxu0 %v1041
        %3044 = vmatpush1.bf16.msra.mxu0 %v1040
        %3045 = vmatprep.subr.bf16.mxu0 %v1043
        %3046 = vmatpush1.bf16.msra.mxu0 %v1042
        %3047 = vmatprep.subr.bf16.mxu0 %v1045
        %3048 = vmatpush1.bf16.msra.mxu0 %v1044
        %3049 = vmatprep.subr.bf16.mxu0 %v1181
        %3050 = vmatpush1.bf16.msra.mxu0 %v1178
        %3051 = vmatprep.subr.bf16.mxu0 0
        %3052 = vmatpush1.bf16.msra.mxu0 0
        %3053 = vmatprep.mubr.bf16.mxu0 %v2896
        %3054 = vmatmul.mubr.bf16.gmra.mrb[0].mxu0 %v2886
        %v3055 = vpop.f32.mrb[0].mxu0
        %v3056 = vadd.f32 %v3015, %v3055
        %v3057 = vpop.f32.mrb[0].mxu0
        %v3058 = vadd.f32 %v3017, %v3057
        %v3059 = vpop.f32.mrb[0].mxu0
        %v3060 = vpop.f32.mrb[0].mxu0
        %3061 = vdwg.mxu0
        %3071 = vrot.lane.b32.xlu0 %v2816, 48
        %v3072 = vpop.permute.xlu0 %3071
        %3073 = vrot.lane.b32.xlu0 %v2817, 48
        %v3074 = vpop.permute.xlu0 %3073
        %3075 = vrot.lane.b32.xlu0 %v2818, 48
        %v3076 = vpop.permute.xlu0 %3075
        %3077 = vrot.lane.b32.xlu0 %v2819, 48
        %v3078 = vpop.permute.xlu0 %3077
        %3079 = vrot.lane.b32.xlu0 %v2820, 48
        %v3080 = vpop.permute.xlu0 %3079
        %3081 = vrot.lane.b32.xlu0 %v2821, 48
        %v3082 = vpop.permute.xlu0 %3081
        %3083 = vrot.lane.b32.xlu0 %v2822, 48
        %v3084 = vpop.permute.xlu0 %3083
        %3085 = vrot.lane.b32.xlu0 %v2823, 48
        %v3086 = vpop.permute.xlu0 %3085
        %3087 = vrot.lane.b32.xlu0 %v2824, 48
        %v3088 = vpop.permute.xlu0 %3087
        %v3089 = vsel %vm2879, %v3072, %v3074
        %v3090 = vsel %vm2879, %v3074, %v3076
        %v3091 = vsel %vm2879, %v3076, %v3078
        %v3092 = vsel %vm2879, %v3078, %v3080
        %v3093 = vsel %vm2879, %v3080, %v3082
        %v3094 = vsel %vm2879, %v3082, %v3084
        %v3095 = vsel %vm2879, %v3084, %v3086
        %v3096 = vsel %vm2879, %v3086, %v3088
        %v3105 = vsel %vm1172, %v3096, 0
        %3107 = vmatprep.subr.bf16.mxu0 %v923
        %3108 = vmatpush1.bf16.msra.mxu0 %v922
        %3109 = vmatprep.subr.bf16.mxu0 %v925
        %3110 = vmatpush1.bf16.msra.mxu0 %v924
        %3111 = vmatprep.subr.bf16.mxu0 %v927
        %3112 = vmatpush1.bf16.msra.mxu0 %v926
        %3113 = vmatprep.subr.bf16.mxu0 %v929
        %3114 = vmatpush1.bf16.msra.mxu0 %v928
        %3115 = vmatprep.subr.bf16.mxu0 %v931
        %3116 = vmatpush1.bf16.msra.mxu0 %v930
        %3117 = vmatprep.subr.bf16.mxu0 %v933
        %3118 = vmatpush1.bf16.msra.mxu0 %v932
        %3119 = vmatprep.subr.bf16.mxu0 %v935
        %3120 = vmatpush1.bf16.msra.mxu0 %v934
        %3121 = vmatprep.subr.bf16.mxu0 %v937
        %3122 = vmatpush1.bf16.msra.mxu0 %v936
        %3123 = vmatprep.subr.bf16.mxu0 %v939
        %3124 = vmatpush1.bf16.msra.mxu0 %v938
        %3125 = vmatprep.subr.bf16.mxu0 %v941
        %3126 = vmatpush1.bf16.msra.mxu0 %v940
        %3127 = vmatprep.subr.bf16.mxu0 %v943
        %3128 = vmatpush1.bf16.msra.mxu0 %v942
        %3129 = vmatprep.subr.bf16.mxu0 %v945
        %3130 = vmatpush1.bf16.msra.mxu0 %v944
        %3131 = vmatprep.subr.bf16.mxu0 %v947
        %3132 = vmatpush1.bf16.msra.mxu0 %v946
        %3133 = vmatprep.subr.bf16.mxu0 %v949
        %3134 = vmatpush1.bf16.msra.mxu0 %v948
        %3135 = vmatprep.subr.bf16.mxu0 %v951
        %3136 = vmatpush1.bf16.msra.mxu0 %v950
        %3137 = vmatprep.subr.bf16.mxu0 %v953
        %3138 = vmatpush1.bf16.msra.mxu0 %v952
        %3139 = vmatprep.mubr.bf16.mxu0 %v3090
        %3140 = vmatmul.mubr.bf16.gmra.mrb[0].mxu0 %v3089
        %v3141 = vpop.f32.mrb[0].mxu0
        %v3142 = vadd.f32 %v3056, %v3141
        %v3143 = vpop.f32.mrb[0].mxu0
        %v3144 = vadd.f32 %v3058, %v3143
        %v3145 = vpop.f32.mrb[0].mxu0
        %v3146 = vpop.f32.mrb[0].mxu0
        %3147 = vdwg.mxu0
        %3148 = vmatprep.subr.bf16.mxu0 %v955
        %3149 = vmatpush1.bf16.msra.mxu0 %v954
        %3150 = vmatprep.subr.bf16.mxu0 %v957
        %3151 = vmatpush1.bf16.msra.mxu0 %v956
        %3152 = vmatprep.subr.bf16.mxu0 %v959
        %3153 = vmatpush1.bf16.msra.mxu0 %v958
        %3154 = vmatprep.subr.bf16.mxu0 %v961
        %3155 = vmatpush1.bf16.msra.mxu0 %v960
        %3156 = vmatprep.subr.bf16.mxu0 %v963
        %3157 = vmatpush1.bf16.msra.mxu0 %v962
        %3158 = vmatprep.subr.bf16.mxu0 %v965
        %3159 = vmatpush1.bf16.msra.mxu0 %v964
        %3160 = vmatprep.subr.bf16.mxu0 %v967
        %3161 = vmatpush1.bf16.msra.mxu0 %v966
        %3162 = vmatprep.subr.bf16.mxu0 %v969
        %3163 = vmatpush1.bf16.msra.mxu0 %v968
        %3164 = vmatprep.subr.bf16.mxu0 %v971
        %3165 = vmatpush1.bf16.msra.mxu0 %v970
        %3166 = vmatprep.subr.bf16.mxu0 %v973
        %3167 = vmatpush1.bf16.msra.mxu0 %v972
        %3168 = vmatprep.subr.bf16.mxu0 %v975
        %3169 = vmatpush1.bf16.msra.mxu0 %v974
        %3170 = vmatprep.subr.bf16.mxu0 %v977
        %3171 = vmatpush1.bf16.msra.mxu0 %v976
        %3172 = vmatprep.subr.bf16.mxu0 %v979
        %3173 = vmatpush1.bf16.msra.mxu0 %v978
        %3174 = vmatprep.subr.bf16.mxu0 %v981
        %3175 = vmatpush1.bf16.msra.mxu0 %v980
        %3176 = vmatprep.subr.bf16.mxu0 %v983
        %3177 = vmatpush1.bf16.msra.mxu0 %v982
        %3178 = vmatprep.subr.bf16.mxu0 %v985
        %3179 = vmatpush1.bf16.msra.mxu0 %v984
        %3180 = vmatprep.mubr.bf16.mxu0 %v3092
        %3181 = vmatmul.mubr.bf16.gmra.mrb[0].mxu0 %v3091
        %v3182 = vpop.f32.mrb[0].mxu0
        %v3183 = vadd.f32 %v3142, %v3182
        %v3184 = vpop.f32.mrb[0].mxu0
        %v3185 = vadd.f32 %v3144, %v3184
        %v3186 = vpop.f32.mrb[0].mxu0
        %v3187 = vpop.f32.mrb[0].mxu0
        %3188 = vdwg.mxu0
        %3189 = vmatprep.subr.bf16.mxu0 %v987
        %3190 = vmatpush1.bf16.msra.mxu0 %v986
        %3191 = vmatprep.subr.bf16.mxu0 %v989
        %3192 = vmatpush1.bf16.msra.mxu0 %v988
        %3193 = vmatprep.subr.bf16.mxu0 %v991
        %3194 = vmatpush1.bf16.msra.mxu0 %v990
        %3195 = vmatprep.subr.bf16.mxu0 %v993
        %3196 = vmatpush1.bf16.msra.mxu0 %v992
        %3197 = vmatprep.subr.bf16.mxu0 %v995
        %3198 = vmatpush1.bf16.msra.mxu0 %v994
        %3199 = vmatprep.subr.bf16.mxu0 %v997
        %3200 = vmatpush1.bf16.msra.mxu0 %v996
        %3201 = vmatprep.subr.bf16.mxu0 %v999
        %3202 = vmatpush1.bf16.msra.mxu0 %v998
        %3203 = vmatprep.subr.bf16.mxu0 %v1001
        %3204 = vmatpush1.bf16.msra.mxu0 %v1000
        %3205 = vmatprep.subr.bf16.mxu0 %v1003
        %3206 = vmatpush1.bf16.msra.mxu0 %v1002
        %3207 = vmatprep.subr.bf16.mxu0 %v1005
        %3208 = vmatpush1.bf16.msra.mxu0 %v1004
        %3209 = vmatprep.subr.bf16.mxu0 %v1007
        %3210 = vmatpush1.bf16.msra.mxu0 %v1006
        %3211 = vmatprep.subr.bf16.mxu0 %v1009
        %3212 = vmatpush1.bf16.msra.mxu0 %v1008
        %3213 = vmatprep.subr.bf16.mxu0 %v1011
        %3214 = vmatpush1.bf16.msra.mxu0 %v1010
        %3215 = vmatprep.subr.bf16.mxu0 %v1013
        %3216 = vmatpush1.bf16.msra.mxu0 %v1012
        %3217 = vmatprep.subr.bf16.mxu0 %v1015
        %3218 = vmatpush1.bf16.msra.mxu0 %v1014
        %3219 = vmatprep.subr.bf16.mxu0 %v1017
        %3220 = vmatpush1.bf16.msra.mxu0 %v1016
        %3221 = vmatprep.mubr.bf16.mxu0 %v3094
        %3222 = vmatmul.mubr.bf16.gmra.mrb[0].mxu0 %v3093
        %v3223 = vpop.f32.mrb[0].mxu0
        %v3224 = vadd.f32 %v3183, %v3223
        %v3225 = vpop.f32.mrb[0].mxu0
        %v3226 = vadd.f32 %v3185, %v3225
        %v3227 = vpop.f32.mrb[0].mxu0
        %v3228 = vpop.f32.mrb[0].mxu0
        %3229 = vdwg.mxu0
        %3230 = vmatprep.subr.bf16.mxu0 %v1019
        %3231 = vmatpush1.bf16.msra.mxu0 %v1018
        %3232 = vmatprep.subr.bf16.mxu0 %v1021
        %3233 = vmatpush1.bf16.msra.mxu0 %v1020
        %3234 = vmatprep.subr.bf16.mxu0 %v1023
        %3235 = vmatpush1.bf16.msra.mxu0 %v1022
        %3236 = vmatprep.subr.bf16.mxu0 %v1025
        %3237 = vmatpush1.bf16.msra.mxu0 %v1024
        %3238 = vmatprep.subr.bf16.mxu0 %v1027
        %3239 = vmatpush1.bf16.msra.mxu0 %v1026
        %3240 = vmatprep.subr.bf16.mxu0 %v1029
        %3241 = vmatpush1.bf16.msra.mxu0 %v1028
        %3242 = vmatprep.subr.bf16.mxu0 %v1031
        %3243 = vmatpush1.bf16.msra.mxu0 %v1030
        %3244 = vmatprep.subr.bf16.mxu0 %v1033
        %3245 = vmatpush1.bf16.msra.mxu0 %v1032
        %3246 = vmatprep.subr.bf16.mxu0 %v1035
        %3247 = vmatpush1.bf16.msra.mxu0 %v1034
        %3248 = vmatprep.subr.bf16.mxu0 %v1037
        %3249 = vmatpush1.bf16.msra.mxu0 %v1036
        %3250 = vmatprep.subr.bf16.mxu0 %v1039
        %3251 = vmatpush1.bf16.msra.mxu0 %v1038
        %3252 = vmatprep.subr.bf16.mxu0 %v1041
        %3253 = vmatpush1.bf16.msra.mxu0 %v1040
        %3254 = vmatprep.subr.bf16.mxu0 %v1043
        %3255 = vmatpush1.bf16.msra.mxu0 %v1042
        %3256 = vmatprep.subr.bf16.mxu0 %v1045
        %3257 = vmatpush1.bf16.msra.mxu0 %v1044
        %3258 = vmatprep.subr.bf16.mxu0 %v1181
        %3259 = vmatpush1.bf16.msra.mxu0 %v1178
        %3260 = vmatprep.subr.bf16.mxu0 0
        %3261 = vmatpush1.bf16.msra.mxu0 0
        %3262 = vmatprep.mubr.bf16.mxu0 %v3105
        %3263 = vmatmul.mubr.bf16.gmra.mrb[0].mxu0 %v3095
        %v3264 = vpop.f32.mrb[0].mxu0
        %v3265 = vadd.f32 %v3224, %v3264
        %v3266 = vpop.f32.mrb[0].mxu0
        %v3267 = vadd.f32 %v3226, %v3266
        %v3268 = vpop.f32.mrb[0].mxu0
        %v3269 = vpop.f32.mrb[0].mxu0
        %3270 = vdwg.mxu0
        %v3271 = vunpack.c.l.bf16 %v2843
        %v3272 = vunpack.c.l.bf16 %v2844
        %v3273 = vunpack.c.l.bf16 %v2845
        %v3274 = vunpack.c.l.bf16 %v2846
        %v3275 = vunpack.c.l.bf16 %v2847
        %v3276 = vunpack.c.l.bf16 %v2848
        %v3277 = vunpack.c.l.bf16 %v2849
        %v3278 = vunpack.c.l.bf16 %v2850
        %v3279 = vunpack.c.l.bf16 %v2851
        %v3280 = vsub.f32 %v2834, %v3271
        %v3281 = vsub.f32 %v2835, %v3272
        %v3282 = vsub.f32 %v2836, %v3273
        %v3283 = vsub.f32 %v2837, %v3274
        %v3284 = vsub.f32 %v2838, %v3275
        %v3285 = vsub.f32 %v2839, %v3276
        %v3286 = vsub.f32 %v2840, %v3277
        %v3287 = vsub.f32 %v2841, %v3278
        %v3288 = vsub.f32 %v2842, %v3279
        %v3289 = vpack.c.bf16 %v3280, %v3280
        %v3290 = vpack.c.bf16 %v3281, %v3281
        %v3291 = vpack.c.bf16 %v3282, %v3282
        %v3292 = vpack.c.bf16 %v3283, %v3283
        %v3293 = vpack.c.bf16 %v3284, %v3284
        %v3294 = vpack.c.bf16 %v3285, %v3285
        %v3295 = vpack.c.bf16 %v3286, %v3286
        %v3296 = vpack.c.bf16 %v3287, %v3287
        %v3297 = vpack.c.bf16 %v3288, %v3288
        %3307 = vrot.lane.b32.xlu0 %v3289, 48
        %v3308 = vpop.permute.xlu0 %3307
        %3309 = vrot.lane.b32.xlu0 %v3290, 48
        %v3310 = vpop.permute.xlu0 %3309
        %3311 = vrot.lane.b32.xlu0 %v3291, 48
        %v3312 = vpop.permute.xlu0 %3311
        %3313 = vrot.lane.b32.xlu0 %v3292, 48
        %v3314 = vpop.permute.xlu0 %3313
        %3315 = vrot.lane.b32.xlu0 %v3293, 48
        %v3316 = vpop.permute.xlu0 %3315
        %3317 = vrot.lane.b32.xlu0 %v3294, 48
        %v3318 = vpop.permute.xlu0 %3317
        %3319 = vrot.lane.b32.xlu0 %v3295, 48
        %v3320 = vpop.permute.xlu0 %3319
        %3321 = vrot.lane.b32.xlu0 %v3296, 48
        %v3322 = vpop.permute.xlu0 %3321
        %3323 = vrot.lane.b32.xlu0 %v3297, 48
        %v3324 = vpop.permute.xlu0 %3323
        %v3325 = vsel %vm2879, %v3308, %v3310
        %v3326 = vsel %vm2879, %v3310, %v3312
        %v3327 = vsel %vm2879, %v3312, %v3314
        %v3328 = vsel %vm2879, %v3314, %v3316
        %v3329 = vsel %vm2879, %v3316, %v3318
        %v3330 = vsel %vm2879, %v3318, %v3320
        %v3331 = vsel %vm2879, %v3320, %v3322
        %v3332 = vsel %vm2879, %v3322, %v3324
        %v3341 = vsel %vm1172, %v3332, 0
        %3343 = vmatprep.subr.bf16.mxu0 %v923
        %3344 = vmatpush1.bf16.msra.mxu0 %v922
        %3345 = vmatprep.subr.bf16.mxu0 %v925
        %3346 = vmatpush1.bf16.msra.mxu0 %v924
        %3347 = vmatprep.subr.bf16.mxu0 %v927
        %3348 = vmatpush1.bf16.msra.mxu0 %v926
        %3349 = vmatprep.subr.bf16.mxu0 %v929
        %3350 = vmatpush1.bf16.msra.mxu0 %v928
        %3351 = vmatprep.subr.bf16.mxu0 %v931
        %3352 = vmatpush1.bf16.msra.mxu0 %v930
        %3353 = vmatprep.subr.bf16.mxu0 %v933
        %3354 = vmatpush1.bf16.msra.mxu0 %v932
        %3355 = vmatprep.subr.bf16.mxu0 %v935
        %3356 = vmatpush1.bf16.msra.mxu0 %v934
        %3357 = vmatprep.subr.bf16.mxu0 %v937
        %3358 = vmatpush1.bf16.msra.mxu0 %v936
        %3359 = vmatprep.subr.bf16.mxu0 %v939
        %3360 = vmatpush1.bf16.msra.mxu0 %v938
        %3361 = vmatprep.subr.bf16.mxu0 %v941
        %3362 = vmatpush1.bf16.msra.mxu0 %v940
        %3363 = vmatprep.subr.bf16.mxu0 %v943
        %3364 = vmatpush1.bf16.msra.mxu0 %v942
        %3365 = vmatprep.subr.bf16.mxu0 %v945
        %3366 = vmatpush1.bf16.msra.mxu0 %v944
        %3367 = vmatprep.subr.bf16.mxu0 %v947
        %3368 = vmatpush1.bf16.msra.mxu0 %v946
        %3369 = vmatprep.subr.bf16.mxu0 %v949
        %3370 = vmatpush1.bf16.msra.mxu0 %v948
        %3371 = vmatprep.subr.bf16.mxu0 %v951
        %3372 = vmatpush1.bf16.msra.mxu0 %v950
        %3373 = vmatprep.subr.bf16.mxu0 %v953
        %3374 = vmatpush1.bf16.msra.mxu0 %v952
        %3375 = vmatprep.mubr.bf16.mxu0 %v3326
        %3376 = vmatmul.mubr.bf16.gmra.mrb[0].mxu0 %v3325
        %v3377 = vpop.f32.mrb[0].mxu0
        %v3378 = vadd.f32 0.0, %v3377
        %v3379 = vpop.f32.mrb[0].mxu0
        %v3380 = vadd.f32 0.0, %v3379
        %v3381 = vpop.f32.mrb[0].mxu0
        %v3382 = vpop.f32.mrb[0].mxu0
        %3383 = vdwg.mxu0
        %3384 = vmatprep.subr.bf16.mxu0 %v955
        %3385 = vmatpush1.bf16.msra.mxu0 %v954
        %3386 = vmatprep.subr.bf16.mxu0 %v957
        %3387 = vmatpush1.bf16.msra.mxu0 %v956
        %3388 = vmatprep.subr.bf16.mxu0 %v959
        %3389 = vmatpush1.bf16.msra.mxu0 %v958
        %3390 = vmatprep.subr.bf16.mxu0 %v961
        %3391 = vmatpush1.bf16.msra.mxu0 %v960
        %3392 = vmatprep.subr.bf16.mxu0 %v963
        %3393 = vmatpush1.bf16.msra.mxu0 %v962
        %3394 = vmatprep.subr.bf16.mxu0 %v965
        %3395 = vmatpush1.bf16.msra.mxu0 %v964
        %3396 = vmatprep.subr.bf16.mxu0 %v967
        %3397 = vmatpush1.bf16.msra.mxu0 %v966
        %3398 = vmatprep.subr.bf16.mxu0 %v969
        %3399 = vmatpush1.bf16.msra.mxu0 %v968
        %3400 = vmatprep.subr.bf16.mxu0 %v971
        %3401 = vmatpush1.bf16.msra.mxu0 %v970
        %3402 = vmatprep.subr.bf16.mxu0 %v973
        %3403 = vmatpush1.bf16.msra.mxu0 %v972
        %3404 = vmatprep.subr.bf16.mxu0 %v975
        %3405 = vmatpush1.bf16.msra.mxu0 %v974
        %3406 = vmatprep.subr.bf16.mxu0 %v977
        %3407 = vmatpush1.bf16.msra.mxu0 %v976
        %3408 = vmatprep.subr.bf16.mxu0 %v979
        %3409 = vmatpush1.bf16.msra.mxu0 %v978
        %3410 = vmatprep.subr.bf16.mxu0 %v981
        %3411 = vmatpush1.bf16.msra.mxu0 %v980
        %3412 = vmatprep.subr.bf16.mxu0 %v983
        %3413 = vmatpush1.bf16.msra.mxu0 %v982
        %3414 = vmatprep.subr.bf16.mxu0 %v985
        %3415 = vmatpush1.bf16.msra.mxu0 %v984
        %3416 = vmatprep.mubr.bf16.mxu0 %v3328
        %3417 = vmatmul.mubr.bf16.gmra.mrb[0].mxu0 %v3327
        %v3418 = vpop.f32.mrb[0].mxu0
        %v3419 = vadd.f32 %v3378, %v3418
        %v3420 = vpop.f32.mrb[0].mxu0
        %v3421 = vadd.f32 %v3380, %v3420
        %v3422 = vpop.f32.mrb[0].mxu0
        %v3423 = vpop.f32.mrb[0].mxu0
        %3424 = vdwg.mxu0
        %3425 = vmatprep.subr.bf16.mxu0 %v987
        %3426 = vmatpush1.bf16.msra.mxu0 %v986
        %3427 = vmatprep.subr.bf16.mxu0 %v989
        %3428 = vmatpush1.bf16.msra.mxu0 %v988
        %3429 = vmatprep.subr.bf16.mxu0 %v991
        %3430 = vmatpush1.bf16.msra.mxu0 %v990
        %3431 = vmatprep.subr.bf16.mxu0 %v993
        %3432 = vmatpush1.bf16.msra.mxu0 %v992
        %3433 = vmatprep.subr.bf16.mxu0 %v995
        %3434 = vmatpush1.bf16.msra.mxu0 %v994
        %3435 = vmatprep.subr.bf16.mxu0 %v997
        %3436 = vmatpush1.bf16.msra.mxu0 %v996
        %3437 = vmatprep.subr.bf16.mxu0 %v999
        %3438 = vmatpush1.bf16.msra.mxu0 %v998
        %3439 = vmatprep.subr.bf16.mxu0 %v1001
        %3440 = vmatpush1.bf16.msra.mxu0 %v1000
        %3441 = vmatprep.subr.bf16.mxu0 %v1003
        %3442 = vmatpush1.bf16.msra.mxu0 %v1002
        %3443 = vmatprep.subr.bf16.mxu0 %v1005
        %3444 = vmatpush1.bf16.msra.mxu0 %v1004
        %3445 = vmatprep.subr.bf16.mxu0 %v1007
        %3446 = vmatpush1.bf16.msra.mxu0 %v1006
        %3447 = vmatprep.subr.bf16.mxu0 %v1009
        %3448 = vmatpush1.bf16.msra.mxu0 %v1008
        %3449 = vmatprep.subr.bf16.mxu0 %v1011
        %3450 = vmatpush1.bf16.msra.mxu0 %v1010
        %3451 = vmatprep.subr.bf16.mxu0 %v1013
        %3452 = vmatpush1.bf16.msra.mxu0 %v1012
        %3453 = vmatprep.subr.bf16.mxu0 %v1015
        %3454 = vmatpush1.bf16.msra.mxu0 %v1014
        %3455 = vmatprep.subr.bf16.mxu0 %v1017
        %3456 = vmatpush1.bf16.msra.mxu0 %v1016
        %3457 = vmatprep.mubr.bf16.mxu0 %v3330
        %3458 = vmatmul.mubr.bf16.gmra.mrb[0].mxu0 %v3329
        %v3459 = vpop.f32.mrb[0].mxu0
        %v3460 = vadd.f32 %v3419, %v3459
        %v3461 = vpop.f32.mrb[0].mxu0
        %v3462 = vadd.f32 %v3421, %v3461
        %v3463 = vpop.f32.mrb[0].mxu0
        %v3464 = vpop.f32.mrb[0].mxu0
        %3465 = vdwg.mxu0
        %3466 = vmatprep.subr.bf16.mxu0 %v1019
        %3467 = vmatpush1.bf16.msra.mxu0 %v1018
        %3468 = vmatprep.subr.bf16.mxu0 %v1021
        %3469 = vmatpush1.bf16.msra.mxu0 %v1020
        %3470 = vmatprep.subr.bf16.mxu0 %v1023
        %3471 = vmatpush1.bf16.msra.mxu0 %v1022
        %3472 = vmatprep.subr.bf16.mxu0 %v1025
        %3473 = vmatpush1.bf16.msra.mxu0 %v1024
        %3474 = vmatprep.subr.bf16.mxu0 %v1027
        %3475 = vmatpush1.bf16.msra.mxu0 %v1026
        %3476 = vmatprep.subr.bf16.mxu0 %v1029
        %3477 = vmatpush1.bf16.msra.mxu0 %v1028
        %3478 = vmatprep.subr.bf16.mxu0 %v1031
        %3479 = vmatpush1.bf16.msra.mxu0 %v1030
        %3480 = vmatprep.subr.bf16.mxu0 %v1033
        %3481 = vmatpush1.bf16.msra.mxu0 %v1032
        %3482 = vmatprep.subr.bf16.mxu0 %v1035
        %3483 = vmatpush1.bf16.msra.mxu0 %v1034
        %3484 = vmatprep.subr.bf16.mxu0 %v1037
        %3485 = vmatpush1.bf16.msra.mxu0 %v1036
        %3486 = vmatprep.subr.bf16.mxu0 %v1039
        %3487 = vmatpush1.bf16.msra.mxu0 %v1038
        %3488 = vmatprep.subr.bf16.mxu0 %v1041
        %3489 = vmatpush1.bf16.msra.mxu0 %v1040
        %3490 = vmatprep.subr.bf16.mxu0 %v1043
        %3491 = vmatpush1.bf16.msra.mxu0 %v1042
        %3492 = vmatprep.subr.bf16.mxu0 %v1045
        %3493 = vmatpush1.bf16.msra.mxu0 %v1044
        %3494 = vmatprep.subr.bf16.mxu0 %v1181
        %3495 = vmatpush1.bf16.msra.mxu0 %v1178
        %3496 = vmatprep.subr.bf16.mxu0 0
        %3497 = vmatpush1.bf16.msra.mxu0 0
        %3498 = vmatprep.mubr.bf16.mxu0 %v3341
        %3499 = vmatmul.mubr.bf16.gmra.mrb[0].mxu0 %v3331
        %v3500 = vpop.f32.mrb[0].mxu0
        %v3501 = vadd.f32 %v3460, %v3500
        %v3502 = vpop.f32.mrb[0].mxu0
        %v3503 = vadd.f32 %v3462, %v3502
        %v3504 = vpop.f32.mrb[0].mxu0
        %v3505 = vpop.f32.mrb[0].mxu0
        %3506 = vdwg.mxu0
        %v3507 = vadd.f32 %v3265, %v3501
        %v3508 = vadd.f32 %v3267, %v3503
        %3511 = vrot.lane.b32.xlu0 %v3507, 120
        %v3512 = vpop.permute.xlu0 %3511
        %3513 = vrot.lane.b32.xlu0 %v3508, 120
        %v3514 = vpop.permute.xlu0 %3513
        %v3515 = vsel %vm2620, %v3512, %v3514
        %vm3519 = vcmask 1048512
        %3520 = vst.msk [vmem:[%s183 + $0x50] sm:$0xff] %vm3519, %v3512
        %3521 = vst [vmem:[%s183 + $0x58] sm:$0xff] %v3515
        %vm3522 = vcmask 523264
        %3523 = vst.msk [vmem:[%s183 + $0x60] sm:$0xff] %vm3522, %v3514
        %v3524 = vld [vmem:[%s194 + $0xb8] sm:$0xff]
        %v3525 = vld [vmem:[%s194 + $0xc0] sm:$0xff]
        %v3526 = vld [vmem:[%s194 + $0xc8] sm:$0xff]
        %v3527 = vld [vmem:[%s194 + $0xd0] sm:$0xff]
        %v3528 = vld [vmem:[%s194 + $0xd8] sm:$0xff]
        %v3529 = vld [vmem:[%s194 + $0xe0] sm:$0xff]
        %v3530 = vld [vmem:[%s194 + $0xe8] sm:$0xff]
        %v3531 = vld [vmem:[%s194 + $0xf0] sm:$0xff]
        %v3532 = vld [vmem:[%s194 + $0xf8] sm:$0xff]
        %3542 = vrot.lane.b32.xlu0 %v3524, 127
        %v3543 = vpop.permute.xlu0 %3542
        %3544 = vrot.lane.b32.xlu0 %v3525, 127
        %v3545 = vpop.permute.xlu0 %3544
        %3546 = vrot.lane.b32.xlu0 %v3526, 127
        %v3547 = vpop.permute.xlu0 %3546
        %3548 = vrot.lane.b32.xlu0 %v3527, 127
        %v3549 = vpop.permute.xlu0 %3548
        %3550 = vrot.lane.b32.xlu0 %v3528, 127
        %v3551 = vpop.permute.xlu0 %3550
        %3552 = vrot.lane.b32.xlu0 %v3529, 127
        %v3553 = vpop.permute.xlu0 %3552
        %3554 = vrot.lane.b32.xlu0 %v3530, 127
        %v3555 = vpop.permute.xlu0 %3554
        %3556 = vrot.lane.b32.xlu0 %v3531, 127
        %v3557 = vpop.permute.xlu0 %3556
        %3558 = vrot.lane.b32.xlu0 %v3532, 127
        %v3559 = vpop.permute.xlu0 %3558
        %v3560 = vsel %vm371, %v3543, %v3545
        %v3561 = vsel %vm371, %v3545, %v3547
        %v3562 = vsel %vm371, %v3547, %v3549
        %v3563 = vsel %vm371, %v3549, %v3551
        %v3564 = vsel %vm371, %v3551, %v3553
        %v3565 = vsel %vm371, %v3553, %v3555
        %v3566 = vsel %vm371, %v3555, %v3557
        %v3567 = vsel %vm371, %v3557, %v3559
        %v3577 = vmax.f32 %v3524, %v3560
        %v3578 = vmax.f32 %v3525, %v3561
        %v3579 = vmax.f32 %v3526, %v3562
        %v3580 = vmax.f32 %v3527, %v3563
        %v3581 = vmax.f32 %v3528, %v3564
        %v3582 = vmax.f32 %v3529, %v3565
        %v3583 = vmax.f32 %v3530, %v3566
        %v3584 = vmax.f32 %v3531, %v3567
        %v3585 = vmax.f32 %v3532, %v3559
        %3586 = vrot.lane.b32.xlu0 %v3524, 126
        %v3587 = vpop.permute.xlu0 %3586
        %3588 = vrot.lane.b32.xlu0 %v3525, 126
        %v3589 = vpop.permute.xlu0 %3588
        %3590 = vrot.lane.b32.xlu0 %v3526, 126
        %v3591 = vpop.permute.xlu0 %3590
        %3592 = vrot.lane.b32.xlu0 %v3527, 126
        %v3593 = vpop.permute.xlu0 %3592
        %3594 = vrot.lane.b32.xlu0 %v3528, 126
        %v3595 = vpop.permute.xlu0 %3594
        %3596 = vrot.lane.b32.xlu0 %v3529, 126
        %v3597 = vpop.permute.xlu0 %3596
        %3598 = vrot.lane.b32.xlu0 %v3530, 126
        %v3599 = vpop.permute.xlu0 %3598
        %3600 = vrot.lane.b32.xlu0 %v3531, 126
        %v3601 = vpop.permute.xlu0 %3600
        %3602 = vrot.lane.b32.xlu0 %v3532, 126
        %v3603 = vpop.permute.xlu0 %3602
        %v3604 = vsel %vm411, %v3587, %v3589
        %v3605 = vsel %vm411, %v3589, %v3591
        %v3606 = vsel %vm411, %v3591, %v3593
        %v3607 = vsel %vm411, %v3593, %v3595
        %v3608 = vsel %vm411, %v3595, %v3597
        %v3609 = vsel %vm411, %v3597, %v3599
        %v3610 = vsel %vm411, %v3599, %v3601
        %v3611 = vsel %vm411, %v3601, %v3603
        %v3621 = vmax.f32 %v3577, %v3604
        %v3622 = vmax.f32 %v3578, %v3605
        %v3623 = vmax.f32 %v3579, %v3606
        %v3624 = vmax.f32 %v3580, %v3607
        %v3625 = vmax.f32 %v3581, %v3608
        %v3626 = vmax.f32 %v3582, %v3609
        %v3627 = vmax.f32 %v3583, %v3610
        %v3628 = vmax.f32 %v3584, %v3611
        %v3629 = vmax.f32 %v3585, %v3603
        %3630 = vrot.lane.b32.xlu0 %v3524, 125
        %v3631 = vpop.permute.xlu0 %3630
        %3632 = vrot.lane.b32.xlu0 %v3525, 125
        %v3633 = vpop.permute.xlu0 %3632
        %3634 = vrot.lane.b32.xlu0 %v3526, 125
        %v3635 = vpop.permute.xlu0 %3634
        %3636 = vrot.lane.b32.xlu0 %v3527, 125
        %v3637 = vpop.permute.xlu0 %3636
        %3638 = vrot.lane.b32.xlu0 %v3528, 125
        %v3639 = vpop.permute.xlu0 %3638
        %3640 = vrot.lane.b32.xlu0 %v3529, 125
        %v3641 = vpop.permute.xlu0 %3640
        %3642 = vrot.lane.b32.xlu0 %v3530, 125
        %v3643 = vpop.permute.xlu0 %3642
        %3644 = vrot.lane.b32.xlu0 %v3531, 125
        %v3645 = vpop.permute.xlu0 %3644
        %3646 = vrot.lane.b32.xlu0 %v3532, 125
        %v3647 = vpop.permute.xlu0 %3646
        %v3648 = vsel %vm451, %v3631, %v3633
        %v3649 = vsel %vm451, %v3633, %v3635
        %v3650 = vsel %vm451, %v3635, %v3637
        %v3651 = vsel %vm451, %v3637, %v3639
        %v3652 = vsel %vm451, %v3639, %v3641
        %v3653 = vsel %vm451, %v3641, %v3643
        %v3654 = vsel %vm451, %v3643, %v3645
        %v3655 = vsel %vm451, %v3645, %v3647
        %v3665 = vmax.f32 %v3621, %v3648
        %v3666 = vmax.f32 %v3622, %v3649
        %v3667 = vmax.f32 %v3623, %v3650
        %v3668 = vmax.f32 %v3624, %v3651
        %v3669 = vmax.f32 %v3625, %v3652
        %v3670 = vmax.f32 %v3626, %v3653
        %v3671 = vmax.f32 %v3627, %v3654
        %v3672 = vmax.f32 %v3628, %v3655
        %v3673 = vmax.f32 %v3629, %v3647
        %3674 = vrot.lane.b32.xlu0 %v3524, 124
        %v3675 = vpop.permute.xlu0 %3674
        %3676 = vrot.lane.b32.xlu0 %v3525, 124
        %v3677 = vpop.permute.xlu0 %3676
        %3678 = vrot.lane.b32.xlu0 %v3526, 124
        %v3679 = vpop.permute.xlu0 %3678
        %3680 = vrot.lane.b32.xlu0 %v3527, 124
        %v3681 = vpop.permute.xlu0 %3680
        %3682 = vrot.lane.b32.xlu0 %v3528, 124
        %v3683 = vpop.permute.xlu0 %3682
        %3684 = vrot.lane.b32.xlu0 %v3529, 124
        %v3685 = vpop.permute.xlu0 %3684
        %3686 = vrot.lane.b32.xlu0 %v3530, 124
        %v3687 = vpop.permute.xlu0 %3686
        %3688 = vrot.lane.b32.xlu0 %v3531, 124
        %v3689 = vpop.permute.xlu0 %3688
        %3690 = vrot.lane.b32.xlu0 %v3532, 124
        %v3691 = vpop.permute.xlu0 %3690
        %v3692 = vsel %vm491, %v3675, %v3677
        %v3693 = vsel %vm491, %v3677, %v3679
        %v3694 = vsel %vm491, %v3679, %v3681
        %v3695 = vsel %vm491, %v3681, %v3683
        %v3696 = vsel %vm491, %v3683, %v3685
        %v3697 = vsel %vm491, %v3685, %v3687
        %v3698 = vsel %vm491, %v3687, %v3689
        %v3699 = vsel %vm491, %v3689, %v3691
        %v3709 = vmax.f32 %v3665, %v3692
        %v3710 = vmax.f32 %v3666, %v3693
        %v3711 = vmax.f32 %v3667, %v3694
        %v3712 = vmax.f32 %v3668, %v3695
        %v3713 = vmax.f32 %v3669, %v3696
        %v3714 = vmax.f32 %v3670, %v3697
        %v3715 = vmax.f32 %v3671, %v3698
        %v3716 = vmax.f32 %v3672, %v3699
        %v3717 = vmax.f32 %v3673, %v3691
        %v3718 = vpack.c.bf16 %v3709, %v3709
        %v3719 = vpack.c.bf16 %v3710, %v3710
        %v3720 = vpack.c.bf16 %v3711, %v3711
        %v3721 = vpack.c.bf16 %v3712, %v3712
        %v3722 = vpack.c.bf16 %v3713, %v3713
        %v3723 = vpack.c.bf16 %v3714, %v3714
        %v3724 = vpack.c.bf16 %v3715, %v3715
        %v3725 = vpack.c.bf16 %v3716, %v3716
        %v3726 = vpack.c.bf16 %v3717, %v3717
        %v3727 = vunpack.c.l.bf16 %v3718
        %v3728 = vunpack.c.l.bf16 %v3719
        %v3729 = vunpack.c.l.bf16 %v3720
        %v3730 = vunpack.c.l.bf16 %v3721
        %v3731 = vunpack.c.l.bf16 %v3722
        %v3732 = vunpack.c.l.bf16 %v3723
        %v3733 = vunpack.c.l.bf16 %v3724
        %v3734 = vunpack.c.l.bf16 %v3725
        %v3735 = vunpack.c.l.bf16 %v3726
        %v3736 = vsub.f32 %v3709, %v3727
        %v3737 = vsub.f32 %v3710, %v3728
        %v3738 = vsub.f32 %v3711, %v3729
        %v3739 = vsub.f32 %v3712, %v3730
        %v3740 = vsub.f32 %v3713, %v3731
        %v3741 = vsub.f32 %v3714, %v3732
        %v3742 = vsub.f32 %v3715, %v3733
        %v3743 = vsub.f32 %v3716, %v3734
        %v3744 = vsub.f32 %v3717, %v3735
        %v3745 = vpack.c.bf16 %v3736, %v3736
        %v3746 = vpack.c.bf16 %v3737, %v3737
        %v3747 = vpack.c.bf16 %v3738, %v3738
        %v3748 = vpack.c.bf16 %v3739, %v3739
        %v3749 = vpack.c.bf16 %v3740, %v3740
        %v3750 = vpack.c.bf16 %v3741, %v3741
        %v3751 = vpack.c.bf16 %v3742, %v3742
        %v3752 = vpack.c.bf16 %v3743, %v3743
        %v3753 = vpack.c.bf16 %v3744, %v3744
        %3763 = vrot.lane.b32.xlu0 %v3745, 72
        %v3764 = vpop.permute.xlu0 %3763
        %3765 = vrot.lane.b32.xlu0 %v3746, 72
        %v3766 = vpop.permute.xlu0 %3765
        %3767 = vrot.lane.b32.xlu0 %v3747, 72
        %v3768 = vpop.permute.xlu0 %3767
        %3769 = vrot.lane.b32.xlu0 %v3748, 72
        %v3770 = vpop.permute.xlu0 %3769
        %3771 = vrot.lane.b32.xlu0 %v3749, 72
        %v3772 = vpop.permute.xlu0 %3771
        %3773 = vrot.lane.b32.xlu0 %v3750, 72
        %v3774 = vpop.permute.xlu0 %3773
        %3775 = vrot.lane.b32.xlu0 %v3751, 72
        %v3776 = vpop.permute.xlu0 %3775
        %3777 = vrot.lane.b32.xlu0 %v3752, 72
        %v3778 = vpop.permute.xlu0 %3777
        %3779 = vrot.lane.b32.xlu0 %v3753, 72
        %v3780 = vpop.permute.xlu0 %3779
        %vm3781 = vcmask 588800
        %v3782 = vsel %vm3781, %v3764, %v3766
        %v3783 = vsel %vm3781, %v3766, %v3768
        %v3784 = vsel %vm3781, %v3768, %v3770
        %v3785 = vsel %vm3781, %v3770, %v3772
        %v3786 = vsel %vm3781, %v3772, %v3774
        %v3787 = vsel %vm3781, %v3774, %v3776
        %v3788 = vsel %vm3781, %v3776, %v3778
        %v3789 = vsel %vm3781, %v3778, %v3780
        %v3798 = vsel %vm1172, %v3789, 0
        %3800 = vmatprep.subr.bf16.mxu0 %v923
        %3801 = vmatpush1.bf16.msra.mxu0 %v922
        %3802 = vmatprep.subr.bf16.mxu0 %v925
        %3803 = vmatpush1.bf16.msra.mxu0 %v924
        %3804 = vmatprep.subr.bf16.mxu0 %v927
        %3805 = vmatpush1.bf16.msra.mxu0 %v926
        %3806 = vmatprep.subr.bf16.mxu0 %v929
        %3807 = vmatpush1.bf16.msra.mxu0 %v928
        %3808 = vmatprep.subr.bf16.mxu0 %v931
        %3809 = vmatpush1.bf16.msra.mxu0 %v930
        %3810 = vmatprep.subr.bf16.mxu0 %v933
        %3811 = vmatpush1.bf16.msra.mxu0 %v932
        %3812 = vmatprep.subr.bf16.mxu0 %v935
        %3813 = vmatpush1.bf16.msra.mxu0 %v934
        %3814 = vmatprep.subr.bf16.mxu0 %v937
        %3815 = vmatpush1.bf16.msra.mxu0 %v936
        %3816 = vmatprep.subr.bf16.mxu0 %v939
        %3817 = vmatpush1.bf16.msra.mxu0 %v938
        %3818 = vmatprep.subr.bf16.mxu0 %v941
        %3819 = vmatpush1.bf16.msra.mxu0 %v940
        %3820 = vmatprep.subr.bf16.mxu0 %v943
        %3821 = vmatpush1.bf16.msra.mxu0 %v942
        %3822 = vmatprep.subr.bf16.mxu0 %v945
        %3823 = vmatpush1.bf16.msra.mxu0 %v944
        %3824 = vmatprep.subr.bf16.mxu0 %v947
        %3825 = vmatpush1.bf16.msra.mxu0 %v946
        %3826 = vmatprep.subr.bf16.mxu0 %v949
        %3827 = vmatpush1.bf16.msra.mxu0 %v948
        %3828 = vmatprep.subr.bf16.mxu0 %v951
        %3829 = vmatpush1.bf16.msra.mxu0 %v950
        %3830 = vmatprep.subr.bf16.mxu0 %v953
        %3831 = vmatpush1.bf16.msra.mxu0 %v952
        %3832 = vmatprep.mubr.bf16.mxu0 %v3783
        %3833 = vmatmul.mubr.bf16.gmra.mrb[0].mxu0 %v3782
        %v3834 = vpop.f32.mrb[0].mxu0
        %v3835 = vadd.f32 0.0, %v3834
        %v3836 = vpop.f32.mrb[0].mxu0
        %v3837 = vadd.f32 0.0, %v3836
        %v3838 = vpop.f32.mrb[0].mxu0
        %v3839 = vpop.f32.mrb[0].mxu0
        %3840 = vdwg.mxu0
        %3841 = vmatprep.subr.bf16.mxu0 %v955
        %3842 = vmatpush1.bf16.msra.mxu0 %v954
        %3843 = vmatprep.subr.bf16.mxu0 %v957
        %3844 = vmatpush1.bf16.msra.mxu0 %v956
        %3845 = vmatprep.subr.bf16.mxu0 %v959
        %3846 = vmatpush1.bf16.msra.mxu0 %v958
        %3847 = vmatprep.subr.bf16.mxu0 %v961
        %3848 = vmatpush1.bf16.msra.mxu0 %v960
        %3849 = vmatprep.subr.bf16.mxu0 %v963
        %3850 = vmatpush1.bf16.msra.mxu0 %v962
        %3851 = vmatprep.subr.bf16.mxu0 %v965
        %3852 = vmatpush1.bf16.msra.mxu0 %v964
        %3853 = vmatprep.subr.bf16.mxu0 %v967
        %3854 = vmatpush1.bf16.msra.mxu0 %v966
        %3855 = vmatprep.subr.bf16.mxu0 %v969
        %3856 = vmatpush1.bf16.msra.mxu0 %v968
        %3857 = vmatprep.subr.bf16.mxu0 %v971
        %3858 = vmatpush1.bf16.msra.mxu0 %v970
        %3859 = vmatprep.subr.bf16.mxu0 %v973
        %3860 = vmatpush1.bf16.msra.mxu0 %v972
        %3861 = vmatprep.subr.bf16.mxu0 %v975
        %3862 = vmatpush1.bf16.msra.mxu0 %v974
        %3863 = vmatprep.subr.bf16.mxu0 %v977
        %3864 = vmatpush1.bf16.msra.mxu0 %v976
        %3865 = vmatprep.subr.bf16.mxu0 %v979
        %3866 = vmatpush1.bf16.msra.mxu0 %v978
        %3867 = vmatprep.subr.bf16.mxu0 %v981
        %3868 = vmatpush1.bf16.msra.mxu0 %v980
        %3869 = vmatprep.subr.bf16.mxu0 %v983
        %3870 = vmatpush1.bf16.msra.mxu0 %v982
        %3871 = vmatprep.subr.bf16.mxu0 %v985
        %3872 = vmatpush1.bf16.msra.mxu0 %v984
        %3873 = vmatprep.mubr.bf16.mxu0 %v3785
        %3874 = vmatmul.mubr.bf16.gmra.mrb[0].mxu0 %v3784
        %v3875 = vpop.f32.mrb[0].mxu0
        %v3876 = vadd.f32 %v3835, %v3875
        %v3877 = vpop.f32.mrb[0].mxu0
        %v3878 = vadd.f32 %v3837, %v3877
        %v3879 = vpop.f32.mrb[0].mxu0
        %v3880 = vpop.f32.mrb[0].mxu0
        %3881 = vdwg.mxu0
        %3882 = vmatprep.subr.bf16.mxu0 %v987
        %3883 = vmatpush1.bf16.msra.mxu0 %v986
        %3884 = vmatprep.subr.bf16.mxu0 %v989
        %3885 = vmatpush1.bf16.msra.mxu0 %v988
        %3886 = vmatprep.subr.bf16.mxu0 %v991
        %3887 = vmatpush1.bf16.msra.mxu0 %v990
        %3888 = vmatprep.subr.bf16.mxu0 %v993
        %3889 = vmatpush1.bf16.msra.mxu0 %v992
        %3890 = vmatprep.subr.bf16.mxu0 %v995
        %3891 = vmatpush1.bf16.msra.mxu0 %v994
        %3892 = vmatprep.subr.bf16.mxu0 %v997
        %3893 = vmatpush1.bf16.msra.mxu0 %v996
        %3894 = vmatprep.subr.bf16.mxu0 %v999
        %3895 = vmatpush1.bf16.msra.mxu0 %v998
        %3896 = vmatprep.subr.bf16.mxu0 %v1001
        %3897 = vmatpush1.bf16.msra.mxu0 %v1000
        %3898 = vmatprep.subr.bf16.mxu0 %v1003
        %3899 = vmatpush1.bf16.msra.mxu0 %v1002
        %3900 = vmatprep.subr.bf16.mxu0 %v1005
        %3901 = vmatpush1.bf16.msra.mxu0 %v1004
        %3902 = vmatprep.subr.bf16.mxu0 %v1007
        %3903 = vmatpush1.bf16.msra.mxu0 %v1006
        %3904 = vmatprep.subr.bf16.mxu0 %v1009
        %3905 = vmatpush1.bf16.msra.mxu0 %v1008
        %3906 = vmatprep.subr.bf16.mxu0 %v1011
        %3907 = vmatpush1.bf16.msra.mxu0 %v1010
        %3908 = vmatprep.subr.bf16.mxu0 %v1013
        %3909 = vmatpush1.bf16.msra.mxu0 %v1012
        %3910 = vmatprep.subr.bf16.mxu0 %v1015
        %3911 = vmatpush1.bf16.msra.mxu0 %v1014
        %3912 = vmatprep.subr.bf16.mxu0 %v1017
        %3913 = vmatpush1.bf16.msra.mxu0 %v1016
        %3914 = vmatprep.mubr.bf16.mxu0 %v3787
        %3915 = vmatmul.mubr.bf16.gmra.mrb[0].mxu0 %v3786
        %v3916 = vpop.f32.mrb[0].mxu0
        %v3917 = vadd.f32 %v3876, %v3916
        %v3918 = vpop.f32.mrb[0].mxu0
        %v3919 = vadd.f32 %v3878, %v3918
        %v3920 = vpop.f32.mrb[0].mxu0
        %v3921 = vpop.f32.mrb[0].mxu0
        %3922 = vdwg.mxu0
        %3923 = vmatprep.subr.bf16.mxu0 %v1019
        %3924 = vmatpush1.bf16.msra.mxu0 %v1018
        %3925 = vmatprep.subr.bf16.mxu0 %v1021
        %3926 = vmatpush1.bf16.msra.mxu0 %v1020
        %3927 = vmatprep.subr.bf16.mxu0 %v1023
        %3928 = vmatpush1.bf16.msra.mxu0 %v1022
        %3929 = vmatprep.subr.bf16.mxu0 %v1025
        %3930 = vmatpush1.bf16.msra.mxu0 %v1024
        %3931 = vmatprep.subr.bf16.mxu0 %v1027
        %3932 = vmatpush1.bf16.msra.mxu0 %v1026
        %3933 = vmatprep.subr.bf16.mxu0 %v1029
        %3934 = vmatpush1.bf16.msra.mxu0 %v1028
        %3935 = vmatprep.subr.bf16.mxu0 %v1031
        %3936 = vmatpush1.bf16.msra.mxu0 %v1030
        %3937 = vmatprep.subr.bf16.mxu0 %v1033
        %3938 = vmatpush1.bf16.msra.mxu0 %v1032
        %3939 = vmatprep.subr.bf16.mxu0 %v1035
        %3940 = vmatpush1.bf16.msra.mxu0 %v1034
        %3941 = vmatprep.subr.bf16.mxu0 %v1037
        %3942 = vmatpush1.bf16.msra.mxu0 %v1036
        %3943 = vmatprep.subr.bf16.mxu0 %v1039
        %3944 = vmatpush1.bf16.msra.mxu0 %v1038
        %3945 = vmatprep.subr.bf16.mxu0 %v1041
        %3946 = vmatpush1.bf16.msra.mxu0 %v1040
        %3947 = vmatprep.subr.bf16.mxu0 %v1043
        %3948 = vmatpush1.bf16.msra.mxu0 %v1042
        %3949 = vmatprep.subr.bf16.mxu0 %v1045
        %3950 = vmatpush1.bf16.msra.mxu0 %v1044
        %3951 = vmatprep.subr.bf16.mxu0 %v1181
        %3952 = vmatpush1.bf16.msra.mxu0 %v1178
        %3953 = vmatprep.subr.bf16.mxu0 0
        %3954 = vmatpush1.bf16.msra.mxu0 0
        %3955 = vmatprep.mubr.bf16.mxu0 %v3798
        %3956 = vmatmul.mubr.bf16.gmra.mrb[0].mxu0 %v3788
        %v3957 = vpop.f32.mrb[0].mxu0
        %v3958 = vadd.f32 %v3917, %v3957
        %v3959 = vpop.f32.mrb[0].mxu0
        %v3960 = vadd.f32 %v3919, %v3959
        %v3961 = vpop.f32.mrb[0].mxu0
        %v3962 = vpop.f32.mrb[0].mxu0
        %3963 = vdwg.mxu0
        %3973 = vrot.lane.b32.xlu0 %v3718, 72
        %v3974 = vpop.permute.xlu0 %3973
        %3975 = vrot.lane.b32.xlu0 %v3719, 72
        %v3976 = vpop.permute.xlu0 %3975
        %3977 = vrot.lane.b32.xlu0 %v3720, 72
        %v3978 = vpop.permute.xlu0 %3977
        %3979 = vrot.lane.b32.xlu0 %v3721, 72
        %v3980 = vpop.permute.xlu0 %3979
        %3981 = vrot.lane.b32.xlu0 %v3722, 72
        %v3982 = vpop.permute.xlu0 %3981
        %3983 = vrot.lane.b32.xlu0 %v3723, 72
        %v3984 = vpop.permute.xlu0 %3983
        %3985 = vrot.lane.b32.xlu0 %v3724, 72
        %v3986 = vpop.permute.xlu0 %3985
        %3987 = vrot.lane.b32.xlu0 %v3725, 72
        %v3988 = vpop.permute.xlu0 %3987
        %3989 = vrot.lane.b32.xlu0 %v3726, 72
        %v3990 = vpop.permute.xlu0 %3989
        %v3991 = vsel %vm3781, %v3974, %v3976
        %v3992 = vsel %vm3781, %v3976, %v3978
        %v3993 = vsel %vm3781, %v3978, %v3980
        %v3994 = vsel %vm3781, %v3980, %v3982
        %v3995 = vsel %vm3781, %v3982, %v3984
        %v3996 = vsel %vm3781, %v3984, %v3986
        %v3997 = vsel %vm3781, %v3986, %v3988
        %v3998 = vsel %vm3781, %v3988, %v3990
        %v4007 = vsel %vm1172, %v3998, 0
        %4009 = vmatprep.subr.bf16.mxu0 %v923
        %4010 = vmatpush1.bf16.msra.mxu0 %v922
        %4011 = vmatprep.subr.bf16.mxu0 %v925
        %4012 = vmatpush1.bf16.msra.mxu0 %v924
        %4013 = vmatprep.subr.bf16.mxu0 %v927
        %4014 = vmatpush1.bf16.msra.mxu0 %v926
        %4015 = vmatprep.subr.bf16.mxu0 %v929
        %4016 = vmatpush1.bf16.msra.mxu0 %v928
        %4017 = vmatprep.subr.bf16.mxu0 %v931
        %4018 = vmatpush1.bf16.msra.mxu0 %v930
        %4019 = vmatprep.subr.bf16.mxu0 %v933
        %4020 = vmatpush1.bf16.msra.mxu0 %v932
        %4021 = vmatprep.subr.bf16.mxu0 %v935
        %4022 = vmatpush1.bf16.msra.mxu0 %v934
        %4023 = vmatprep.subr.bf16.mxu0 %v937
        %4024 = vmatpush1.bf16.msra.mxu0 %v936
        %4025 = vmatprep.subr.bf16.mxu0 %v939
        %4026 = vmatpush1.bf16.msra.mxu0 %v938
        %4027 = vmatprep.subr.bf16.mxu0 %v941
        %4028 = vmatpush1.bf16.msra.mxu0 %v940
        %4029 = vmatprep.subr.bf16.mxu0 %v943
        %4030 = vmatpush1.bf16.msra.mxu0 %v942
        %4031 = vmatprep.subr.bf16.mxu0 %v945
        %4032 = vmatpush1.bf16.msra.mxu0 %v944
        %4033 = vmatprep.subr.bf16.mxu0 %v947
        %4034 = vmatpush1.bf16.msra.mxu0 %v946
        %4035 = vmatprep.subr.bf16.mxu0 %v949
        %4036 = vmatpush1.bf16.msra.mxu0 %v948
        %4037 = vmatprep.subr.bf16.mxu0 %v951
        %4038 = vmatpush1.bf16.msra.mxu0 %v950
        %4039 = vmatprep.subr.bf16.mxu0 %v953
        %4040 = vmatpush1.bf16.msra.mxu0 %v952
        %4041 = vmatprep.mubr.bf16.mxu0 %v3992
        %4042 = vmatmul.mubr.bf16.gmra.mrb[0].mxu0 %v3991
        %v4043 = vpop.f32.mrb[0].mxu0
        %v4044 = vadd.f32 %v3958, %v4043
        %v4045 = vpop.f32.mrb[0].mxu0
        %v4046 = vadd.f32 %v3960, %v4045
        %v4047 = vpop.f32.mrb[0].mxu0
        %v4048 = vpop.f32.mrb[0].mxu0
        %4049 = vdwg.mxu0
        %4050 = vmatprep.subr.bf16.mxu0 %v955
        %4051 = vmatpush1.bf16.msra.mxu0 %v954
        %4052 = vmatprep.subr.bf16.mxu0 %v957
        %4053 = vmatpush1.bf16.msra.mxu0 %v956
        %4054 = vmatprep.subr.bf16.mxu0 %v959
        %4055 = vmatpush1.bf16.msra.mxu0 %v958
        %4056 = vmatprep.subr.bf16.mxu0 %v961
        %4057 = vmatpush1.bf16.msra.mxu0 %v960
        %4058 = vmatprep.subr.bf16.mxu0 %v963
        %4059 = vmatpush1.bf16.msra.mxu0 %v962
        %4060 = vmatprep.subr.bf16.mxu0 %v965
        %4061 = vmatpush1.bf16.msra.mxu0 %v964
        %4062 = vmatprep.subr.bf16.mxu0 %v967
        %4063 = vmatpush1.bf16.msra.mxu0 %v966
        %4064 = vmatprep.subr.bf16.mxu0 %v969
        %4065 = vmatpush1.bf16.msra.mxu0 %v968
        %4066 = vmatprep.subr.bf16.mxu0 %v971
        %4067 = vmatpush1.bf16.msra.mxu0 %v970
        %4068 = vmatprep.subr.bf16.mxu0 %v973
        %4069 = vmatpush1.bf16.msra.mxu0 %v972
        %4070 = vmatprep.subr.bf16.mxu0 %v975
        %4071 = vmatpush1.bf16.msra.mxu0 %v974
        %4072 = vmatprep.subr.bf16.mxu0 %v977
        %4073 = vmatpush1.bf16.msra.mxu0 %v976
        %4074 = vmatprep.subr.bf16.mxu0 %v979
        %4075 = vmatpush1.bf16.msra.mxu0 %v978
        %4076 = vmatprep.subr.bf16.mxu0 %v981
        %4077 = vmatpush1.bf16.msra.mxu0 %v980
        %4078 = vmatprep.subr.bf16.mxu0 %v983
        %4079 = vmatpush1.bf16.msra.mxu0 %v982
        %4080 = vmatprep.subr.bf16.mxu0 %v985
        %4081 = vmatpush1.bf16.msra.mxu0 %v984
        %4082 = vmatprep.mubr.bf16.mxu0 %v3994
        %4083 = vmatmul.mubr.bf16.gmra.mrb[0].mxu0 %v3993
        %v4084 = vpop.f32.mrb[0].mxu0
        %v4085 = vadd.f32 %v4044, %v4084
        %v4086 = vpop.f32.mrb[0].mxu0
        %v4087 = vadd.f32 %v4046, %v4086
        %v4088 = vpop.f32.mrb[0].mxu0
        %v4089 = vpop.f32.mrb[0].mxu0
        %4090 = vdwg.mxu0
        %4091 = vmatprep.subr.bf16.mxu0 %v987
        %4092 = vmatpush1.bf16.msra.mxu0 %v986
        %4093 = vmatprep.subr.bf16.mxu0 %v989
        %4094 = vmatpush1.bf16.msra.mxu0 %v988
        %4095 = vmatprep.subr.bf16.mxu0 %v991
        %4096 = vmatpush1.bf16.msra.mxu0 %v990
        %4097 = vmatprep.subr.bf16.mxu0 %v993
        %4098 = vmatpush1.bf16.msra.mxu0 %v992
        %4099 = vmatprep.subr.bf16.mxu0 %v995
        %4100 = vmatpush1.bf16.msra.mxu0 %v994
        %4101 = vmatprep.subr.bf16.mxu0 %v997
        %4102 = vmatpush1.bf16.msra.mxu0 %v996
        %4103 = vmatprep.subr.bf16.mxu0 %v999
        %4104 = vmatpush1.bf16.msra.mxu0 %v998
        %4105 = vmatprep.subr.bf16.mxu0 %v1001
        %4106 = vmatpush1.bf16.msra.mxu0 %v1000
        %4107 = vmatprep.subr.bf16.mxu0 %v1003
        %4108 = vmatpush1.bf16.msra.mxu0 %v1002
        %4109 = vmatprep.subr.bf16.mxu0 %v1005
        %4110 = vmatpush1.bf16.msra.mxu0 %v1004
        %4111 = vmatprep.subr.bf16.mxu0 %v1007
        %4112 = vmatpush1.bf16.msra.mxu0 %v1006
        %4113 = vmatprep.subr.bf16.mxu0 %v1009
        %4114 = vmatpush1.bf16.msra.mxu0 %v1008
        %4115 = vmatprep.subr.bf16.mxu0 %v1011
        %4116 = vmatpush1.bf16.msra.mxu0 %v1010
        %4117 = vmatprep.subr.bf16.mxu0 %v1013
        %4118 = vmatpush1.bf16.msra.mxu0 %v1012
        %4119 = vmatprep.subr.bf16.mxu0 %v1015
        %4120 = vmatpush1.bf16.msra.mxu0 %v1014
        %4121 = vmatprep.subr.bf16.mxu0 %v1017
        %4122 = vmatpush1.bf16.msra.mxu0 %v1016
        %4123 = vmatprep.mubr.bf16.mxu0 %v3996
        %4124 = vmatmul.mubr.bf16.gmra.mrb[0].mxu0 %v3995
        %v4125 = vpop.f32.mrb[0].mxu0
        %v4126 = vadd.f32 %v4085, %v4125
        %v4127 = vpop.f32.mrb[0].mxu0
        %v4128 = vadd.f32 %v4087, %v4127
        %v4129 = vpop.f32.mrb[0].mxu0
        %v4130 = vpop.f32.mrb[0].mxu0
        %4131 = vdwg.mxu0
        %4132 = vmatprep.subr.bf16.mxu0 %v1019
        %4133 = vmatpush1.bf16.msra.mxu0 %v1018
        %4134 = vmatprep.subr.bf16.mxu0 %v1021
        %4135 = vmatpush1.bf16.msra.mxu0 %v1020
        %4136 = vmatprep.subr.bf16.mxu0 %v1023
        %4137 = vmatpush1.bf16.msra.mxu0 %v1022
        %4138 = vmatprep.subr.bf16.mxu0 %v1025
        %4139 = vmatpush1.bf16.msra.mxu0 %v1024
        %4140 = vmatprep.subr.bf16.mxu0 %v1027
        %4141 = vmatpush1.bf16.msra.mxu0 %v1026
        %4142 = vmatprep.subr.bf16.mxu0 %v1029
        %4143 = vmatpush1.bf16.msra.mxu0 %v1028
        %4144 = vmatprep.subr.bf16.mxu0 %v1031
        %4145 = vmatpush1.bf16.msra.mxu0 %v1030
        %4146 = vmatprep.subr.bf16.mxu0 %v1033
        %4147 = vmatpush1.bf16.msra.mxu0 %v1032
        %4148 = vmatprep.subr.bf16.mxu0 %v1035
        %4149 = vmatpush1.bf16.msra.mxu0 %v1034
        %4150 = vmatprep.subr.bf16.mxu0 %v1037
        %4151 = vmatpush1.bf16.msra.mxu0 %v1036
        %4152 = vmatprep.subr.bf16.mxu0 %v1039
        %4153 = vmatpush1.bf16.msra.mxu0 %v1038
        %4154 = vmatprep.subr.bf16.mxu0 %v1041
        %4155 = vmatpush1.bf16.msra.mxu0 %v1040
        %4156 = vmatprep.subr.bf16.mxu0 %v1043
        %4157 = vmatpush1.bf16.msra.mxu0 %v1042
        %4158 = vmatprep.subr.bf16.mxu0 %v1045
        %4159 = vmatpush1.bf16.msra.mxu0 %v1044
        %4160 = vmatprep.subr.bf16.mxu0 %v1181
        %4161 = vmatpush1.bf16.msra.mxu0 %v1178
        %4162 = vmatprep.subr.bf16.mxu0 0
        %4163 = vmatpush1.bf16.msra.mxu0 0
        %4164 = vmatprep.mubr.bf16.mxu0 %v4007
        %4165 = vmatmul.mubr.bf16.gmra.mrb[0].mxu0 %v3997
        %v4166 = vpop.f32.mrb[0].mxu0
        %v4167 = vadd.f32 %v4126, %v4166
        %v4168 = vpop.f32.mrb[0].mxu0
        %v4169 = vadd.f32 %v4128, %v4168
        %v4170 = vpop.f32.mrb[0].mxu0
        %v4171 = vpop.f32.mrb[0].mxu0
        %4172 = vdwg.mxu0
        %v4173 = vunpack.c.l.bf16 %v3745
        %v4174 = vunpack.c.l.bf16 %v3746
        %v4175 = vunpack.c.l.bf16 %v3747
        %v4176 = vunpack.c.l.bf16 %v3748
        %v4177 = vunpack.c.l.bf16 %v3749
        %v4178 = vunpack.c.l.bf16 %v3750
        %v4179 = vunpack.c.l.bf16 %v3751
        %v4180 = vunpack.c.l.bf16 %v3752
        %v4181 = vunpack.c.l.bf16 %v3753
        %v4182 = vsub.f32 %v3736, %v4173
        %v4183 = vsub.f32 %v3737, %v4174
        %v4184 = vsub.f32 %v3738, %v4175
        %v4185 = vsub.f32 %v3739, %v4176
        %v4186 = vsub.f32 %v3740, %v4177
        %v4187 = vsub.f32 %v3741, %v4178
        %v4188 = vsub.f32 %v3742, %v4179
        %v4189 = vsub.f32 %v3743, %v4180
        %v4190 = vsub.f32 %v3744, %v4181
        %v4191 = vpack.c.bf16 %v4182, %v4182
        %v4192 = vpack.c.bf16 %v4183, %v4183
        %v4193 = vpack.c.bf16 %v4184, %v4184
        %v4194 = vpack.c.bf16 %v4185, %v4185
        %v4195 = vpack.c.bf16 %v4186, %v4186
        %v4196 = vpack.c.bf16 %v4187, %v4187
        %v4197 = vpack.c.bf16 %v4188, %v4188
        %v4198 = vpack.c.bf16 %v4189, %v4189
        %v4199 = vpack.c.bf16 %v4190, %v4190
        %4209 = vrot.lane.b32.xlu0 %v4191, 72
        %v4210 = vpop.permute.xlu0 %4209
        %4211 = vrot.lane.b32.xlu0 %v4192, 72
        %v4212 = vpop.permute.xlu0 %4211
        %4213 = vrot.lane.b32.xlu0 %v4193, 72
        %v4214 = vpop.permute.xlu0 %4213
        %4215 = vrot.lane.b32.xlu0 %v4194, 72
        %v4216 = vpop.permute.xlu0 %4215
        %4217 = vrot.lane.b32.xlu0 %v4195, 72
        %v4218 = vpop.permute.xlu0 %4217
        %4219 = vrot.lane.b32.xlu0 %v4196, 72
        %v4220 = vpop.permute.xlu0 %4219
        %4221 = vrot.lane.b32.xlu0 %v4197, 72
        %v4222 = vpop.permute.xlu0 %4221
        %4223 = vrot.lane.b32.xlu0 %v4198, 72
        %v4224 = vpop.permute.xlu0 %4223
        %4225 = vrot.lane.b32.xlu0 %v4199, 72
        %v4226 = vpop.permute.xlu0 %4225
        %v4227 = vsel %vm3781, %v4210, %v4212
        %v4228 = vsel %vm3781, %v4212, %v4214
        %v4229 = vsel %vm3781, %v4214, %v4216
        %v4230 = vsel %vm3781, %v4216, %v4218
        %v4231 = vsel %vm3781, %v4218, %v4220
        %v4232 = vsel %vm3781, %v4220, %v4222
        %v4233 = vsel %vm3781, %v4222, %v4224
        %v4234 = vsel %vm3781, %v4224, %v4226
        %v4243 = vsel %vm1172, %v4234, 0
        %4245 = vmatprep.subr.bf16.mxu0 %v923
        %4246 = vmatpush1.bf16.msra.mxu0 %v922
        %4247 = vmatprep.subr.bf16.mxu0 %v925
        %4248 = vmatpush1.bf16.msra.mxu0 %v924
        %4249 = vmatprep.subr.bf16.mxu0 %v927
        %4250 = vmatpush1.bf16.msra.mxu0 %v926
        %4251 = vmatprep.subr.bf16.mxu0 %v929
        %4252 = vmatpush1.bf16.msra.mxu0 %v928
        %4253 = vmatprep.subr.bf16.mxu0 %v931
        %4254 = vmatpush1.bf16.msra.mxu0 %v930
        %4255 = vmatprep.subr.bf16.mxu0 %v933
        %4256 = vmatpush1.bf16.msra.mxu0 %v932
        %4257 = vmatprep.subr.bf16.mxu0 %v935
        %4258 = vmatpush1.bf16.msra.mxu0 %v934
        %4259 = vmatprep.subr.bf16.mxu0 %v937
        %4260 = vmatpush1.bf16.msra.mxu0 %v936
        %4261 = vmatprep.subr.bf16.mxu0 %v939
        %4262 = vmatpush1.bf16.msra.mxu0 %v938
        %4263 = vmatprep.subr.bf16.mxu0 %v941
        %4264 = vmatpush1.bf16.msra.mxu0 %v940
        %4265 = vmatprep.subr.bf16.mxu0 %v943
        %4266 = vmatpush1.bf16.msra.mxu0 %v942
        %4267 = vmatprep.subr.bf16.mxu0 %v945
        %4268 = vmatpush1.bf16.msra.mxu0 %v944
        %4269 = vmatprep.subr.bf16.mxu0 %v947
        %4270 = vmatpush1.bf16.msra.mxu0 %v946
        %4271 = vmatprep.subr.bf16.mxu0 %v949
        %4272 = vmatpush1.bf16.msra.mxu0 %v948
        %4273 = vmatprep.subr.bf16.mxu0 %v951
        %4274 = vmatpush1.bf16.msra.mxu0 %v950
        %4275 = vmatprep.subr.bf16.mxu0 %v953
        %4276 = vmatpush1.bf16.msra.mxu0 %v952
        %4277 = vmatprep.mubr.bf16.mxu0 %v4228
        %4278 = vmatmul.mubr.bf16.gmra.mrb[0].mxu0 %v4227
        %v4279 = vpop.f32.mrb[0].mxu0
        %v4280 = vadd.f32 0.0, %v4279
        %v4281 = vpop.f32.mrb[0].mxu0
        %v4282 = vadd.f32 0.0, %v4281
        %v4283 = vpop.f32.mrb[0].mxu0
        %v4284 = vpop.f32.mrb[0].mxu0
        %4285 = vdwg.mxu0
        %4286 = vmatprep.subr.bf16.mxu0 %v955
        %4287 = vmatpush1.bf16.msra.mxu0 %v954
        %4288 = vmatprep.subr.bf16.mxu0 %v957
        %4289 = vmatpush1.bf16.msra.mxu0 %v956
        %4290 = vmatprep.subr.bf16.mxu0 %v959
        %4291 = vmatpush1.bf16.msra.mxu0 %v958
        %4292 = vmatprep.subr.bf16.mxu0 %v961
        %4293 = vmatpush1.bf16.msra.mxu0 %v960
        %4294 = vmatprep.subr.bf16.mxu0 %v963
        %4295 = vmatpush1.bf16.msra.mxu0 %v962
        %4296 = vmatprep.subr.bf16.mxu0 %v965
        %4297 = vmatpush1.bf16.msra.mxu0 %v964
        %4298 = vmatprep.subr.bf16.mxu0 %v967
        %4299 = vmatpush1.bf16.msra.mxu0 %v966
        %4300 = vmatprep.subr.bf16.mxu0 %v969
        %4301 = vmatpush1.bf16.msra.mxu0 %v968
        %4302 = vmatprep.subr.bf16.mxu0 %v971
        %4303 = vmatpush1.bf16.msra.mxu0 %v970
        %4304 = vmatprep.subr.bf16.mxu0 %v973
        %4305 = vmatpush1.bf16.msra.mxu0 %v972
        %4306 = vmatprep.subr.bf16.mxu0 %v975
        %4307 = vmatpush1.bf16.msra.mxu0 %v974
        %4308 = vmatprep.subr.bf16.mxu0 %v977
        %4309 = vmatpush1.bf16.msra.mxu0 %v976
        %4310 = vmatprep.subr.bf16.mxu0 %v979
        %4311 = vmatpush1.bf16.msra.mxu0 %v978
        %4312 = vmatprep.subr.bf16.mxu0 %v981
        %4313 = vmatpush1.bf16.msra.mxu0 %v980
        %4314 = vmatprep.subr.bf16.mxu0 %v983
        %4315 = vmatpush1.bf16.msra.mxu0 %v982
        %4316 = vmatprep.subr.bf16.mxu0 %v985
        %4317 = vmatpush1.bf16.msra.mxu0 %v984
        %4318 = vmatprep.mubr.bf16.mxu0 %v4230
        %4319 = vmatmul.mubr.bf16.gmra.mrb[0].mxu0 %v4229
        %v4320 = vpop.f32.mrb[0].mxu0
        %v4321 = vadd.f32 %v4280, %v4320
        %v4322 = vpop.f32.mrb[0].mxu0
        %v4323 = vadd.f32 %v4282, %v4322
        %v4324 = vpop.f32.mrb[0].mxu0
        %v4325 = vpop.f32.mrb[0].mxu0
        %4326 = vdwg.mxu0
        %4327 = vmatprep.subr.bf16.mxu0 %v987
        %4328 = vmatpush1.bf16.msra.mxu0 %v986
        %4329 = vmatprep.subr.bf16.mxu0 %v989
        %4330 = vmatpush1.bf16.msra.mxu0 %v988
        %4331 = vmatprep.subr.bf16.mxu0 %v991
        %4332 = vmatpush1.bf16.msra.mxu0 %v990
        %4333 = vmatprep.subr.bf16.mxu0 %v993
        %4334 = vmatpush1.bf16.msra.mxu0 %v992
        %4335 = vmatprep.subr.bf16.mxu0 %v995
        %4336 = vmatpush1.bf16.msra.mxu0 %v994
        %4337 = vmatprep.subr.bf16.mxu0 %v997
        %4338 = vmatpush1.bf16.msra.mxu0 %v996
        %4339 = vmatprep.subr.bf16.mxu0 %v999
        %4340 = vmatpush1.bf16.msra.mxu0 %v998
        %4341 = vmatprep.subr.bf16.mxu0 %v1001
        %4342 = vmatpush1.bf16.msra.mxu0 %v1000
        %4343 = vmatprep.subr.bf16.mxu0 %v1003
        %4344 = vmatpush1.bf16.msra.mxu0 %v1002
        %4345 = vmatprep.subr.bf16.mxu0 %v1005
        %4346 = vmatpush1.bf16.msra.mxu0 %v1004
        %4347 = vmatprep.subr.bf16.mxu0 %v1007
        %4348 = vmatpush1.bf16.msra.mxu0 %v1006
        %4349 = vmatprep.subr.bf16.mxu0 %v1009
        %4350 = vmatpush1.bf16.msra.mxu0 %v1008
        %4351 = vmatprep.subr.bf16.mxu0 %v1011
        %4352 = vmatpush1.bf16.msra.mxu0 %v1010
        %4353 = vmatprep.subr.bf16.mxu0 %v1013
        %4354 = vmatpush1.bf16.msra.mxu0 %v1012
        %4355 = vmatprep.subr.bf16.mxu0 %v1015
        %4356 = vmatpush1.bf16.msra.mxu0 %v1014
        %4357 = vmatprep.subr.bf16.mxu0 %v1017
        %4358 = vmatpush1.bf16.msra.mxu0 %v1016
        %4359 = vmatprep.mubr.bf16.mxu0 %v4232
        %4360 = vmatmul.mubr.bf16.gmra.mrb[0].mxu0 %v4231
        %v4361 = vpop.f32.mrb[0].mxu0
        %v4362 = vadd.f32 %v4321, %v4361
        %v4363 = vpop.f32.mrb[0].mxu0
        %v4364 = vadd.f32 %v4323, %v4363
        %v4365 = vpop.f32.mrb[0].mxu0
        %v4366 = vpop.f32.mrb[0].mxu0
        %4367 = vdwg.mxu0
        %4368 = vmatprep.subr.bf16.mxu0 %v1019
        %4369 = vmatpush1.bf16.msra.mxu0 %v1018
        %4370 = vmatprep.subr.bf16.mxu0 %v1021
        %4371 = vmatpush1.bf16.msra.mxu0 %v1020
        %4372 = vmatprep.subr.bf16.mxu0 %v1023
        %4373 = vmatpush1.bf16.msra.mxu0 %v1022
        %4374 = vmatprep.subr.bf16.mxu0 %v1025
        %4375 = vmatpush1.bf16.msra.mxu0 %v1024
        %4376 = vmatprep.subr.bf16.mxu0 %v1027
        %4377 = vmatpush1.bf16.msra.mxu0 %v1026
        %4378 = vmatprep.subr.bf16.mxu0 %v1029
        %4379 = vmatpush1.bf16.msra.mxu0 %v1028
        %4380 = vmatprep.subr.bf16.mxu0 %v1031
        %4381 = vmatpush1.bf16.msra.mxu0 %v1030
        %4382 = vmatprep.subr.bf16.mxu0 %v1033
        %4383 = vmatpush1.bf16.msra.mxu0 %v1032
        %4384 = vmatprep.subr.bf16.mxu0 %v1035
        %4385 = vmatpush1.bf16.msra.mxu0 %v1034
        %4386 = vmatprep.subr.bf16.mxu0 %v1037
        %4387 = vmatpush1.bf16.msra.mxu0 %v1036
        %4388 = vmatprep.subr.bf16.mxu0 %v1039
        %4389 = vmatpush1.bf16.msra.mxu0 %v1038
        %4390 = vmatprep.subr.bf16.mxu0 %v1041
        %4391 = vmatpush1.bf16.msra.mxu0 %v1040
        %4392 = vmatprep.subr.bf16.mxu0 %v1043
        %4393 = vmatpush1.bf16.msra.mxu0 %v1042
        %4394 = vmatprep.subr.bf16.mxu0 %v1045
        %4395 = vmatpush1.bf16.msra.mxu0 %v1044
        %4396 = vmatprep.subr.bf16.mxu0 %v1181
        %4397 = vmatpush1.bf16.msra.mxu0 %v1178
        %4398 = vmatprep.subr.bf16.mxu0 0
        %4399 = vmatpush1.bf16.msra.mxu0 0
        %4400 = vmatprep.mubr.bf16.mxu0 %v4243
        %4401 = vmatmul.mubr.bf16.gmra.mrb[0].mxu0 %v4233
        %v4402 = vpop.f32.mrb[0].mxu0
        %v4403 = vadd.f32 %v4362, %v4402
        %v4404 = vpop.f32.mrb[0].mxu0
        %v4405 = vadd.f32 %v4364, %v4404
        %v4406 = vpop.f32.mrb[0].mxu0
        %v4407 = vpop.f32.mrb[0].mxu0
        %4408 = vdwg.mxu0
        %v4409 = vadd.f32 %v4167, %v4403
        %v4410 = vadd.f32 %v4169, %v4405
        %4413 = vrot.lane.b32.xlu0 %v4409, 64
        %v4414 = vpop.permute.xlu0 %4413
        %4415 = vrot.lane.b32.xlu0 %v4410, 64
        %v4416 = vpop.permute.xlu0 %4415
        %v4417 = vsel %vm3522, %v4414, %v4416
        %vm4421 = vcmask 1048064
        %4422 = vst.msk [vmem:[%s183 + $0x60] sm:$0xff] %vm4421, %v4414
        %4423 = vst [vmem:[%s183 + $0x68] sm:$0xff] %v4417
        %vm4424 = vcmask 64512
        %4425 = vst.msk [vmem:[%s183 + $0x70] sm:$0xff] %vm4424, %v4416
        %v4426 = vld [vmem:[%s194 + $0xf8] sm:$0xff]
        %v4427 = vld [vmem:[%s194 + $0x100] sm:$0xff]
        %v4428 = vld [vmem:[%s194 + $0x108] sm:$0xff]
        %v4429 = vld [vmem:[%s194 + $0x110] sm:$0xff]
        %v4430 = vld [vmem:[%s194 + $0x118] sm:$0xff]
        %v4431 = vld [vmem:[%s194 + $0x120] sm:$0xff]
        %v4432 = vld [vmem:[%s194 + $0x128] sm:$0xff]
        %v4433 = vld [vmem:[%s194 + $0x130] sm:$0xff]
        %v4434 = vld [vmem:[%s194 + $0x138] sm:$0xff]
        %4444 = vrot.lane.b32.xlu0 %v4426, 127
        %v4445 = vpop.permute.xlu0 %4444
        %4446 = vrot.lane.b32.xlu0 %v4427, 127
        %v4447 = vpop.permute.xlu0 %4446
        %4448 = vrot.lane.b32.xlu0 %v4428, 127
        %v4449 = vpop.permute.xlu0 %4448
        %4450 = vrot.lane.b32.xlu0 %v4429, 127
        %v4451 = vpop.permute.xlu0 %4450
        %4452 = vrot.lane.b32.xlu0 %v4430, 127
        %v4453 = vpop.permute.xlu0 %4452
        %4454 = vrot.lane.b32.xlu0 %v4431, 127
        %v4455 = vpop.permute.xlu0 %4454
        %4456 = vrot.lane.b32.xlu0 %v4432, 127
        %v4457 = vpop.permute.xlu0 %4456
        %4458 = vrot.lane.b32.xlu0 %v4433, 127
        %v4459 = vpop.permute.xlu0 %4458
        %4460 = vrot.lane.b32.xlu0 %v4434, 127
        %v4461 = vpop.permute.xlu0 %4460
        %v4462 = vsel %vm371, %v4445, %v4447
        %v4463 = vsel %vm371, %v4447, %v4449
        %v4464 = vsel %vm371, %v4449, %v4451
        %v4465 = vsel %vm371, %v4451, %v4453
        %v4466 = vsel %vm371, %v4453, %v4455
        %v4467 = vsel %vm371, %v4455, %v4457
        %v4468 = vsel %vm371, %v4457, %v4459
        %v4469 = vsel %vm371, %v4459, %v4461
        %v4479 = vmax.f32 %v4426, %v4462
        %v4480 = vmax.f32 %v4427, %v4463
        %v4481 = vmax.f32 %v4428, %v4464
        %v4482 = vmax.f32 %v4429, %v4465
        %v4483 = vmax.f32 %v4430, %v4466
        %v4484 = vmax.f32 %v4431, %v4467
        %v4485 = vmax.f32 %v4432, %v4468
        %v4486 = vmax.f32 %v4433, %v4469
        %v4487 = vmax.f32 %v4434, %v4461
        %4488 = vrot.lane.b32.xlu0 %v4426, 126
        %v4489 = vpop.permute.xlu0 %4488
        %4490 = vrot.lane.b32.xlu0 %v4427, 126
        %v4491 = vpop.permute.xlu0 %4490
        %4492 = vrot.lane.b32.xlu0 %v4428, 126
        %v4493 = vpop.permute.xlu0 %4492
        %4494 = vrot.lane.b32.xlu0 %v4429, 126
        %v4495 = vpop.permute.xlu0 %4494
        %4496 = vrot.lane.b32.xlu0 %v4430, 126
        %v4497 = vpop.permute.xlu0 %4496
        %4498 = vrot.lane.b32.xlu0 %v4431, 126
        %v4499 = vpop.permute.xlu0 %4498
        %4500 = vrot.lane.b32.xlu0 %v4432, 126
        %v4501 = vpop.permute.xlu0 %4500
        %4502 = vrot.lane.b32.xlu0 %v4433, 126
        %v4503 = vpop.permute.xlu0 %4502
        %4504 = vrot.lane.b32.xlu0 %v4434, 126
        %v4505 = vpop.permute.xlu0 %4504
        %v4506 = vsel %vm411, %v4489, %v4491
        %v4507 = vsel %vm411, %v4491, %v4493
        %v4508 = vsel %vm411, %v4493, %v4495
        %v4509 = vsel %vm411, %v4495, %v4497
        %v4510 = vsel %vm411, %v4497, %v4499
        %v4511 = vsel %vm411, %v4499, %v4501
        %v4512 = vsel %vm411, %v4501, %v4503
        %v4513 = vsel %vm411, %v4503, %v4505
        %v4523 = vmax.f32 %v4479, %v4506
        %v4524 = vmax.f32 %v4480, %v4507
        %v4525 = vmax.f32 %v4481, %v4508
        %v4526 = vmax.f32 %v4482, %v4509
        %v4527 = vmax.f32 %v4483, %v4510
        %v4528 = vmax.f32 %v4484, %v4511
        %v4529 = vmax.f32 %v4485, %v4512
        %v4530 = vmax.f32 %v4486, %v4513
        %v4531 = vmax.f32 %v4487, %v4505
        %4532 = vrot.lane.b32.xlu0 %v4426, 125
        %v4533 = vpop.permute.xlu0 %4532
        %4534 = vrot.lane.b32.xlu0 %v4427, 125
        %v4535 = vpop.permute.xlu0 %4534
        %4536 = vrot.lane.b32.xlu0 %v4428, 125
        %v4537 = vpop.permute.xlu0 %4536
        %4538 = vrot.lane.b32.xlu0 %v4429, 125
        %v4539 = vpop.permute.xlu0 %4538
        %4540 = vrot.lane.b32.xlu0 %v4430, 125
        %v4541 = vpop.permute.xlu0 %4540
        %4542 = vrot.lane.b32.xlu0 %v4431, 125
        %v4543 = vpop.permute.xlu0 %4542
        %4544 = vrot.lane.b32.xlu0 %v4432, 125
        %v4545 = vpop.permute.xlu0 %4544
        %4546 = vrot.lane.b32.xlu0 %v4433, 125
        %v4547 = vpop.permute.xlu0 %4546
        %4548 = vrot.lane.b32.xlu0 %v4434, 125
        %v4549 = vpop.permute.xlu0 %4548
        %v4550 = vsel %vm451, %v4533, %v4535
        %v4551 = vsel %vm451, %v4535, %v4537
        %v4552 = vsel %vm451, %v4537, %v4539
        %v4553 = vsel %vm451, %v4539, %v4541
        %v4554 = vsel %vm451, %v4541, %v4543
        %v4555 = vsel %vm451, %v4543, %v4545
        %v4556 = vsel %vm451, %v4545, %v4547
        %v4557 = vsel %vm451, %v4547, %v4549
        %v4567 = vmax.f32 %v4523, %v4550
        %v4568 = vmax.f32 %v4524, %v4551
        %v4569 = vmax.f32 %v4525, %v4552
        %v4570 = vmax.f32 %v4526, %v4553
        %v4571 = vmax.f32 %v4527, %v4554
        %v4572 = vmax.f32 %v4528, %v4555
        %v4573 = vmax.f32 %v4529, %v4556
        %v4574 = vmax.f32 %v4530, %v4557
        %v4575 = vmax.f32 %v4531, %v4549
        %4576 = vrot.lane.b32.xlu0 %v4426, 124
        %v4577 = vpop.permute.xlu0 %4576
        %4578 = vrot.lane.b32.xlu0 %v4427, 124
        %v4579 = vpop.permute.xlu0 %4578
        %4580 = vrot.lane.b32.xlu0 %v4428, 124
        %v4581 = vpop.permute.xlu0 %4580
        %4582 = vrot.lane.b32.xlu0 %v4429, 124
        %v4583 = vpop.permute.xlu0 %4582
        %4584 = vrot.lane.b32.xlu0 %v4430, 124
        %v4585 = vpop.permute.xlu0 %4584
        %4586 = vrot.lane.b32.xlu0 %v4431, 124
        %v4587 = vpop.permute.xlu0 %4586
        %4588 = vrot.lane.b32.xlu0 %v4432, 124
        %v4589 = vpop.permute.xlu0 %4588
        %4590 = vrot.lane.b32.xlu0 %v4433, 124
        %v4591 = vpop.permute.xlu0 %4590
        %4592 = vrot.lane.b32.xlu0 %v4434, 124
        %v4593 = vpop.permute.xlu0 %4592
        %v4594 = vsel %vm491, %v4577, %v4579
        %v4595 = vsel %vm491, %v4579, %v4581
        %v4596 = vsel %vm491, %v4581, %v4583
        %v4597 = vsel %vm491, %v4583, %v4585
        %v4598 = vsel %vm491, %v4585, %v4587
        %v4599 = vsel %vm491, %v4587, %v4589
        %v4600 = vsel %vm491, %v4589, %v4591
        %v4601 = vsel %vm491, %v4591, %v4593
        %v4611 = vmax.f32 %v4567, %v4594
        %v4612 = vmax.f32 %v4568, %v4595
        %v4613 = vmax.f32 %v4569, %v4596
        %v4614 = vmax.f32 %v4570, %v4597
        %v4615 = vmax.f32 %v4571, %v4598
        %v4616 = vmax.f32 %v4572, %v4599
        %v4617 = vmax.f32 %v4573, %v4600
        %v4618 = vmax.f32 %v4574, %v4601
        %v4619 = vmax.f32 %v4575, %v4593
        %v4620 = vpack.c.bf16 %v4611, %v4611
        %v4621 = vpack.c.bf16 %v4612, %v4612
        %v4622 = vpack.c.bf16 %v4613, %v4613
        %v4623 = vpack.c.bf16 %v4614, %v4614
        %v4624 = vpack.c.bf16 %v4615, %v4615
        %v4625 = vpack.c.bf16 %v4616, %v4616
        %v4626 = vpack.c.bf16 %v4617, %v4617
        %v4627 = vpack.c.bf16 %v4618, %v4618
        %v4628 = vpack.c.bf16 %v4619, %v4619
        %v4629 = vunpack.c.l.bf16 %v4620
        %v4630 = vunpack.c.l.bf16 %v4621
        %v4631 = vunpack.c.l.bf16 %v4622
        %v4632 = vunpack.c.l.bf16 %v4623
        %v4633 = vunpack.c.l.bf16 %v4624
        %v4634 = vunpack.c.l.bf16 %v4625
        %v4635 = vunpack.c.l.bf16 %v4626
        %v4636 = vunpack.c.l.bf16 %v4627
        %v4637 = vunpack.c.l.bf16 %v4628
        %v4638 = vsub.f32 %v4611, %v4629
        %v4639 = vsub.f32 %v4612, %v4630
        %v4640 = vsub.f32 %v4613, %v4631
        %v4641 = vsub.f32 %v4614, %v4632
        %v4642 = vsub.f32 %v4615, %v4633
        %v4643 = vsub.f32 %v4616, %v4634
        %v4644 = vsub.f32 %v4617, %v4635
        %v4645 = vsub.f32 %v4618, %v4636
        %v4646 = vsub.f32 %v4619, %v4637
        %v4647 = vpack.c.bf16 %v4638, %v4638
        %v4648 = vpack.c.bf16 %v4639, %v4639
        %v4649 = vpack.c.bf16 %v4640, %v4640
        %v4650 = vpack.c.bf16 %v4641, %v4641
        %v4651 = vpack.c.bf16 %v4642, %v4642
        %v4652 = vpack.c.bf16 %v4643, %v4643
        %v4653 = vpack.c.bf16 %v4644, %v4644
        %v4654 = vpack.c.bf16 %v4645, %v4645
        %v4655 = vpack.c.bf16 %v4646, %v4646
        %4665 = vrot.lane.b32.xlu0 %v4647, 96
        %v4666 = vpop.permute.xlu0 %4665
        %4667 = vrot.lane.b32.xlu0 %v4648, 96
        %v4668 = vpop.permute.xlu0 %4667
        %4669 = vrot.lane.b32.xlu0 %v4649, 96
        %v4670 = vpop.permute.xlu0 %4669
        %4671 = vrot.lane.b32.xlu0 %v4650, 96
        %v4672 = vpop.permute.xlu0 %4671
        %4673 = vrot.lane.b32.xlu0 %v4651, 96
        %v4674 = vpop.permute.xlu0 %4673
        %4675 = vrot.lane.b32.xlu0 %v4652, 96
        %v4676 = vpop.permute.xlu0 %4675
        %4677 = vrot.lane.b32.xlu0 %v4653, 96
        %v4678 = vpop.permute.xlu0 %4677
        %4679 = vrot.lane.b32.xlu0 %v4654, 96
        %v4680 = vpop.permute.xlu0 %4679
        %4681 = vrot.lane.b32.xlu0 %v4655, 96
        %v4682 = vpop.permute.xlu0 %4681
        %vm4683 = vcmask 785408
        %v4684 = vsel %vm4683, %v4666, %v4668
        %v4685 = vsel %vm4683, %v4668, %v4670
        %v4686 = vsel %vm4683, %v4670, %v4672
        %v4687 = vsel %vm4683, %v4672, %v4674
        %v4688 = vsel %vm4683, %v4674, %v4676
        %v4689 = vsel %vm4683, %v4676, %v4678
        %v4690 = vsel %vm4683, %v4678, %v4680
        %v4691 = vsel %vm4683, %v4680, %v4682
        %v4700 = vsel %vm1172, %v4691, 0
        %4702 = vmatprep.subr.bf16.mxu0 %v923
        %4703 = vmatpush1.bf16.msra.mxu0 %v922
        %4704 = vmatprep.subr.bf16.mxu0 %v925
        %4705 = vmatpush1.bf16.msra.mxu0 %v924
        %4706 = vmatprep.subr.bf16.mxu0 %v927
        %4707 = vmatpush1.bf16.msra.mxu0 %v926
        %4708 = vmatprep.subr.bf16.mxu0 %v929
        %4709 = vmatpush1.bf16.msra.mxu0 %v928
        %4710 = vmatprep.subr.bf16.mxu0 %v931
        %4711 = vmatpush1.bf16.msra.mxu0 %v930
        %4712 = vmatprep.subr.bf16.mxu0 %v933
        %4713 = vmatpush1.bf16.msra.mxu0 %v932
        %4714 = vmatprep.subr.bf16.mxu0 %v935
        %4715 = vmatpush1.bf16.msra.mxu0 %v934
        %4716 = vmatprep.subr.bf16.mxu0 %v937
        %4717 = vmatpush1.bf16.msra.mxu0 %v936
        %4718 = vmatprep.subr.bf16.mxu0 %v939
        %4719 = vmatpush1.bf16.msra.mxu0 %v938
        %4720 = vmatprep.subr.bf16.mxu0 %v941
        %4721 = vmatpush1.bf16.msra.mxu0 %v940
        %4722 = vmatprep.subr.bf16.mxu0 %v943
        %4723 = vmatpush1.bf16.msra.mxu0 %v942
        %4724 = vmatprep.subr.bf16.mxu0 %v945
        %4725 = vmatpush1.bf16.msra.mxu0 %v944
        %4726 = vmatprep.subr.bf16.mxu0 %v947
        %4727 = vmatpush1.bf16.msra.mxu0 %v946
        %4728 = vmatprep.subr.bf16.mxu0 %v949
        %4729 = vmatpush1.bf16.msra.mxu0 %v948
        %4730 = vmatprep.subr.bf16.mxu0 %v951
        %4731 = vmatpush1.bf16.msra.mxu0 %v950
        %4732 = vmatprep.subr.bf16.mxu0 %v953
        %4733 = vmatpush1.bf16.msra.mxu0 %v952
        %4734 = vmatprep.mubr.bf16.mxu0 %v4685
        %4735 = vmatmul.mubr.bf16.gmra.mrb[0].mxu0 %v4684
        %v4736 = vpop.f32.mrb[0].mxu0
        %v4737 = vadd.f32 0.0, %v4736
        %v4738 = vpop.f32.mrb[0].mxu0
        %v4739 = vadd.f32 0.0, %v4738
        %v4740 = vpop.f32.mrb[0].mxu0
        %v4741 = vpop.f32.mrb[0].mxu0
        %4742 = vdwg.mxu0
        %4743 = vmatprep.subr.bf16.mxu0 %v955
        %4744 = vmatpush1.bf16.msra.mxu0 %v954
        %4745 = vmatprep.subr.bf16.mxu0 %v957
        %4746 = vmatpush1.bf16.msra.mxu0 %v956
        %4747 = vmatprep.subr.bf16.mxu0 %v959
        %4748 = vmatpush1.bf16.msra.mxu0 %v958
        %4749 = vmatprep.subr.bf16.mxu0 %v961
        %4750 = vmatpush1.bf16.msra.mxu0 %v960
        %4751 = vmatprep.subr.bf16.mxu0 %v963
        %4752 = vmatpush1.bf16.msra.mxu0 %v962
        %4753 = vmatprep.subr.bf16.mxu0 %v965
        %4754 = vmatpush1.bf16.msra.mxu0 %v964
        %4755 = vmatprep.subr.bf16.mxu0 %v967
        %4756 = vmatpush1.bf16.msra.mxu0 %v966
        %4757 = vmatprep.subr.bf16.mxu0 %v969
        %4758 = vmatpush1.bf16.msra.mxu0 %v968
        %4759 = vmatprep.subr.bf16.mxu0 %v971
        %4760 = vmatpush1.bf16.msra.mxu0 %v970
        %4761 = vmatprep.subr.bf16.mxu0 %v973
        %4762 = vmatpush1.bf16.msra.mxu0 %v972
        %4763 = vmatprep.subr.bf16.mxu0 %v975
        %4764 = vmatpush1.bf16.msra.mxu0 %v974
        %4765 = vmatprep.subr.bf16.mxu0 %v977
        %4766 = vmatpush1.bf16.msra.mxu0 %v976
        %4767 = vmatprep.subr.bf16.mxu0 %v979
        %4768 = vmatpush1.bf16.msra.mxu0 %v978
        %4769 = vmatprep.subr.bf16.mxu0 %v981
        %4770 = vmatpush1.bf16.msra.mxu0 %v980
        %4771 = vmatprep.subr.bf16.mxu0 %v983
        %4772 = vmatpush1.bf16.msra.mxu0 %v982
        %4773 = vmatprep.subr.bf16.mxu0 %v985
        %4774 = vmatpush1.bf16.msra.mxu0 %v984
        %4775 = vmatprep.mubr.bf16.mxu0 %v4687
        %4776 = vmatmul.mubr.bf16.gmra.mrb[0].mxu0 %v4686
        %v4777 = vpop.f32.mrb[0].mxu0
        %v4778 = vadd.f32 %v4737, %v4777
        %v4779 = vpop.f32.mrb[0].mxu0
        %v4780 = vadd.f32 %v4739, %v4779
        %v4781 = vpop.f32.mrb[0].mxu0
        %v4782 = vpop.f32.mrb[0].mxu0
        %4783 = vdwg.mxu0
        %4784 = vmatprep.subr.bf16.mxu0 %v987
        %4785 = vmatpush1.bf16.msra.mxu0 %v986
        %4786 = vmatprep.subr.bf16.mxu0 %v989
        %4787 = vmatpush1.bf16.msra.mxu0 %v988
        %4788 = vmatprep.subr.bf16.mxu0 %v991
        %4789 = vmatpush1.bf16.msra.mxu0 %v990
        %4790 = vmatprep.subr.bf16.mxu0 %v993
        %4791 = vmatpush1.bf16.msra.mxu0 %v992
        %4792 = vmatprep.subr.bf16.mxu0 %v995
        %4793 = vmatpush1.bf16.msra.mxu0 %v994
        %4794 = vmatprep.subr.bf16.mxu0 %v997
        %4795 = vmatpush1.bf16.msra.mxu0 %v996
        %4796 = vmatprep.subr.bf16.mxu0 %v999
        %4797 = vmatpush1.bf16.msra.mxu0 %v998
        %4798 = vmatprep.subr.bf16.mxu0 %v1001
        %4799 = vmatpush1.bf16.msra.mxu0 %v1000
        %4800 = vmatprep.subr.bf16.mxu0 %v1003
        %4801 = vmatpush1.bf16.msra.mxu0 %v1002
        %4802 = vmatprep.subr.bf16.mxu0 %v1005
        %4803 = vmatpush1.bf16.msra.mxu0 %v1004
        %4804 = vmatprep.subr.bf16.mxu0 %v1007
        %4805 = vmatpush1.bf16.msra.mxu0 %v1006
        %4806 = vmatprep.subr.bf16.mxu0 %v1009
        %4807 = vmatpush1.bf16.msra.mxu0 %v1008
        %4808 = vmatprep.subr.bf16.mxu0 %v1011
        %4809 = vmatpush1.bf16.msra.mxu0 %v1010
        %4810 = vmatprep.subr.bf16.mxu0 %v1013
        %4811 = vmatpush1.bf16.msra.mxu0 %v1012
        %4812 = vmatprep.subr.bf16.mxu0 %v1015
        %4813 = vmatpush1.bf16.msra.mxu0 %v1014
        %4814 = vmatprep.subr.bf16.mxu0 %v1017
        %4815 = vmatpush1.bf16.msra.mxu0 %v1016
        %4816 = vmatprep.mubr.bf16.mxu0 %v4689
        %4817 = vmatmul.mubr.bf16.gmra.mrb[0].mxu0 %v4688
        %v4818 = vpop.f32.mrb[0].mxu0
        %v4819 = vadd.f32 %v4778, %v4818
        %v4820 = vpop.f32.mrb[0].mxu0
        %v4821 = vadd.f32 %v4780, %v4820
        %v4822 = vpop.f32.mrb[0].mxu0
        %v4823 = vpop.f32.mrb[0].mxu0
        %4824 = vdwg.mxu0
        %4825 = vmatprep.subr.bf16.mxu0 %v1019
        %4826 = vmatpush1.bf16.msra.mxu0 %v1018
        %4827 = vmatprep.subr.bf16.mxu0 %v1021
        %4828 = vmatpush1.bf16.msra.mxu0 %v1020
        %4829 = vmatprep.subr.bf16.mxu0 %v1023
        %4830 = vmatpush1.bf16.msra.mxu0 %v1022
        %4831 = vmatprep.subr.bf16.mxu0 %v1025
        %4832 = vmatpush1.bf16.msra.mxu0 %v1024
        %4833 = vmatprep.subr.bf16.mxu0 %v1027
        %4834 = vmatpush1.bf16.msra.mxu0 %v1026
        %4835 = vmatprep.subr.bf16.mxu0 %v1029
        %4836 = vmatpush1.bf16.msra.mxu0 %v1028
        %4837 = vmatprep.subr.bf16.mxu0 %v1031
        %4838 = vmatpush1.bf16.msra.mxu0 %v1030
        %4839 = vmatprep.subr.bf16.mxu0 %v1033
        %4840 = vmatpush1.bf16.msra.mxu0 %v1032
        %4841 = vmatprep.subr.bf16.mxu0 %v1035
        %4842 = vmatpush1.bf16.msra.mxu0 %v1034
        %4843 = vmatprep.subr.bf16.mxu0 %v1037
        %4844 = vmatpush1.bf16.msra.mxu0 %v1036
        %4845 = vmatprep.subr.bf16.mxu0 %v1039
        %4846 = vmatpush1.bf16.msra.mxu0 %v1038
        %4847 = vmatprep.subr.bf16.mxu0 %v1041
        %4848 = vmatpush1.bf16.msra.mxu0 %v1040
        %4849 = vmatprep.subr.bf16.mxu0 %v1043
        %4850 = vmatpush1.bf16.msra.mxu0 %v1042
        %4851 = vmatprep.subr.bf16.mxu0 %v1045
        %4852 = vmatpush1.bf16.msra.mxu0 %v1044
        %4853 = vmatprep.subr.bf16.mxu0 %v1181
        %4854 = vmatpush1.bf16.msra.mxu0 %v1178
        %4855 = vmatprep.subr.bf16.mxu0 0
        %4856 = vmatpush1.bf16.msra.mxu0 0
        %4857 = vmatprep.mubr.bf16.mxu0 %v4700
        %4858 = vmatmul.mubr.bf16.gmra.mrb[0].mxu0 %v4690
        %v4859 = vpop.f32.mrb[0].mxu0
        %v4860 = vadd.f32 %v4819, %v4859
        %v4861 = vpop.f32.mrb[0].mxu0
        %v4862 = vadd.f32 %v4821, %v4861
        %v4863 = vpop.f32.mrb[0].mxu0
        %v4864 = vpop.f32.mrb[0].mxu0
        %4865 = vdwg.mxu0
        %4875 = vrot.lane.b32.xlu0 %v4620, 96
        %v4876 = vpop.permute.xlu0 %4875
        %4877 = vrot.lane.b32.xlu0 %v4621, 96
        %v4878 = vpop.permute.xlu0 %4877
        %4879 = vrot.lane.b32.xlu0 %v4622, 96
        %v4880 = vpop.permute.xlu0 %4879
        %4881 = vrot.lane.b32.xlu0 %v4623, 96
        %v4882 = vpop.permute.xlu0 %4881
        %4883 = vrot.lane.b32.xlu0 %v4624, 96
        %v4884 = vpop.permute.xlu0 %4883
        %4885 = vrot.lane.b32.xlu0 %v4625, 96
        %v4886 = vpop.permute.xlu0 %4885
        %4887 = vrot.lane.b32.xlu0 %v4626, 96
        %v4888 = vpop.permute.xlu0 %4887
        %4889 = vrot.lane.b32.xlu0 %v4627, 96
        %v4890 = vpop.permute.xlu0 %4889
        %4891 = vrot.lane.b32.xlu0 %v4628, 96
        %v4892 = vpop.permute.xlu0 %4891
        %v4893 = vsel %vm4683, %v4876, %v4878
        %v4894 = vsel %vm4683, %v4878, %v4880
        %v4895 = vsel %vm4683, %v4880, %v4882
        %v4896 = vsel %vm4683, %v4882, %v4884
        %v4897 = vsel %vm4683, %v4884, %v4886
        %v4898 = vsel %vm4683, %v4886, %v4888
        %v4899 = vsel %vm4683, %v4888, %v4890
        %v4900 = vsel %vm4683, %v4890, %v4892
        %v4909 = vsel %vm1172, %v4900, 0
        %4911 = vmatprep.subr.bf16.mxu0 %v923
        %4912 = vmatpush1.bf16.msra.mxu0 %v922
        %4913 = vmatprep.subr.bf16.mxu0 %v925
        %4914 = vmatpush1.bf16.msra.mxu0 %v924
        %4915 = vmatprep.subr.bf16.mxu0 %v927
        %4916 = vmatpush1.bf16.msra.mxu0 %v926
        %4917 = vmatprep.subr.bf16.mxu0 %v929
        %4918 = vmatpush1.bf16.msra.mxu0 %v928
        %4919 = vmatprep.subr.bf16.mxu0 %v931
        %4920 = vmatpush1.bf16.msra.mxu0 %v930
        %4921 = vmatprep.subr.bf16.mxu0 %v933
        %4922 = vmatpush1.bf16.msra.mxu0 %v932
        %4923 = vmatprep.subr.bf16.mxu0 %v935
        %4924 = vmatpush1.bf16.msra.mxu0 %v934
        %4925 = vmatprep.subr.bf16.mxu0 %v937
        %4926 = vmatpush1.bf16.msra.mxu0 %v936
        %4927 = vmatprep.subr.bf16.mxu0 %v939
        %4928 = vmatpush1.bf16.msra.mxu0 %v938
        %4929 = vmatprep.subr.bf16.mxu0 %v941
        %4930 = vmatpush1.bf16.msra.mxu0 %v940
        %4931 = vmatprep.subr.bf16.mxu0 %v943
        %4932 = vmatpush1.bf16.msra.mxu0 %v942
        %4933 = vmatprep.subr.bf16.mxu0 %v945
        %4934 = vmatpush1.bf16.msra.mxu0 %v944
        %4935 = vmatprep.subr.bf16.mxu0 %v947
        %4936 = vmatpush1.bf16.msra.mxu0 %v946
        %4937 = vmatprep.subr.bf16.mxu0 %v949
        %4938 = vmatpush1.bf16.msra.mxu0 %v948
        %4939 = vmatprep.subr.bf16.mxu0 %v951
        %4940 = vmatpush1.bf16.msra.mxu0 %v950
        %4941 = vmatprep.subr.bf16.mxu0 %v953
        %4942 = vmatpush1.bf16.msra.mxu0 %v952
        %4943 = vmatprep.mubr.bf16.mxu0 %v4894
        %4944 = vmatmul.mubr.bf16.gmra.mrb[0].mxu0 %v4893
        %v4945 = vpop.f32.mrb[0].mxu0
        %v4946 = vadd.f32 %v4860, %v4945
        %v4947 = vpop.f32.mrb[0].mxu0
        %v4948 = vadd.f32 %v4862, %v4947
        %v4949 = vpop.f32.mrb[0].mxu0
        %v4950 = vpop.f32.mrb[0].mxu0
        %4951 = vdwg.mxu0
        %4952 = vmatprep.subr.bf16.mxu0 %v955
        %4953 = vmatpush1.bf16.msra.mxu0 %v954
        %4954 = vmatprep.subr.bf16.mxu0 %v957
        %4955 = vmatpush1.bf16.msra.mxu0 %v956
        %4956 = vmatprep.subr.bf16.mxu0 %v959
        %4957 = vmatpush1.bf16.msra.mxu0 %v958
        %4958 = vmatprep.subr.bf16.mxu0 %v961
        %4959 = vmatpush1.bf16.msra.mxu0 %v960
        %4960 = vmatprep.subr.bf16.mxu0 %v963
        %4961 = vmatpush1.bf16.msra.mxu0 %v962
        %4962 = vmatprep.subr.bf16.mxu0 %v965
        %4963 = vmatpush1.bf16.msra.mxu0 %v964
        %4964 = vmatprep.subr.bf16.mxu0 %v967
        %4965 = vmatpush1.bf16.msra.mxu0 %v966
        %4966 = vmatprep.subr.bf16.mxu0 %v969
        %4967 = vmatpush1.bf16.msra.mxu0 %v968
        %4968 = vmatprep.subr.bf16.mxu0 %v971
        %4969 = vmatpush1.bf16.msra.mxu0 %v970
        %4970 = vmatprep.subr.bf16.mxu0 %v973
        %4971 = vmatpush1.bf16.msra.mxu0 %v972
        %4972 = vmatprep.subr.bf16.mxu0 %v975
        %4973 = vmatpush1.bf16.msra.mxu0 %v974
        %4974 = vmatprep.subr.bf16.mxu0 %v977
        %4975 = vmatpush1.bf16.msra.mxu0 %v976
        %4976 = vmatprep.subr.bf16.mxu0 %v979
        %4977 = vmatpush1.bf16.msra.mxu0 %v978
        %4978 = vmatprep.subr.bf16.mxu0 %v981
        %4979 = vmatpush1.bf16.msra.mxu0 %v980
        %4980 = vmatprep.subr.bf16.mxu0 %v983
        %4981 = vmatpush1.bf16.msra.mxu0 %v982
        %4982 = vmatprep.subr.bf16.mxu0 %v985
        %4983 = vmatpush1.bf16.msra.mxu0 %v984
        %4984 = vmatprep.mubr.bf16.mxu0 %v4896
        %4985 = vmatmul.mubr.bf16.gmra.mrb[0].mxu0 %v4895
        %v4986 = vpop.f32.mrb[0].mxu0
        %v4987 = vadd.f32 %v4946, %v4986
        %v4988 = vpop.f32.mrb[0].mxu0
        %v4989 = vadd.f32 %v4948, %v4988
        %v4990 = vpop.f32.mrb[0].mxu0
        %v4991 = vpop.f32.mrb[0].mxu0
        %4992 = vdwg.mxu0
        %4993 = vmatprep.subr.bf16.mxu0 %v987
        %4994 = vmatpush1.bf16.msra.mxu0 %v986
        %4995 = vmatprep.subr.bf16.mxu0 %v989
        %4996 = vmatpush1.bf16.msra.mxu0 %v988
        %4997 = vmatprep.subr.bf16.mxu0 %v991
        %4998 = vmatpush1.bf16.msra.mxu0 %v990
        %4999 = vmatprep.subr.bf16.mxu0 %v993
        %5000 = vmatpush1.bf16.msra.mxu0 %v992
        %5001 = vmatprep.subr.bf16.mxu0 %v995
        %5002 = vmatpush1.bf16.msra.mxu0 %v994
        %5003 = vmatprep.subr.bf16.mxu0 %v997
        %5004 = vmatpush1.bf16.msra.mxu0 %v996
        %5005 = vmatprep.subr.bf16.mxu0 %v999
        %5006 = vmatpush1.bf16.msra.mxu0 %v998
        %5007 = vmatprep.subr.bf16.mxu0 %v1001
        %5008 = vmatpush1.bf16.msra.mxu0 %v1000
        %5009 = vmatprep.subr.bf16.mxu0 %v1003
        %5010 = vmatpush1.bf16.msra.mxu0 %v1002
        %5011 = vmatprep.subr.bf16.mxu0 %v1005
        %5012 = vmatpush1.bf16.msra.mxu0 %v1004
        %5013 = vmatprep.subr.bf16.mxu0 %v1007
        %5014 = vmatpush1.bf16.msra.mxu0 %v1006
        %5015 = vmatprep.subr.bf16.mxu0 %v1009
        %5016 = vmatpush1.bf16.msra.mxu0 %v1008
        %5017 = vmatprep.subr.bf16.mxu0 %v1011
        %5018 = vmatpush1.bf16.msra.mxu0 %v1010
        %5019 = vmatprep.subr.bf16.mxu0 %v1013
        %5020 = vmatpush1.bf16.msra.mxu0 %v1012
        %5021 = vmatprep.subr.bf16.mxu0 %v1015
        %5022 = vmatpush1.bf16.msra.mxu0 %v1014
        %5023 = vmatprep.subr.bf16.mxu0 %v1017
        %5024 = vmatpush1.bf16.msra.mxu0 %v1016
        %5025 = vmatprep.mubr.bf16.mxu0 %v4898
        %5026 = vmatmul.mubr.bf16.gmra.mrb[0].mxu0 %v4897
        %v5027 = vpop.f32.mrb[0].mxu0
        %v5028 = vadd.f32 %v4987, %v5027
        %v5029 = vpop.f32.mrb[0].mxu0
        %v5030 = vadd.f32 %v4989, %v5029
        %v5031 = vpop.f32.mrb[0].mxu0
        %v5032 = vpop.f32.mrb[0].mxu0
        %5033 = vdwg.mxu0
        %5034 = vmatprep.subr.bf16.mxu0 %v1019
        %5035 = vmatpush1.bf16.msra.mxu0 %v1018
        %5036 = vmatprep.subr.bf16.mxu0 %v1021
        %5037 = vmatpush1.bf16.msra.mxu0 %v1020
        %5038 = vmatprep.subr.bf16.mxu0 %v1023
        %5039 = vmatpush1.bf16.msra.mxu0 %v1022
        %5040 = vmatprep.subr.bf16.mxu0 %v1025
        %5041 = vmatpush1.bf16.msra.mxu0 %v1024
        %5042 = vmatprep.subr.bf16.mxu0 %v1027
        %5043 = vmatpush1.bf16.msra.mxu0 %v1026
        %5044 = vmatprep.subr.bf16.mxu0 %v1029
        %5045 = vmatpush1.bf16.msra.mxu0 %v1028
        %5046 = vmatprep.subr.bf16.mxu0 %v1031
        %5047 = vmatpush1.bf16.msra.mxu0 %v1030
        %5048 = vmatprep.subr.bf16.mxu0 %v1033
        %5049 = vmatpush1.bf16.msra.mxu0 %v1032
        %5050 = vmatprep.subr.bf16.mxu0 %v1035
        %5051 = vmatpush1.bf16.msra.mxu0 %v1034
        %5052 = vmatprep.subr.bf16.mxu0 %v1037
        %5053 = vmatpush1.bf16.msra.mxu0 %v1036
        %5054 = vmatprep.subr.bf16.mxu0 %v1039
        %5055 = vmatpush1.bf16.msra.mxu0 %v1038
        %5056 = vmatprep.subr.bf16.mxu0 %v1041
        %5057 = vmatpush1.bf16.msra.mxu0 %v1040
        %5058 = vmatprep.subr.bf16.mxu0 %v1043
        %5059 = vmatpush1.bf16.msra.mxu0 %v1042
        %5060 = vmatprep.subr.bf16.mxu0 %v1045
        %5061 = vmatpush1.bf16.msra.mxu0 %v1044
        %5062 = vmatprep.subr.bf16.mxu0 %v1181
        %5063 = vmatpush1.bf16.msra.mxu0 %v1178
        %5064 = vmatprep.subr.bf16.mxu0 0
        %5065 = vmatpush1.bf16.msra.mxu0 0
        %5066 = vmatprep.mubr.bf16.mxu0 %v4909
        %5067 = vmatmul.mubr.bf16.gmra.mrb[0].mxu0 %v4899
        %v5068 = vpop.f32.mrb[0].mxu0
        %v5069 = vadd.f32 %v5028, %v5068
        %v5070 = vpop.f32.mrb[0].mxu0
        %v5071 = vadd.f32 %v5030, %v5070
        %v5072 = vpop.f32.mrb[0].mxu0
        %v5073 = vpop.f32.mrb[0].mxu0
        %5074 = vdwg.mxu0
        %v5075 = vunpack.c.l.bf16 %v4647
        %v5076 = vunpack.c.l.bf16 %v4648
        %v5077 = vunpack.c.l.bf16 %v4649
        %v5078 = vunpack.c.l.bf16 %v4650
        %v5079 = vunpack.c.l.bf16 %v4651
        %v5080 = vunpack.c.l.bf16 %v4652
        %v5081 = vunpack.c.l.bf16 %v4653
        %v5082 = vunpack.c.l.bf16 %v4654
        %v5083 = vunpack.c.l.bf16 %v4655
        %v5084 = vsub.f32 %v4638, %v5075
        %v5085 = vsub.f32 %v4639, %v5076
        %v5086 = vsub.f32 %v4640, %v5077
        %v5087 = vsub.f32 %v4641, %v5078
        %v5088 = vsub.f32 %v4642, %v5079
        %v5089 = vsub.f32 %v4643, %v5080
        %v5090 = vsub.f32 %v4644, %v5081
        %v5091 = vsub.f32 %v4645, %v5082
        %v5092 = vsub.f32 %v4646, %v5083
        %v5093 = vpack.c.bf16 %v5084, %v5084
        %v5094 = vpack.c.bf16 %v5085, %v5085
        %v5095 = vpack.c.bf16 %v5086, %v5086
        %v5096 = vpack.c.bf16 %v5087, %v5087
        %v5097 = vpack.c.bf16 %v5088, %v5088
        %v5098 = vpack.c.bf16 %v5089, %v5089
        %v5099 = vpack.c.bf16 %v5090, %v5090
        %v5100 = vpack.c.bf16 %v5091, %v5091
        %v5101 = vpack.c.bf16 %v5092, %v5092
        %5111 = vrot.lane.b32.xlu0 %v5093, 96
        %v5112 = vpop.permute.xlu0 %5111
        %5113 = vrot.lane.b32.xlu0 %v5094, 96
        %v5114 = vpop.permute.xlu0 %5113
        %5115 = vrot.lane.b32.xlu0 %v5095, 96
        %v5116 = vpop.permute.xlu0 %5115
        %5117 = vrot.lane.b32.xlu0 %v5096, 96
        %v5118 = vpop.permute.xlu0 %5117
        %5119 = vrot.lane.b32.xlu0 %v5097, 96
        %v5120 = vpop.permute.xlu0 %5119
        %5121 = vrot.lane.b32.xlu0 %v5098, 96
        %v5122 = vpop.permute.xlu0 %5121
        %5123 = vrot.lane.b32.xlu0 %v5099, 96
        %v5124 = vpop.permute.xlu0 %5123
        %5125 = vrot.lane.b32.xlu0 %v5100, 96
        %v5126 = vpop.permute.xlu0 %5125
        %5127 = vrot.lane.b32.xlu0 %v5101, 96
        %v5128 = vpop.permute.xlu0 %5127
        %v5129 = vsel %vm4683, %v5112, %v5114
        %v5130 = vsel %vm4683, %v5114, %v5116
        %v5131 = vsel %vm4683, %v5116, %v5118
        %v5132 = vsel %vm4683, %v5118, %v5120
        %v5133 = vsel %vm4683, %v5120, %v5122
        %v5134 = vsel %vm4683, %v5122, %v5124
        %v5135 = vsel %vm4683, %v5124, %v5126
        %v5136 = vsel %vm4683, %v5126, %v5128
        %v5145 = vsel %vm1172, %v5136, 0
        %5147 = vmatprep.subr.bf16.mxu0 %v923
        %5148 = vmatpush1.bf16.msra.mxu0 %v922
        %5149 = vmatprep.subr.bf16.mxu0 %v925
        %5150 = vmatpush1.bf16.msra.mxu0 %v924
        %5151 = vmatprep.subr.bf16.mxu0 %v927
        %5152 = vmatpush1.bf16.msra.mxu0 %v926
        %5153 = vmatprep.subr.bf16.mxu0 %v929
        %5154 = vmatpush1.bf16.msra.mxu0 %v928
        %5155 = vmatprep.subr.bf16.mxu0 %v931
        %5156 = vmatpush1.bf16.msra.mxu0 %v930
        %5157 = vmatprep.subr.bf16.mxu0 %v933
        %5158 = vmatpush1.bf16.msra.mxu0 %v932
        %5159 = vmatprep.subr.bf16.mxu0 %v935
        %5160 = vmatpush1.bf16.msra.mxu0 %v934
        %5161 = vmatprep.subr.bf16.mxu0 %v937
        %5162 = vmatpush1.bf16.msra.mxu0 %v936
        %5163 = vmatprep.subr.bf16.mxu0 %v939
        %5164 = vmatpush1.bf16.msra.mxu0 %v938
        %5165 = vmatprep.subr.bf16.mxu0 %v941
        %5166 = vmatpush1.bf16.msra.mxu0 %v940
        %5167 = vmatprep.subr.bf16.mxu0 %v943
        %5168 = vmatpush1.bf16.msra.mxu0 %v942
        %5169 = vmatprep.subr.bf16.mxu0 %v945
        %5170 = vmatpush1.bf16.msra.mxu0 %v944
        %5171 = vmatprep.subr.bf16.mxu0 %v947
        %5172 = vmatpush1.bf16.msra.mxu0 %v946
        %5173 = vmatprep.subr.bf16.mxu0 %v949
        %5174 = vmatpush1.bf16.msra.mxu0 %v948
        %5175 = vmatprep.subr.bf16.mxu0 %v951
        %5176 = vmatpush1.bf16.msra.mxu0 %v950
        %5177 = vmatprep.subr.bf16.mxu0 %v953
        %5178 = vmatpush1.bf16.msra.mxu0 %v952
        %5179 = vmatprep.mubr.bf16.mxu0 %v5130
        %5180 = vmatmul.mubr.bf16.gmra.mrb[0].mxu0 %v5129
        %v5181 = vpop.f32.mrb[0].mxu0
        %v5182 = vadd.f32 0.0, %v5181
        %v5183 = vpop.f32.mrb[0].mxu0
        %v5184 = vadd.f32 0.0, %v5183
        %v5185 = vpop.f32.mrb[0].mxu0
        %v5186 = vpop.f32.mrb[0].mxu0
        %5187 = vdwg.mxu0
        %5188 = vmatprep.subr.bf16.mxu0 %v955
        %5189 = vmatpush1.bf16.msra.mxu0 %v954
        %5190 = vmatprep.subr.bf16.mxu0 %v957
        %5191 = vmatpush1.bf16.msra.mxu0 %v956
        %5192 = vmatprep.subr.bf16.mxu0 %v959
        %5193 = vmatpush1.bf16.msra.mxu0 %v958
        %5194 = vmatprep.subr.bf16.mxu0 %v961
        %5195 = vmatpush1.bf16.msra.mxu0 %v960
        %5196 = vmatprep.subr.bf16.mxu0 %v963
        %5197 = vmatpush1.bf16.msra.mxu0 %v962
        %5198 = vmatprep.subr.bf16.mxu0 %v965
        %5199 = vmatpush1.bf16.msra.mxu0 %v964
        %5200 = vmatprep.subr.bf16.mxu0 %v967
        %5201 = vmatpush1.bf16.msra.mxu0 %v966
        %5202 = vmatprep.subr.bf16.mxu0 %v969
        %5203 = vmatpush1.bf16.msra.mxu0 %v968
        %5204 = vmatprep.subr.bf16.mxu0 %v971
        %5205 = vmatpush1.bf16.msra.mxu0 %v970
        %5206 = vmatprep.subr.bf16.mxu0 %v973
        %5207 = vmatpush1.bf16.msra.mxu0 %v972
        %5208 = vmatprep.subr.bf16.mxu0 %v975
        %5209 = vmatpush1.bf16.msra.mxu0 %v974
        %5210 = vmatprep.subr.bf16.mxu0 %v977
        %5211 = vmatpush1.bf16.msra.mxu0 %v976
        %5212 = vmatprep.subr.bf16.mxu0 %v979
        %5213 = vmatpush1.bf16.msra.mxu0 %v978
        %5214 = vmatprep.subr.bf16.mxu0 %v981
        %5215 = vmatpush1.bf16.msra.mxu0 %v980
        %5216 = vmatprep.subr.bf16.mxu0 %v983
        %5217 = vmatpush1.bf16.msra.mxu0 %v982
        %5218 = vmatprep.subr.bf16.mxu0 %v985
        %5219 = vmatpush1.bf16.msra.mxu0 %v984
        %5220 = vmatprep.mubr.bf16.mxu0 %v5132
        %5221 = vmatmul.mubr.bf16.gmra.mrb[0].mxu0 %v5131
        %v5222 = vpop.f32.mrb[0].mxu0
        %v5223 = vadd.f32 %v5182, %v5222
        %v5224 = vpop.f32.mrb[0].mxu0
        %v5225 = vadd.f32 %v5184, %v5224
        %v5226 = vpop.f32.mrb[0].mxu0
        %v5227 = vpop.f32.mrb[0].mxu0
        %5228 = vdwg.mxu0
        %5229 = vmatprep.subr.bf16.mxu0 %v987
        %5230 = vmatpush1.bf16.msra.mxu0 %v986
        %5231 = vmatprep.subr.bf16.mxu0 %v989
        %5232 = vmatpush1.bf16.msra.mxu0 %v988
        %5233 = vmatprep.subr.bf16.mxu0 %v991
        %5234 = vmatpush1.bf16.msra.mxu0 %v990
        %5235 = vmatprep.subr.bf16.mxu0 %v993
        %5236 = vmatpush1.bf16.msra.mxu0 %v992
        %5237 = vmatprep.subr.bf16.mxu0 %v995
        %5238 = vmatpush1.bf16.msra.mxu0 %v994
        %5239 = vmatprep.subr.bf16.mxu0 %v997
        %5240 = vmatpush1.bf16.msra.mxu0 %v996
        %5241 = vmatprep.subr.bf16.mxu0 %v999
        %5242 = vmatpush1.bf16.msra.mxu0 %v998
        %5243 = vmatprep.subr.bf16.mxu0 %v1001
        %5244 = vmatpush1.bf16.msra.mxu0 %v1000
        %5245 = vmatprep.subr.bf16.mxu0 %v1003
        %5246 = vmatpush1.bf16.msra.mxu0 %v1002
        %5247 = vmatprep.subr.bf16.mxu0 %v1005
        %5248 = vmatpush1.bf16.msra.mxu0 %v1004
        %5249 = vmatprep.subr.bf16.mxu0 %v1007
        %5250 = vmatpush1.bf16.msra.mxu0 %v1006
        %5251 = vmatprep.subr.bf16.mxu0 %v1009
        %5252 = vmatpush1.bf16.msra.mxu0 %v1008
        %5253 = vmatprep.subr.bf16.mxu0 %v1011
        %5254 = vmatpush1.bf16.msra.mxu0 %v1010
        %5255 = vmatprep.subr.bf16.mxu0 %v1013
        %5256 = vmatpush1.bf16.msra.mxu0 %v1012
        %5257 = vmatprep.subr.bf16.mxu0 %v1015
        %5258 = vmatpush1.bf16.msra.mxu0 %v1014
        %5259 = vmatprep.subr.bf16.mxu0 %v1017
        %5260 = vmatpush1.bf16.msra.mxu0 %v1016
        %5261 = vmatprep.mubr.bf16.mxu0 %v5134
        %5262 = vmatmul.mubr.bf16.gmra.mrb[0].mxu0 %v5133
        %v5263 = vpop.f32.mrb[0].mxu0
        %v5264 = vadd.f32 %v5223, %v5263
        %v5265 = vpop.f32.mrb[0].mxu0
        %v5266 = vadd.f32 %v5225, %v5265
        %v5267 = vpop.f32.mrb[0].mxu0
        %v5268 = vpop.f32.mrb[0].mxu0
        %5269 = vdwg.mxu0
        %5270 = vmatprep.subr.bf16.mxu0 %v1019
        %5271 = vmatpush1.bf16.msra.mxu0 %v1018
        %5272 = vmatprep.subr.bf16.mxu0 %v1021
        %5273 = vmatpush1.bf16.msra.mxu0 %v1020
        %5274 = vmatprep.subr.bf16.mxu0 %v1023
        %5275 = vmatpush1.bf16.msra.mxu0 %v1022
        %5276 = vmatprep.subr.bf16.mxu0 %v1025
        %5277 = vmatpush1.bf16.msra.mxu0 %v1024
        %5278 = vmatprep.subr.bf16.mxu0 %v1027
        %5279 = vmatpush1.bf16.msra.mxu0 %v1026
        %5280 = vmatprep.subr.bf16.mxu0 %v1029
        %5281 = vmatpush1.bf16.msra.mxu0 %v1028
        %5282 = vmatprep.subr.bf16.mxu0 %v1031
        %5283 = vmatpush1.bf16.msra.mxu0 %v1030
        %5284 = vmatprep.subr.bf16.mxu0 %v1033
        %5285 = vmatpush1.bf16.msra.mxu0 %v1032
        %5286 = vmatprep.subr.bf16.mxu0 %v1035
        %5287 = vmatpush1.bf16.msra.mxu0 %v1034
        %5288 = vmatprep.subr.bf16.mxu0 %v1037
        %5289 = vmatpush1.bf16.msra.mxu0 %v1036
        %5290 = vmatprep.subr.bf16.mxu0 %v1039
        %5291 = vmatpush1.bf16.msra.mxu0 %v1038
        %5292 = vmatprep.subr.bf16.mxu0 %v1041
        %5293 = vmatpush1.bf16.msra.mxu0 %v1040
        %5294 = vmatprep.subr.bf16.mxu0 %v1043
        %5295 = vmatpush1.bf16.msra.mxu0 %v1042
        %5296 = vmatprep.subr.bf16.mxu0 %v1045
        %5297 = vmatpush1.bf16.msra.mxu0 %v1044
        %5298 = vmatprep.subr.bf16.mxu0 %v1181
        %5299 = vmatpush1.bf16.msra.mxu0 %v1178
        %5300 = vmatprep.subr.bf16.mxu0 0
        %5301 = vmatpush1.bf16.msra.mxu0 0
        %5302 = vmatprep.mubr.bf16.mxu0 %v5145
        %5303 = vmatmul.mubr.bf16.gmra.mrb[0].mxu0 %v5135
        %v5304 = vpop.f32.mrb[0].mxu0
        %v5305 = vadd.f32 %v5264, %v5304
        %v5306 = vpop.f32.mrb[0].mxu0
        %v5307 = vadd.f32 %v5266, %v5306
        %v5308 = vpop.f32.mrb[0].mxu0
        %v5309 = vpop.f32.mrb[0].mxu0
        %5310 = vdwg.mxu0
        %v5311 = vadd.f32 %v5069, %v5305
        %v5312 = vadd.f32 %v5071, %v5307
        %5315 = vrot.lane.b32.xlu0 %v5311, 8
        %v5316 = vpop.permute.xlu0 %5315
        %5317 = vrot.lane.b32.xlu0 %v5312, 8
        %v5318 = vpop.permute.xlu0 %5317
        %v5319 = vsel %vm4424, %v5316, %v5318
        %vm5322 = vcmask 1047616
        %5323 = vst.msk [vmem:[%s183 + $0x70] sm:$0xff] %vm5322, %v5316
        %vm5324 = vcmask 654336
        %5325 = vst.msk [vmem:[%s183 + $0x78] sm:$0xff] %vm5324, %v5319
        %s5326 = sand.u32 %s100, 1
        %s5327 = scalar_lea.sflag [#allocation3], %s5326
        %s5328 = sand.u32 %s100, 1
        %s5329 = smul.addr %s5328, 128
        %s5330 = scalar_lea.vmem [#allocation2], %s5329
        // Predicated region
        $region33: #{parallel_module_forward.1} parent=31 // pred_check
          %p5331 = pneg %p110
        $region34: #{parallel_module_forward.1} parent=31 // pred_check_branch
          %5333 = sbr.rel (%p5331) target = $region36
        $region35: #{parallel_module_forward.1} parent=31 // pred_region
          %s5335 = ssub.s32 2048, 2048
          %5336 = vsyncadd %s5327, %s5335
          %s5337 = smul.addr %s17, 16
          %s5338 = smul.addr %s5337, 128
          %s5339 = scalar_lea.hbm %s3, %s5338
          %s5341 = sshll.u32 %s5330, 4
          %s5342 = int_to_ptr.vmem [resolvable:$true] %s5341
          %5344 = dma.vmem_to_hbm [thread:$0]  %s5342, 2048, %s5339, %s5327
        $region36: #{parallel_module_forward.1} parent=31 // pred_fallthru
          _
      $region32: #{parallel_module_forward.1} parent=5 // pred_fallthru
        _
      %p5345 = scmp.le.s32.totalorder 2, %s12
      // Predicated region
      $region37: #{parallel_module_forward.1} parent=5 // pred_check
        %p5346 = pneg %p5345
      $region38: #{parallel_module_forward.1} parent=5 // pred_check_branch
        %5348 = sbr.rel (%p5346) target = $region40
      $region39: #{parallel_module_forward.1} parent=5 // pred_region
        %s5349 = ssub.s32 %s12, 2
        // Predicated region
        $region41: #{parallel_module_forward.1} parent=39 // pred_check
          %p5350 = pneg %p116
        $region42: #{parallel_module_forward.1} parent=39 // pred_check_branch
          %5352 = sbr.rel (%p5350) target = $region44
        $region43: #{parallel_module_forward.1} parent=39 // pred_region
          %s5353 = sand.u32 %s101, 1
          %s5354 = scalar_lea.sflag [#allocation3], %s5353
          %s5355 = sand.u32 %s101, 1
          %s5356 = smul.addr %s5355, 128
          %s5357 = scalar_lea.vmem [#allocation2], %s5356
          %5358 = dma.done %s5354, 2048
        $region44: #{parallel_module_forward.1} parent=39 // pred_fallthru
          _
      $region40: #{parallel_module_forward.1} parent=5 // pred_fallthru
        _
    $region6: #{parallel_module_forward.1} parent=1 // loop_footer
      %s16 = sadd.s32 1, %s12
    $region7: #{parallel_module_forward.1} parent=1 // loop_footer_branch
      %11 = sbr.rel target = $region3
    $region8: #{parallel_module_forward.1} parent=1 // loop_exit
      _
    %5359 = vsyncpa [#allocation3], 1
    %s5360 = scalar_lea.sflag [#allocation3], 1
    %5361 = vsyncpa %s5360, 1

</llo_original>
